<compile_context>
chip_gen: v6e
topology: v6e:2x2x1
jax: 0.10.0
libtpu: 0.0.40
codegen_flags: <defaults>
</compile_context>

<pallas_src>
import jax
import jax.numpy as jnp
from jax.experimental import pallas as pl
from jax.experimental.pallas import tpu as pltpu

GTE_EMBEDDING_SIZE = 1024


def _avg_pool_kernel(mask_ref, inv_ref, hidden_ref, out_ref):
    """One (tb, ts, th) step of the masked average pool.

    mask_ref   : (tb, 1, ts)  hidden-dtype 0/1 attention mask (sequence on lanes)
    inv_ref    : (tb, 1, 1)   float32      precomputed 1 / sum(mask) per row
    hidden_ref : (tb, ts, th) f32/bf16     hidden-state tile
    out_ref    : (tb, 1, th)  float32      pooled output, VMEM-resident across seq
    """
    s = pl.program_id(2)

    @pl.when(s == 0)
    def _init():
        out_ref[...] = jnp.zeros_like(out_ref)

    # masked_fill(~mask, 0).sum(dim=1) with a 0/1 mask == mask @ hidden on the
    # MXU: (tb, 1, ts) x (tb, ts, th) -> (tb, 1, th), f32 accumulation.
    prec = (jax.lax.Precision.HIGHEST
            if hidden_ref.dtype == jnp.float32 else None)
    out_ref[...] += jnp.einsum(
        "bos,bsh->boh", mask_ref[...], hidden_ref[...],
        preferred_element_type=jnp.float32, precision=prec)

    @pl.when(s == pl.num_programs(2) - 1)
    def _finalize():
        # Hoisted reciprocal denominator: one multiply instead of a divide.
        out_ref[...] *= inv_ref[...]


def _vmem_capacity_bytes() -> int:
    """Best-effort VMEM capacity query (falls back to the v7x 64 MiB floor)."""
    try:
        return int(pltpu.get_tpu_info().vmem_capacity_bytes)
    except Exception:
        return 64 * 1024 * 1024


def _choose_tiles(B, S, H, itemsize, target_block_bytes, total_hidden_bytes):
    """Pick (tile_b, tile_s, tile_h) for the (tb, ts, th) hidden-state block.

    Shrinks batch first (more parallel grid blocks), then sequence (the
    VMEM-accumulated reduction axis), then hidden (keeps the output lane-dense
    as long as possible).  Non-full sequence/hidden tiles stay multiples of
    128, so every BlockSpec meets the (8, 128) constraint and 16-bit tiles are
    fully sublane-packed (ts % 16 == 0).
    """
    tb, ts, th = B, S, H

    def shrink_b():
        nonlocal tb
        if tb <= 1:
            return False
        tb = tb // 2 if tb % 2 == 0 else 1
        return True

    def shrink_s():
        nonlocal ts
        if ts % 256 == 0:
            ts //= 2
            return True
        if ts > 128 and ts % 128 == 0:
            ts = 128
            return True
        return False

    def shrink_h():
        nonlocal th
        if th % 256 == 0:
            th //= 2
            return True
        if th > 128 and th % 128 == 0:
            th = 128
            return True
        return False

    while tb * ts * th * itemsize > target_block_bytes:
        if shrink_b():
            continue
        if shrink_s():
            continue
        if shrink_h():
            continue
        break

    # v7x has 2 TensorCores: make sure non-trivial inputs produce at least two
    # "parallel" grid blocks so both cores (and both HBM pipes) are used.
    # Harmless on single-core v5e/v6e.
    if (B // tb) * (H // th) == 1 and total_hidden_bytes >= (2 << 20):
        if tb > 1:
            tb = tb // 2 if tb % 2 == 0 else 1
        elif th % 256 == 0:
            th //= 2
    return tb, ts, th


def gte_average_pool(last_hidden_state: jnp.ndarray,
                     attention_mask: jnp.ndarray,
                     *,
                     tile_b: int | None = None,
                     tile_s: int | None = None,
                     tile_h: int | None = None) -> jnp.ndarray:
    """Pallas implementation of `average_pool(last_hidden_state, attention_mask)`.

    last_hidden_state : (B, S, H) float32 or bfloat16
    attention_mask    : (B, S)    int32 (0/1)
    returns           : (B, H)    float32
    """
    B, S, H = last_hidden_state.shape
    assert attention_mask.shape == (B, S)

    h_dtype = last_hidden_state.dtype
    itemsize = jnp.dtype(h_dtype).itemsize
    vmem_cap = _vmem_capacity_bytes()

    # Hidden block ~ VMEM/8 (≈8 MiB on v7x, ≈16 MiB on v5e/v6e): big enough to
    # amortize the ~0.35 µs per-grid-step cost, small enough that the two
    # double-buffered hidden blocks + resident f32 output + mask blocks stay
    # well inside the scoped VMEM limit.  Tiny inputs collapse to one step.
    target_block_bytes = max(1 << 20, vmem_cap // 8)
    total_hidden_bytes = B * S * H * itemsize
    tb, ts, th = _choose_tiles(B, S, H, itemsize,
                               target_block_bytes, total_hidden_bytes)
    if tile_b is not None:
        tb = tile_b
    if tile_s is not None:
        ts = tile_s
    if tile_h is not None:
        th = tile_h

    assert B % tb == 0 and tb >= 1, (B, tb)
    assert S % ts == 0 and (ts == S or ts % 128 == 0), (S, ts)
    assert H % th == 0 and (th == H or th % 128 == 0), (H, th)

    # Tiny wrapper-side prep (O(B*S), not the big tensor):
    #  - lane-dense (B, 1, S) 0/1 mask in the hidden dtype: it becomes the MXU
    #    contraction operand (no 128-lane-padded (B,S,1) int32 layout, no
    #    per-tile int->float convert),
    #  - hoisted per-row reciprocal denominator.  All-padding rows give
    #    inf -> NaN in the product, matching torch's 0/0 semantics.
    mask_dtype = h_dtype if jnp.issubdtype(h_dtype, jnp.floating) else jnp.float32
    mask_ls = attention_mask.astype(mask_dtype).reshape(B, 1, S)
    denom = jnp.sum(attention_mask.astype(jnp.float32), axis=1)
    inv_denom = (1.0 / denom).reshape(B, 1, 1)

    grid = (B // tb, H // th, S // ts)   # reduction (sequence) axis last

    # ~48 MiB on v7x (64 MiB VMEM), 64 MiB on v5e/v6e (128 MiB VMEM).
    vmem_limit_bytes = int(min(vmem_cap * 3 // 4, 64 << 20))

    out3 = pl.pallas_call(
        _avg_pool_kernel,
        out_shape=jax.ShapeDtypeStruct((B, 1, H), jnp.float32),
        grid=grid,
        in_specs=[
            pl.BlockSpec((tb, 1, ts), lambda b, h, s: (b, 0, s)),
            pl.BlockSpec((tb, 1, 1), lambda b, h, s: (b, 0, 0)),
            pl.BlockSpec((tb, ts, th), lambda b, h, s: (b, s, h)),
        ],
        out_specs=pl.BlockSpec((tb, 1, th), lambda b, h, s: (b, 0, h)),
        compiler_params=pltpu.CompilerParams(
            dimension_semantics=("parallel", "parallel", "arbitrary"),
            vmem_limit_bytes=vmem_limit_bytes,
        ),
    )(mask_ls, inv_denom, last_hidden_state)

    return out3.reshape(B, H)


class DocumentGTEModuleJax:
    """JAX/Pallas analogue of DocumentGTEModule.forward (pooling stage).

    TODO(synk): the frozen pretrained GTE encoder itself is not re-implemented;
    callers provide its last_hidden_state (a synthetic stand-in in the demo).
    """

    def __init__(self):
        self.feature_layer = -2
        self._embedding_size = GTE_EMBEDDING_SIZE

    @property
    def embedding_size(self):
        return self._embedding_size

    def __call__(self, last_hidden_state, attention_mask, **tile_kwargs):
        return gte_average_pool(last_hidden_state, attention_mask, **tile_kwargs)


if __name__ == "__main__":
    # Small shapes consistent with the forward: B=2, S=8, H=GTE hidden (1024).
    B, S, H = 2, 8, GTE_EMBEDDING_SIZE

    key = jax.random.PRNGKey(0)
    k_hidden, k_hidden2 = jax.random.split(key)

    # Synthetic stand-in for the frozen encoder's last_hidden_state.
    hidden_f32 = jax.random.normal(k_hidden, (B, S, H), dtype=jnp.float32)
    lengths = jnp.array([S, S // 2], dtype=jnp.int32)          # e.g. [8, 4]
    attention_mask = (jnp.arange(S)[None, :] < lengths[:, None]).astype(jnp.int32)

    module = DocumentGTEModuleJax()

    def ref_pool(h, m):
        keep = (m != 0)[:, :, None]
        return (jnp.sum(jnp.where(keep, h.astype(jnp.float32), 0.0), axis=1)
                / jnp.sum(m.astype(jnp.float32), axis=1, keepdims=True))

    # 1) f32 input, tiny shape -> collapses to a single grid step.
    emb32 = jax.block_until_ready(module(hidden_f32, attention_mask))
    assert emb32.shape == (B, H) and emb32.dtype == jnp.float32
    assert jnp.allclose(emb32, ref_pool(hidden_f32, attention_mask),
                        atol=1e-4, rtol=1e-4)

    # 2) bf16 input (what the frozen encoder emits) with f32 accumulation.
    hidden_bf16 = hidden_f32.astype(jnp.bfloat16)
    emb_bf = jax.block_until_ready(module(hidden_bf16, attention_mask))
    assert emb_bf.dtype == jnp.float32
    assert jnp.allclose(emb_bf, ref_pool(hidden_bf16, attention_mask),
                        atol=1e-3, rtol=1e-3)

    # 3) multi-tile path: forces a (2, 2, 2) grid so batch/hidden parallel
    #    tiling and the 2-step sequence accumulation into the resident f32
    #    output block are exercised.
    S2 = 256
    hidden2 = jax.random.normal(k_hidden2, (B, S2, H), dtype=jnp.bfloat16)
    lengths2 = jnp.array([S2, 100], dtype=jnp.int32)
    mask2 = (jnp.arange(S2)[None, :] < lengths2[:, None]).astype(jnp.int32)
    emb_tiled = jax.block_until_ready(
        module(hidden2, mask2, tile_b=1, tile_s=128, tile_h=512))
    assert emb_tiled.shape == (B, H)
    assert jnp.allclose(emb_tiled, ref_pool(hidden2, mask2), atol=1e-3, rtol=1e-3)

    print("KERNEL_OK")
</pallas_src>

<mosaic_0001>
module attributes {stable_mosaic.version = 11 : i64} {
  func.func @_avg_pool_kernel(%arg0: i32, %arg1: i32, %arg2: i32, %arg3: memref<2x1x8xf32, #tpu.memory_space<vmem>>, %arg4: memref<2x1x1xf32, #tpu.memory_space<vmem>>, %arg5: memref<2x8x1024xf32, #tpu.memory_space<vmem>>, %arg6: memref<2x1x1024xf32, #tpu.memory_space<vmem>>) attributes {dimension_semantics = [#tpu.dimension_semantics<parallel>, #tpu.dimension_semantics<parallel>, #tpu.dimension_semantics<arbitrary>], iteration_bounds = array<i64: 1, 1, 1>, scalar_prefetch = 0 : i64, scratch_operands = 0 : i64, tpu.core_type = #tpu.core_type<tc>, window_params = [{transform_indices = @transform_0, window_bounds = array<i64: 2, 1, 8>}, {transform_indices = @transform_1, window_bounds = array<i64: 2, 1, 1>}, {transform_indices = @transform_2, window_bounds = array<i64: 2, 8, 1024>}, {transform_indices = @transform_3, window_bounds = array<i64: 2, 1, 1024>}]} {
    %c0_i32 = arith.constant 0 : i32
    %0 = arith.cmpi eq, %arg2, %c0_i32 : i32
    %1 = arith.extui %0 : i1 to i32
    %c0_i32_0 = arith.constant 0 : i32
    %2 = arith.cmpi ne, %1, %c0_i32_0 : i32
    scf.if %2 {
      %cst_14 = arith.constant 0.000000e+00 : f32
      %12 = vector.broadcast %cst_14 : f32 to vector<2x1x1024xf32>
      %c0_15 = arith.constant 0 : index
      %c0_16 = arith.constant 0 : index
      %c0_17 = arith.constant 0 : index
      %13 = vector.load %arg6[%c0_15, %c0_16, %c0_17] : memref<2x1x1024xf32, #tpu.memory_space<vmem>>, vector<2x1x1024xf32>
      tpu.vector_store %arg6[%c0_15, %c0_16, %c0_17], %12 {strides = array<i32>} : memref<2x1x1024xf32, #tpu.memory_space<vmem>>, vector<2x1x1024xf32>,
    } else {
    }
    %c0 = arith.constant 0 : index
    %c0_1 = arith.constant 0 : index
    %c0_2 = arith.constant 0 : index
    %3 = vector.load %arg6[%c0, %c0_1, %c0_2] : memref<2x1x1024xf32, #tpu.memory_space<vmem>>, vector<2x1x1024xf32>
    %c0_3 = arith.constant 0 : index
    %c0_4 = arith.constant 0 : index
    %c0_5 = arith.constant 0 : index
    %4 = vector.load %arg3[%c0_3, %c0_4, %c0_5] : memref<2x1x8xf32, #tpu.memory_space<vmem>>, vector<2x1x8xf32>
    %c0_6 = arith.constant 0 : index
    %c0_7 = arith.constant 0 : index
    %c0_8 = arith.constant 0 : index
    %5 = vector.load %arg5[%c0_6, %c0_7, %c0_8] : memref<2x8x1024xf32, #tpu.memory_space<vmem>>, vector<2x8x1024xf32>
    "tpu.trace_start"() <{level = 10 : i32, message = "bos,bsh->boh"}> : () -> ()
    %cst = arith.constant dense<0.000000e+00> : vector<2x1x1024xf32>
    %6 = tpu.matmul %4, %5, %cst {dimension_numbers = #tpu.dot_dimension_numbers<[2], [1], [1], [2], [0, 0, 0, 1, 1, 2], [0], [0]>, precision = #tpu.contract_precision<fp32>} : vector<2x1x8xf32>, vector<2x8x1024xf32>, vector<2x1x1024xf32> -> vector<2x1x1024xf32>
    "tpu.trace_stop"() : () -> ()
    %7 = arith.addf %3, %6 : vector<2x1x1024xf32>
    %c0_9 = arith.constant 0 : index
    %c0_10 = arith.constant 0 : index
    %c0_11 = arith.constant 0 : index
    %8 = vector.load %arg6[%c0_9, %c0_10, %c0_11] : memref<2x1x1024xf32, #tpu.memory_space<vmem>>, vector<2x1x1024xf32>
    tpu.vector_store %arg6[%c0_9, %c0_10, %c0_11], %7 {strides = array<i32>} : memref<2x1x1024xf32, #tpu.memory_space<vmem>>, vector<2x1x1024xf32>,
    %c0_i32_12 = arith.constant 0 : i32
    %9 = arith.cmpi eq, %arg2, %c0_i32_12 : i32
    %10 = arith.extui %9 : i1 to i32
    %c0_i32_13 = arith.constant 0 : i32
    %11 = arith.cmpi ne, %10, %c0_i32_13 : i32
    scf.if %11 {
      %c0_14 = arith.constant 0 : index
      %c0_15 = arith.constant 0 : index
      %c0_16 = arith.constant 0 : index
      %12 = vector.load %arg6[%c0_14, %c0_15, %c0_16] : memref<2x1x1024xf32, #tpu.memory_space<vmem>>, vector<2x1x1024xf32>
      %c0_17 = arith.constant 0 : index
      %c0_18 = arith.constant 0 : index
      %c0_19 = arith.constant 0 : index
      %13 = vector.load %arg4[%c0_17, %c0_18, %c0_19] : memref<2x1x1xf32, #tpu.memory_space<vmem>>, vector<2x1x1xf32>
      %14 = vector.broadcast %13 : vector<2x1x1xf32> to vector<2x1x1024xf32>
      %15 = arith.mulf %12, %14 : vector<2x1x1024xf32>
      %c0_20 = arith.constant 0 : index
      %c0_21 = arith.constant 0 : index
      %c0_22 = arith.constant 0 : index
      %16 = vector.load %arg6[%c0_20, %c0_21, %c0_22] : memref<2x1x1024xf32, #tpu.memory_space<vmem>>, vector<2x1x1024xf32>
      tpu.vector_store %arg6[%c0_20, %c0_21, %c0_22], %15 {strides = array<i32>} : memref<2x1x1024xf32, #tpu.memory_space<vmem>>, vector<2x1x1024xf32>,
    } else {
    }
    return
  }
  func.func @transform_0(%arg0: i32, %arg1: i32, %arg2: i32) -> (i32, i32, i32) {
    %c0_i32 = arith.constant 0 : i32
    %c0_i32_0 = arith.constant 0 : i32
    return %arg0, %c0_i32, %arg2 : i32, i32, i32
  }
  func.func @transform_1(%arg0: i32, %arg1: i32, %arg2: i32) -> (i32, i32, i32) {
    %c0_i32 = arith.constant 0 : i32
    %c0_i32_0 = arith.constant 0 : i32
    %c0_i32_1 = arith.constant 0 : i32
    return %arg0, %c0_i32, %c0_i32_0 : i32, i32, i32
  }
  func.func @transform_2(%arg0: i32, %arg1: i32, %arg2: i32) -> (i32, i32, i32) {
    %c0_i32 = arith.constant 0 : i32
    return %arg0, %arg2, %arg1 : i32, i32, i32
  }
  func.func @transform_3(%arg0: i32, %arg1: i32, %arg2: i32) -> (i32, i32, i32) {
    %c0_i32 = arith.constant 0 : i32
    %c0_i32_0 = arith.constant 0 : i32
    return %arg0, %c0_i32, %arg1 : i32, i32, i32
  }
}

</mosaic_0001>

<llo_original>
// kernel: tpu_custom_call.1
$region0: #{tpu_custom_call.1}
  #allocation0 [shape = 'u32[]', space=smem, size = 0x4, offset = 0x4, fixed_abs, tag = 'smem constant byte address 0x4 - core index']
  #allocation1 [shape = 'u32[144,128]{1,0:T(1,128)}', space=vmem, size = 0x12000, scoped, tag = 'internal scratch']
  %s0 = inlined_call_operand.vmem [shape: f32[2,1,8], index: 0, kind: input, shape index: {}]
  %s1 = inlined_call_operand.vmem [shape: f32[2,1,1], index: 1, kind: input, shape index: {}]
  %s2 = inlined_call_operand.hbm [shape: f32[2,8,1024], index: 2, kind: input, shape index: {}]
  %s3 = inlined_call_operand.hbm [shape: f32[2,1,1024], index: 3, kind: output, shape index: {}]
  %s4 = sld [smem:[#allocation0]]
  $region34: #{tpu_custom_call.1} parent=0
    _
  %s6 = ssub.s32 1, %s4
  %s7 = scalar_select 0, %s6, %s4
  $region1: #{tpu_custom_call.1} parent=0
    #allocation2 [shape = 'u8[65536]{0}', space=vmem, size = 0x10000, scoped, tag = 'input window, operand 2, single buffered']
    #allocation3 [shape = 's32[1]{0}', space=sflag, size = 0x4, scoped, tag = 'scoped memory for tpu_custom_call.1']
    #allocation4 [shape = 's32[1]{0}', space=sflag, size = 0x4, scoped, tag = 'scoped memory for tpu_custom_call.1']
    #allocation5 [shape = 'u8[8192]{0}', space=vmem, size = 0x2000, scoped, tag = 'output window, operand 0, single buffered']
    %8 = vsyncpa [#allocation3], 0
    %9 = vsyncpa [#allocation4], 0
    // Predicated region
    $region2: #{tpu_custom_call.1} parent=1 // pred_check
      _
    $region3: #{tpu_custom_call.1} parent=1 // pred_check_branch
      %11 = sbr.rel (0) target = $region5
    $region4: #{tpu_custom_call.1} parent=1 // pred_region
      _
    $region5: #{tpu_custom_call.1} parent=1 // pred_fallthru
      _
    // Predicated region
    $region6: #{tpu_custom_call.1} parent=1 // pred_check
      _
    $region7: #{tpu_custom_call.1} parent=1 // pred_check_branch
      %13 = sbr.rel (0) target = $region9
    $region8: #{tpu_custom_call.1} parent=1 // pred_region
      _
    $region9: #{tpu_custom_call.1} parent=1 // pred_fallthru
      _
    // Predicated region
    $region10: #{tpu_custom_call.1} parent=1 // pred_check
      _
    $region11: #{tpu_custom_call.1} parent=1 // pred_check_branch
      %15 = sbr.rel (0) target = $region13
    $region12: #{tpu_custom_call.1} parent=1 // pred_region
      %s17 = ssub.s32 2048, 2048
      %18 = vsyncadd [#allocation3], %s17
      %s19 = sshll.u32 [#allocation2], 4
      %s20 = int_to_ptr.vmem [resolvable:$true] %s19
      %25 = dma.hbm_to_vmem [thread:$0]  %s2, 2048, %s20, [#allocation3], 1024, 1024, 64
    $region13: #{tpu_custom_call.1} parent=1 // pred_fallthru
      _
    // Predicated region
    $region14: #{tpu_custom_call.1} parent=1 // pred_check
      _
    $region15: #{tpu_custom_call.1} parent=1 // pred_check_branch
      %27 = sbr.rel (0) target = $region17
    $region16: #{tpu_custom_call.1} parent=1 // pred_region
      %28 = dma.done [#allocation3], 2048
    $region17: #{tpu_custom_call.1} parent=1 // pred_fallthru
      _
    %p29 = scmp.eq.s32.totalorder 0, 0
    // Predicated region
    $region18: #{tpu_custom_call.1} parent=1 // pred_check
      %p30 = pneg %p29
    $region19: #{tpu_custom_call.1} parent=1 // pred_check_branch
      %32 = sbr.rel (%p30) target = $region21
    $region20: #{tpu_custom_call.1} parent=1 // pred_region
      %33 = vst [vmem:[#allocation5] sm:$0xff] 0.0
      %34 = vst [vmem:[#allocation5 + $0x8] sm:$0xff] 0.0
    $region21: #{tpu_custom_call.1} parent=1 // pred_fallthru
      _
    %v35 = vld [vmem:[#allocation5] sm:$0xff]
    %v36 = vld [vmem:[#allocation5 + $0x8] sm:$0xff]
    %v37 = vld [vmem:[%s0] sm:$0x1]
    %v38 = vld [vmem:[%s0 + $0x1] sm:$0x1]
    %v39 = vld [vmem:[#allocation2] sm:$0xff]
    %v40 = vld [vmem:[#allocation2 + $0x8] sm:$0xff]
    %v41 = vld [vmem:[#allocation2 + $0x10] sm:$0xff]
    %v42 = vld [vmem:[#allocation2 + $0x18] sm:$0xff]
    %v43 = vld [vmem:[#allocation2 + $0x20] sm:$0xff]
    %v44 = vld [vmem:[#allocation2 + $0x28] sm:$0xff]
    %v45 = vld [vmem:[#allocation2 + $0x30] sm:$0xff]
    %v46 = vld [vmem:[#allocation2 + $0x38] sm:$0xff]
    %v47 = vld [vmem:[#allocation2 + $0x40] sm:$0xff]
    %v48 = vld [vmem:[#allocation2 + $0x48] sm:$0xff]
    %v49 = vld [vmem:[#allocation2 + $0x50] sm:$0xff]
    %v50 = vld [vmem:[#allocation2 + $0x58] sm:$0xff]
    %v51 = vld [vmem:[#allocation2 + $0x60] sm:$0xff]
    %v52 = vld [vmem:[#allocation2 + $0x68] sm:$0xff]
    %v53 = vld [vmem:[#allocation2 + $0x70] sm:$0xff]
    %v54 = vld [vmem:[#allocation2 + $0x78] sm:$0xff]
    %vm55 = vcmask 64512
    %v57 = vsel %vm55, %v37, 0
    %59 = vmatprep.subr.mxu0 0.0
    %60 = vmatpush1.msra.mxu0 0.0
    %61 = vmatprep.subr.mxu0 0.0
    %62 = vmatpush1.msra.mxu0 0.0
    %63 = vmatprep.subr.mxu0 0.0
    %64 = vmatpush1.msra.mxu0 0.0
    %65 = vmatprep.subr.mxu0 0.0
    %66 = vmatpush1.msra.mxu0 0.0
    %67 = vmatprep.subr.mxu0 0.0
    %68 = vmatpush1.msra.mxu0 0.0
    %69 = vmatprep.subr.mxu0 0.0
    %70 = vmatpush1.msra.mxu0 0.0
    %71 = vmatprep.subr.mxu0 0.0
    %72 = vmatpush1.msra.mxu0 0.0
    %73 = vmatprep.subr.mxu0 0.0
    %74 = vmatpush1.msra.mxu0 0.0
    %75 = vmatprep.subr.mxu0 0.0
    %76 = vmatpush1.msra.mxu0 0.0
    %77 = vmatprep.subr.mxu0 0.0
    %78 = vmatpush1.msra.mxu0 0.0
    %79 = vmatprep.subr.mxu0 0.0
    %80 = vmatpush1.msra.mxu0 0.0
    %81 = vmatprep.subr.mxu0 0.0
    %82 = vmatpush1.msra.mxu0 0.0
    %83 = vmatprep.subr.mxu0 0.0
    %84 = vmatpush1.msra.mxu0 0.0
    %85 = vmatprep.subr.mxu0 0.0
    %86 = vmatpush1.msra.mxu0 0.0
    %87 = vmatprep.subr.mxu0 0.0
    %88 = vmatpush1.msra.mxu0 0.0
    %v89 = vand.u32 %v40, 4294901760
    %90 = vmatprep.subr.mxu0 %v89
    %v91 = vand.u32 %v39, 4294901760
    %92 = vmatpush1.msra.mxu0 %v91
    %93 = vmatprep.subr.mxu0 0.0
    %94 = vmatpush2.msra.mxu0 0.0
    %95 = vmatprep.subr.mxu0 0.0
    %96 = vmatpush2.msra.mxu0 0.0
    %97 = vmatprep.subr.mxu0 0.0
    %98 = vmatpush2.msra.mxu0 0.0
    %99 = vmatprep.subr.mxu0 0.0
    %100 = vmatpush2.msra.mxu0 0.0
    %101 = vmatprep.subr.mxu0 0.0
    %102 = vmatpush2.msra.mxu0 0.0
    %103 = vmatprep.subr.mxu0 0.0
    %104 = vmatpush2.msra.mxu0 0.0
    %105 = vmatprep.subr.mxu0 0.0
    %106 = vmatpush2.msra.mxu0 0.0
    %107 = vmatprep.subr.mxu0 0.0
    %108 = vmatpush2.msra.mxu0 0.0
    %109 = vmatprep.subr.mxu0 0.0
    %110 = vmatpush2.msra.mxu0 0.0
    %111 = vmatprep.subr.mxu0 0.0
    %112 = vmatpush2.msra.mxu0 0.0
    %113 = vmatprep.subr.mxu0 0.0
    %114 = vmatpush2.msra.mxu0 0.0
    %115 = vmatprep.subr.mxu0 0.0
    %116 = vmatpush2.msra.mxu0 0.0
    %117 = vmatprep.subr.mxu0 0.0
    %118 = vmatpush2.msra.mxu0 0.0
    %119 = vmatprep.subr.mxu0 0.0
    %120 = vmatpush2.msra.mxu0 0.0
    %121 = vmatprep.subr.mxu0 0.0
    %122 = vmatpush2.msra.mxu0 0.0
    %123 = vmatprep.subr.mxu0 0.0
    %124 = vmatpush2.msra.mxu0 0.0
    %125 = vmatprep.mubr.f32.mxu0 0.0
    %v126 = vand.u32 %v57, 4294901760
    %v127 = vsub.f32 %v57, %v126
    %v128 = vand.u32 %v127, 4294901760
    %v129 = vsub.f32 %v127, %v128
    %v130 = vand.u32 %v129, 4294901760
    %131 = vmatmul.mubr.f32.gmra.mxu0 %v130
    %v132 = vpop.f32.mrf.mxu0
    %v133 = vadd.f32 0.0, %v132
    %v134 = vpop.f32.mrf.mxu0
    %v135 = vadd.f32 0.0, %v134
    %136 = vdwg.mxu0
    %137 = vmatprep.subr.mxu0 0.0
    %138 = vmatpush1.msra.mxu0 0.0
    %139 = vmatprep.subr.mxu0 0.0
    %140 = vmatpush1.msra.mxu0 0.0
    %141 = vmatprep.subr.mxu0 0.0
    %142 = vmatpush1.msra.mxu0 0.0
    %143 = vmatprep.subr.mxu0 0.0
    %144 = vmatpush1.msra.mxu0 0.0
    %145 = vmatprep.subr.mxu0 0.0
    %146 = vmatpush1.msra.mxu0 0.0
    %147 = vmatprep.subr.mxu0 0.0
    %148 = vmatpush1.msra.mxu0 0.0
    %149 = vmatprep.subr.mxu0 0.0
    %150 = vmatpush1.msra.mxu0 0.0
    %151 = vmatprep.subr.mxu0 0.0
    %152 = vmatpush1.msra.mxu0 0.0
    %153 = vmatprep.subr.mxu0 0.0
    %154 = vmatpush1.msra.mxu0 0.0
    %155 = vmatprep.subr.mxu0 0.0
    %156 = vmatpush1.msra.mxu0 0.0
    %157 = vmatprep.subr.mxu0 0.0
    %158 = vmatpush1.msra.mxu0 0.0
    %159 = vmatprep.subr.mxu0 0.0
    %160 = vmatpush1.msra.mxu0 0.0
    %161 = vmatprep.subr.mxu0 0.0
    %162 = vmatpush1.msra.mxu0 0.0
    %163 = vmatprep.subr.mxu0 0.0
    %164 = vmatpush1.msra.mxu0 0.0
    %165 = vmatprep.subr.mxu0 0.0
    %166 = vmatpush1.msra.mxu0 0.0
    %v167 = vand.u32 %v40, 4294901760
    %v168 = vsub.f32 %v40, %v167
    %v169 = vand.u32 %v168, 4294901760
    %v170 = vsub.f32 %v168, %v169
    %v171 = vand.u32 %v170, 4294901760
    %172 = vmatprep.subr.mxu0 %v171
    %v173 = vand.u32 %v39, 4294901760
    %v174 = vsub.f32 %v39, %v173
    %v175 = vand.u32 %v174, 4294901760
    %v176 = vsub.f32 %v174, %v175
    %v177 = vand.u32 %v176, 4294901760
    %178 = vmatpush1.msra.mxu0 %v177
    %179 = vmatprep.subr.mxu0 0.0
    %180 = vmatpush2.msra.mxu0 0.0
    %181 = vmatprep.subr.mxu0 0.0
    %182 = vmatpush2.msra.mxu0 0.0
    %183 = vmatprep.subr.mxu0 0.0
    %184 = vmatpush2.msra.mxu0 0.0
    %185 = vmatprep.subr.mxu0 0.0
    %186 = vmatpush2.msra.mxu0 0.0
    %187 = vmatprep.subr.mxu0 0.0
    %188 = vmatpush2.msra.mxu0 0.0
    %189 = vmatprep.subr.mxu0 0.0
    %190 = vmatpush2.msra.mxu0 0.0
    %191 = vmatprep.subr.mxu0 0.0
    %192 = vmatpush2.msra.mxu0 0.0
    %193 = vmatprep.subr.mxu0 0.0
    %194 = vmatpush2.msra.mxu0 0.0
    %195 = vmatprep.subr.mxu0 0.0
    %196 = vmatpush2.msra.mxu0 0.0
    %197 = vmatprep.subr.mxu0 0.0
    %198 = vmatpush2.msra.mxu0 0.0
    %199 = vmatprep.subr.mxu0 0.0
    %200 = vmatpush2.msra.mxu0 0.0
    %201 = vmatprep.subr.mxu0 0.0
    %202 = vmatpush2.msra.mxu0 0.0
    %203 = vmatprep.subr.mxu0 0.0
    %204 = vmatpush2.msra.mxu0 0.0
    %205 = vmatprep.subr.mxu0 0.0
    %206 = vmatpush2.msra.mxu0 0.0
    %207 = vmatprep.subr.mxu0 0.0
    %208 = vmatpush2.msra.mxu0 0.0
    %209 = vmatprep.subr.mxu0 0.0
    %210 = vmatpush2.msra.mxu0 0.0
    %211 = vmatprep.mubr.f32.mxu0 0.0
    %v212 = vand.u32 %v57, 4294901760
    %213 = vmatmul.mubr.f32.gmra.mxu0 %v212
    %v214 = vpop.f32.mrf.mxu0
    %v215 = vadd.f32 %v133, %v214
    %v216 = vpop.f32.mrf.mxu0
    %v217 = vadd.f32 %v135, %v216
    %218 = vdwg.mxu0
    %219 = vmatprep.subr.mxu0 0.0
    %220 = vmatpush1.msra.mxu0 0.0
    %221 = vmatprep.subr.mxu0 0.0
    %222 = vmatpush1.msra.mxu0 0.0
    %223 = vmatprep.subr.mxu0 0.0
    %224 = vmatpush1.msra.mxu0 0.0
    %225 = vmatprep.subr.mxu0 0.0
    %226 = vmatpush1.msra.mxu0 0.0
    %227 = vmatprep.subr.mxu0 0.0
    %228 = vmatpush1.msra.mxu0 0.0
    %229 = vmatprep.subr.mxu0 0.0
    %230 = vmatpush1.msra.mxu0 0.0
    %231 = vmatprep.subr.mxu0 0.0
    %232 = vmatpush1.msra.mxu0 0.0
    %233 = vmatprep.subr.mxu0 0.0
    %234 = vmatpush1.msra.mxu0 0.0
    %235 = vmatprep.subr.mxu0 0.0
    %236 = vmatpush1.msra.mxu0 0.0
    %237 = vmatprep.subr.mxu0 0.0
    %238 = vmatpush1.msra.mxu0 0.0
    %239 = vmatprep.subr.mxu0 0.0
    %240 = vmatpush1.msra.mxu0 0.0
    %241 = vmatprep.subr.mxu0 0.0
    %242 = vmatpush1.msra.mxu0 0.0
    %243 = vmatprep.subr.mxu0 0.0
    %244 = vmatpush1.msra.mxu0 0.0
    %245 = vmatprep.subr.mxu0 0.0
    %246 = vmatpush1.msra.mxu0 0.0
    %247 = vmatprep.subr.mxu0 0.0
    %248 = vmatpush1.msra.mxu0 0.0
    %v249 = vand.u32 %v40, 4294901760
    %v250 = vsub.f32 %v40, %v249
    %251 = vmatprep.subr.mxu0 %v250
    %v252 = vand.u32 %v39, 4294901760
    %v253 = vsub.f32 %v39, %v252
    %254 = vmatpush1.msra.mxu0 %v253
    %255 = vmatprep.subr.mxu0 0.0
    %256 = vmatpush2.msra.mxu0 0.0
    %257 = vmatprep.subr.mxu0 0.0
    %258 = vmatpush2.msra.mxu0 0.0
    %259 = vmatprep.subr.mxu0 0.0
    %260 = vmatpush2.msra.mxu0 0.0
    %261 = vmatprep.subr.mxu0 0.0
    %262 = vmatpush2.msra.mxu0 0.0
    %263 = vmatprep.subr.mxu0 0.0
    %264 = vmatpush2.msra.mxu0 0.0
    %265 = vmatprep.subr.mxu0 0.0
    %266 = vmatpush2.msra.mxu0 0.0
    %267 = vmatprep.subr.mxu0 0.0
    %268 = vmatpush2.msra.mxu0 0.0
    %269 = vmatprep.subr.mxu0 0.0
    %270 = vmatpush2.msra.mxu0 0.0
    %271 = vmatprep.subr.mxu0 0.0
    %272 = vmatpush2.msra.mxu0 0.0
    %273 = vmatprep.subr.mxu0 0.0
    %274 = vmatpush2.msra.mxu0 0.0
    %275 = vmatprep.subr.mxu0 0.0
    %276 = vmatpush2.msra.mxu0 0.0
    %277 = vmatprep.subr.mxu0 0.0
    %278 = vmatpush2.msra.mxu0 0.0
    %279 = vmatprep.subr.mxu0 0.0
    %280 = vmatpush2.msra.mxu0 0.0
    %281 = vmatprep.subr.mxu0 0.0
    %282 = vmatpush2.msra.mxu0 0.0
    %283 = vmatprep.subr.mxu0 0.0
    %284 = vmatpush2.msra.mxu0 0.0
    %285 = vmatprep.subr.mxu0 0.0
    %286 = vmatpush2.msra.mxu0 0.0
    %287 = vmatprep.mubr.f32.mxu0 0.0
    %v288 = vand.u32 %v57, 4294901760
    %v289 = vsub.f32 %v57, %v288
    %290 = vmatmul.mubr.f32.gmra.mxu0 %v289
    %v291 = vpop.f32.mrf.mxu0
    %v292 = vadd.f32 %v215, %v291
    %v293 = vpop.f32.mrf.mxu0
    %v294 = vadd.f32 %v217, %v293
    %295 = vdwg.mxu0
    %296 = vmatprep.subr.mxu0 0.0
    %297 = vmatpush1.msra.mxu0 0.0
    %298 = vmatprep.subr.mxu0 0.0
    %299 = vmatpush1.msra.mxu0 0.0
    %300 = vmatprep.subr.mxu0 0.0
    %301 = vmatpush1.msra.mxu0 0.0
    %302 = vmatprep.subr.mxu0 0.0
    %303 = vmatpush1.msra.mxu0 0.0
    %304 = vmatprep.subr.mxu0 0.0
    %305 = vmatpush1.msra.mxu0 0.0
    %306 = vmatprep.subr.mxu0 0.0
    %307 = vmatpush1.msra.mxu0 0.0
    %308 = vmatprep.subr.mxu0 0.0
    %309 = vmatpush1.msra.mxu0 0.0
    %310 = vmatprep.subr.mxu0 0.0
    %311 = vmatpush1.msra.mxu0 0.0
    %312 = vmatprep.subr.mxu0 0.0
    %313 = vmatpush1.msra.mxu0 0.0
    %314 = vmatprep.subr.mxu0 0.0
    %315 = vmatpush1.msra.mxu0 0.0
    %316 = vmatprep.subr.mxu0 0.0
    %317 = vmatpush1.msra.mxu0 0.0
    %318 = vmatprep.subr.mxu0 0.0
    %319 = vmatpush1.msra.mxu0 0.0
    %320 = vmatprep.subr.mxu0 0.0
    %321 = vmatpush1.msra.mxu0 0.0
    %322 = vmatprep.subr.mxu0 0.0
    %323 = vmatpush1.msra.mxu0 0.0
    %324 = vmatprep.subr.mxu0 0.0
    %325 = vmatpush1.msra.mxu0 0.0
    %v326 = vand.u32 %v40, 4294901760
    %327 = vmatprep.subr.mxu0 %v326
    %v328 = vand.u32 %v39, 4294901760
    %329 = vmatpush1.msra.mxu0 %v328
    %330 = vmatprep.subr.mxu0 0.0
    %331 = vmatpush2.msra.mxu0 0.0
    %332 = vmatprep.subr.mxu0 0.0
    %333 = vmatpush2.msra.mxu0 0.0
    %334 = vmatprep.subr.mxu0 0.0
    %335 = vmatpush2.msra.mxu0 0.0
    %336 = vmatprep.subr.mxu0 0.0
    %337 = vmatpush2.msra.mxu0 0.0
    %338 = vmatprep.subr.mxu0 0.0
    %339 = vmatpush2.msra.mxu0 0.0
    %340 = vmatprep.subr.mxu0 0.0
    %341 = vmatpush2.msra.mxu0 0.0
    %342 = vmatprep.subr.mxu0 0.0
    %343 = vmatpush2.msra.mxu0 0.0
    %344 = vmatprep.subr.mxu0 0.0
    %345 = vmatpush2.msra.mxu0 0.0
    %346 = vmatprep.subr.mxu0 0.0
    %347 = vmatpush2.msra.mxu0 0.0
    %348 = vmatprep.subr.mxu0 0.0
    %349 = vmatpush2.msra.mxu0 0.0
    %350 = vmatprep.subr.mxu0 0.0
    %351 = vmatpush2.msra.mxu0 0.0
    %352 = vmatprep.subr.mxu0 0.0
    %353 = vmatpush2.msra.mxu0 0.0
    %354 = vmatprep.subr.mxu0 0.0
    %355 = vmatpush2.msra.mxu0 0.0
    %356 = vmatprep.subr.mxu0 0.0
    %357 = vmatpush2.msra.mxu0 0.0
    %358 = vmatprep.subr.mxu0 0.0
    %359 = vmatpush2.msra.mxu0 0.0
    %360 = vmatprep.subr.mxu0 0.0
    %361 = vmatpush2.msra.mxu0 0.0
    %362 = vmatprep.mubr.f32.mxu0 0.0
    %v363 = vand.u32 %v57, 4294901760
    %v364 = vsub.f32 %v57, %v363
    %v365 = vand.u32 %v364, 4294901760
    %366 = vmatmul.mubr.f32.gmra.mxu0 %v365
    %v367 = vpop.f32.mrf.mxu0
    %v368 = vadd.f32 %v292, %v367
    %v369 = vpop.f32.mrf.mxu0
    %v370 = vadd.f32 %v294, %v369
    %371 = vdwg.mxu0
    %372 = vmatprep.subr.mxu0 0.0
    %373 = vmatpush1.msra.mxu0 0.0
    %374 = vmatprep.subr.mxu0 0.0
    %375 = vmatpush1.msra.mxu0 0.0
    %376 = vmatprep.subr.mxu0 0.0
    %377 = vmatpush1.msra.mxu0 0.0
    %378 = vmatprep.subr.mxu0 0.0
    %379 = vmatpush1.msra.mxu0 0.0
    %380 = vmatprep.subr.mxu0 0.0
    %381 = vmatpush1.msra.mxu0 0.0
    %382 = vmatprep.subr.mxu0 0.0
    %383 = vmatpush1.msra.mxu0 0.0
    %384 = vmatprep.subr.mxu0 0.0
    %385 = vmatpush1.msra.mxu0 0.0
    %386 = vmatprep.subr.mxu0 0.0
    %387 = vmatpush1.msra.mxu0 0.0
    %388 = vmatprep.subr.mxu0 0.0
    %389 = vmatpush1.msra.mxu0 0.0
    %390 = vmatprep.subr.mxu0 0.0
    %391 = vmatpush1.msra.mxu0 0.0
    %392 = vmatprep.subr.mxu0 0.0
    %393 = vmatpush1.msra.mxu0 0.0
    %394 = vmatprep.subr.mxu0 0.0
    %395 = vmatpush1.msra.mxu0 0.0
    %396 = vmatprep.subr.mxu0 0.0
    %397 = vmatpush1.msra.mxu0 0.0
    %398 = vmatprep.subr.mxu0 0.0
    %399 = vmatpush1.msra.mxu0 0.0
    %400 = vmatprep.subr.mxu0 0.0
    %401 = vmatpush1.msra.mxu0 0.0
    %v402 = vand.u32 %v40, 4294901760
    %v403 = vsub.f32 %v40, %v402
    %v404 = vand.u32 %v403, 4294901760
    %405 = vmatprep.subr.mxu0 %v404
    %v406 = vand.u32 %v39, 4294901760
    %v407 = vsub.f32 %v39, %v406
    %v408 = vand.u32 %v407, 4294901760
    %409 = vmatpush1.msra.mxu0 %v408
    %410 = vmatprep.subr.mxu0 0.0
    %411 = vmatpush2.msra.mxu0 0.0
    %412 = vmatprep.subr.mxu0 0.0
    %413 = vmatpush2.msra.mxu0 0.0
    %414 = vmatprep.subr.mxu0 0.0
    %415 = vmatpush2.msra.mxu0 0.0
    %416 = vmatprep.subr.mxu0 0.0
    %417 = vmatpush2.msra.mxu0 0.0
    %418 = vmatprep.subr.mxu0 0.0
    %419 = vmatpush2.msra.mxu0 0.0
    %420 = vmatprep.subr.mxu0 0.0
    %421 = vmatpush2.msra.mxu0 0.0
    %422 = vmatprep.subr.mxu0 0.0
    %423 = vmatpush2.msra.mxu0 0.0
    %424 = vmatprep.subr.mxu0 0.0
    %425 = vmatpush2.msra.mxu0 0.0
    %426 = vmatprep.subr.mxu0 0.0
    %427 = vmatpush2.msra.mxu0 0.0
    %428 = vmatprep.subr.mxu0 0.0
    %429 = vmatpush2.msra.mxu0 0.0
    %430 = vmatprep.subr.mxu0 0.0
    %431 = vmatpush2.msra.mxu0 0.0
    %432 = vmatprep.subr.mxu0 0.0
    %433 = vmatpush2.msra.mxu0 0.0
    %434 = vmatprep.subr.mxu0 0.0
    %435 = vmatpush2.msra.mxu0 0.0
    %436 = vmatprep.subr.mxu0 0.0
    %437 = vmatpush2.msra.mxu0 0.0
    %438 = vmatprep.subr.mxu0 0.0
    %439 = vmatpush2.msra.mxu0 0.0
    %440 = vmatprep.subr.mxu0 0.0
    %441 = vmatpush2.msra.mxu0 0.0
    %442 = vmatprep.mubr.f32.mxu0 0.0
    %v443 = vand.u32 %v57, 4294901760
    %444 = vmatmul.mubr.f32.gmra.mxu0 %v443
    %v445 = vpop.f32.mrf.mxu0
    %v446 = vadd.f32 %v368, %v445
    %v447 = vpop.f32.mrf.mxu0
    %v448 = vadd.f32 %v370, %v447
    %449 = vdwg.mxu0
    %450 = vmatprep.subr.mxu0 0.0
    %451 = vmatpush1.msra.mxu0 0.0
    %452 = vmatprep.subr.mxu0 0.0
    %453 = vmatpush1.msra.mxu0 0.0
    %454 = vmatprep.subr.mxu0 0.0
    %455 = vmatpush1.msra.mxu0 0.0
    %456 = vmatprep.subr.mxu0 0.0
    %457 = vmatpush1.msra.mxu0 0.0
    %458 = vmatprep.subr.mxu0 0.0
    %459 = vmatpush1.msra.mxu0 0.0
    %460 = vmatprep.subr.mxu0 0.0
    %461 = vmatpush1.msra.mxu0 0.0
    %462 = vmatprep.subr.mxu0 0.0
    %463 = vmatpush1.msra.mxu0 0.0
    %464 = vmatprep.subr.mxu0 0.0
    %465 = vmatpush1.msra.mxu0 0.0
    %466 = vmatprep.subr.mxu0 0.0
    %467 = vmatpush1.msra.mxu0 0.0
    %468 = vmatprep.subr.mxu0 0.0
    %469 = vmatpush1.msra.mxu0 0.0
    %470 = vmatprep.subr.mxu0 0.0
    %471 = vmatpush1.msra.mxu0 0.0
    %472 = vmatprep.subr.mxu0 0.0
    %473 = vmatpush1.msra.mxu0 0.0
    %474 = vmatprep.subr.mxu0 0.0
    %475 = vmatpush1.msra.mxu0 0.0
    %476 = vmatprep.subr.mxu0 0.0
    %477 = vmatpush1.msra.mxu0 0.0
    %478 = vmatprep.subr.mxu0 0.0
    %479 = vmatpush1.msra.mxu0 0.0
    %v480 = vand.u32 %v40, 4294901760
    %481 = vmatprep.subr.mxu0 %v480
    %v482 = vand.u32 %v39, 4294901760
    %483 = vmatpush1.msra.mxu0 %v482
    %484 = vmatprep.subr.mxu0 0.0
    %485 = vmatpush2.msra.mxu0 0.0
    %486 = vmatprep.subr.mxu0 0.0
    %487 = vmatpush2.msra.mxu0 0.0
    %488 = vmatprep.subr.mxu0 0.0
    %489 = vmatpush2.msra.mxu0 0.0
    %490 = vmatprep.subr.mxu0 0.0
    %491 = vmatpush2.msra.mxu0 0.0
    %492 = vmatprep.subr.mxu0 0.0
    %493 = vmatpush2.msra.mxu0 0.0
    %494 = vmatprep.subr.mxu0 0.0
    %495 = vmatpush2.msra.mxu0 0.0
    %496 = vmatprep.subr.mxu0 0.0
    %497 = vmatpush2.msra.mxu0 0.0
    %498 = vmatprep.subr.mxu0 0.0
    %499 = vmatpush2.msra.mxu0 0.0
    %500 = vmatprep.subr.mxu0 0.0
    %501 = vmatpush2.msra.mxu0 0.0
    %502 = vmatprep.subr.mxu0 0.0
    %503 = vmatpush2.msra.mxu0 0.0
    %504 = vmatprep.subr.mxu0 0.0
    %505 = vmatpush2.msra.mxu0 0.0
    %506 = vmatprep.subr.mxu0 0.0
    %507 = vmatpush2.msra.mxu0 0.0
    %508 = vmatprep.subr.mxu0 0.0
    %509 = vmatpush2.msra.mxu0 0.0
    %510 = vmatprep.subr.mxu0 0.0
    %511 = vmatpush2.msra.mxu0 0.0
    %512 = vmatprep.subr.mxu0 0.0
    %513 = vmatpush2.msra.mxu0 0.0
    %514 = vmatprep.subr.mxu0 0.0
    %515 = vmatpush2.msra.mxu0 0.0
    %516 = vmatprep.mubr.f32.mxu0 0.0
    %v517 = vand.u32 %v57, 4294901760
    %518 = vmatmul.mubr.f32.gmra.mxu0 %v517
    %v519 = vpop.f32.mrf.mxu0
    %v520 = vadd.f32 %v446, %v519
    %v521 = vpop.f32.mrf.mxu0
    %v522 = vadd.f32 %v448, %v521
    %523 = vdwg.mxu0
    %524 = vmatprep.subr.mxu0 0.0
    %525 = vmatpush1.msra.mxu0 0.0
    %526 = vmatprep.subr.mxu0 0.0
    %527 = vmatpush1.msra.mxu0 0.0
    %528 = vmatprep.subr.mxu0 0.0
    %529 = vmatpush1.msra.mxu0 0.0
    %530 = vmatprep.subr.mxu0 0.0
    %531 = vmatpush1.msra.mxu0 0.0
    %532 = vmatprep.subr.mxu0 0.0
    %533 = vmatpush1.msra.mxu0 0.0
    %534 = vmatprep.subr.mxu0 0.0
    %535 = vmatpush1.msra.mxu0 0.0
    %536 = vmatprep.subr.mxu0 0.0
    %537 = vmatpush1.msra.mxu0 0.0
    %538 = vmatprep.subr.mxu0 0.0
    %539 = vmatpush1.msra.mxu0 0.0
    %540 = vmatprep.subr.mxu0 0.0
    %541 = vmatpush1.msra.mxu0 0.0
    %542 = vmatprep.subr.mxu0 0.0
    %543 = vmatpush1.msra.mxu0 0.0
    %544 = vmatprep.subr.mxu0 0.0
    %545 = vmatpush1.msra.mxu0 0.0
    %546 = vmatprep.subr.mxu0 0.0
    %547 = vmatpush1.msra.mxu0 0.0
    %548 = vmatprep.subr.mxu0 0.0
    %549 = vmatpush1.msra.mxu0 0.0
    %550 = vmatprep.subr.mxu0 0.0
    %551 = vmatpush1.msra.mxu0 0.0
    %552 = vmatprep.subr.mxu0 0.0
    %553 = vmatpush1.msra.mxu0 0.0
    %v554 = vand.u32 %v42, 4294901760
    %555 = vmatprep.subr.mxu0 %v554
    %v556 = vand.u32 %v41, 4294901760
    %557 = vmatpush1.msra.mxu0 %v556
    %558 = vmatprep.subr.mxu0 0.0
    %559 = vmatpush2.msra.mxu0 0.0
    %560 = vmatprep.subr.mxu0 0.0
    %561 = vmatpush2.msra.mxu0 0.0
    %562 = vmatprep.subr.mxu0 0.0
    %563 = vmatpush2.msra.mxu0 0.0
    %564 = vmatprep.subr.mxu0 0.0
    %565 = vmatpush2.msra.mxu0 0.0
    %566 = vmatprep.subr.mxu0 0.0
    %567 = vmatpush2.msra.mxu0 0.0
    %568 = vmatprep.subr.mxu0 0.0
    %569 = vmatpush2.msra.mxu0 0.0
    %570 = vmatprep.subr.mxu0 0.0
    %571 = vmatpush2.msra.mxu0 0.0
    %572 = vmatprep.subr.mxu0 0.0
    %573 = vmatpush2.msra.mxu0 0.0
    %574 = vmatprep.subr.mxu0 0.0
    %575 = vmatpush2.msra.mxu0 0.0
    %576 = vmatprep.subr.mxu0 0.0
    %577 = vmatpush2.msra.mxu0 0.0
    %578 = vmatprep.subr.mxu0 0.0
    %579 = vmatpush2.msra.mxu0 0.0
    %580 = vmatprep.subr.mxu0 0.0
    %581 = vmatpush2.msra.mxu0 0.0
    %582 = vmatprep.subr.mxu0 0.0
    %583 = vmatpush2.msra.mxu0 0.0
    %584 = vmatprep.subr.mxu0 0.0
    %585 = vmatpush2.msra.mxu0 0.0
    %586 = vmatprep.subr.mxu0 0.0
    %587 = vmatpush2.msra.mxu0 0.0
    %588 = vmatprep.subr.mxu0 0.0
    %589 = vmatpush2.msra.mxu0 0.0
    %590 = vmatprep.mubr.f32.mxu0 0.0
    %v591 = vand.u32 %v57, 4294901760
    %v592 = vsub.f32 %v57, %v591
    %v593 = vand.u32 %v592, 4294901760
    %v594 = vsub.f32 %v592, %v593
    %v595 = vand.u32 %v594, 4294901760
    %596 = vmatmul.mubr.f32.gmra.mxu0 %v595
    %v597 = vpop.f32.mrf.mxu0
    %v598 = vadd.f32 0.0, %v597
    %v599 = vpop.f32.mrf.mxu0
    %v600 = vadd.f32 0.0, %v599
    %601 = vdwg.mxu0
    %602 = vmatprep.subr.mxu0 0.0
    %603 = vmatpush1.msra.mxu0 0.0
    %604 = vmatprep.subr.mxu0 0.0
    %605 = vmatpush1.msra.mxu0 0.0
    %606 = vmatprep.subr.mxu0 0.0
    %607 = vmatpush1.msra.mxu0 0.0
    %608 = vmatprep.subr.mxu0 0.0
    %609 = vmatpush1.msra.mxu0 0.0
    %610 = vmatprep.subr.mxu0 0.0
    %611 = vmatpush1.msra.mxu0 0.0
    %612 = vmatprep.subr.mxu0 0.0
    %613 = vmatpush1.msra.mxu0 0.0
    %614 = vmatprep.subr.mxu0 0.0
    %615 = vmatpush1.msra.mxu0 0.0
    %616 = vmatprep.subr.mxu0 0.0
    %617 = vmatpush1.msra.mxu0 0.0
    %618 = vmatprep.subr.mxu0 0.0
    %619 = vmatpush1.msra.mxu0 0.0
    %620 = vmatprep.subr.mxu0 0.0
    %621 = vmatpush1.msra.mxu0 0.0
    %622 = vmatprep.subr.mxu0 0.0
    %623 = vmatpush1.msra.mxu0 0.0
    %624 = vmatprep.subr.mxu0 0.0
    %625 = vmatpush1.msra.mxu0 0.0
    %626 = vmatprep.subr.mxu0 0.0
    %627 = vmatpush1.msra.mxu0 0.0
    %628 = vmatprep.subr.mxu0 0.0
    %629 = vmatpush1.msra.mxu0 0.0
    %630 = vmatprep.subr.mxu0 0.0
    %631 = vmatpush1.msra.mxu0 0.0
    %v632 = vand.u32 %v42, 4294901760
    %v633 = vsub.f32 %v42, %v632
    %v634 = vand.u32 %v633, 4294901760
    %v635 = vsub.f32 %v633, %v634
    %v636 = vand.u32 %v635, 4294901760
    %637 = vmatprep.subr.mxu0 %v636
    %v638 = vand.u32 %v41, 4294901760
    %v639 = vsub.f32 %v41, %v638
    %v640 = vand.u32 %v639, 4294901760
    %v641 = vsub.f32 %v639, %v640
    %v642 = vand.u32 %v641, 4294901760
    %643 = vmatpush1.msra.mxu0 %v642
    %644 = vmatprep.subr.mxu0 0.0
    %645 = vmatpush2.msra.mxu0 0.0
    %646 = vmatprep.subr.mxu0 0.0
    %647 = vmatpush2.msra.mxu0 0.0
    %648 = vmatprep.subr.mxu0 0.0
    %649 = vmatpush2.msra.mxu0 0.0
    %650 = vmatprep.subr.mxu0 0.0
    %651 = vmatpush2.msra.mxu0 0.0
    %652 = vmatprep.subr.mxu0 0.0
    %653 = vmatpush2.msra.mxu0 0.0
    %654 = vmatprep.subr.mxu0 0.0
    %655 = vmatpush2.msra.mxu0 0.0
    %656 = vmatprep.subr.mxu0 0.0
    %657 = vmatpush2.msra.mxu0 0.0
    %658 = vmatprep.subr.mxu0 0.0
    %659 = vmatpush2.msra.mxu0 0.0
    %660 = vmatprep.subr.mxu0 0.0
    %661 = vmatpush2.msra.mxu0 0.0
    %662 = vmatprep.subr.mxu0 0.0
    %663 = vmatpush2.msra.mxu0 0.0
    %664 = vmatprep.subr.mxu0 0.0
    %665 = vmatpush2.msra.mxu0 0.0
    %666 = vmatprep.subr.mxu0 0.0
    %667 = vmatpush2.msra.mxu0 0.0
    %668 = vmatprep.subr.mxu0 0.0
    %669 = vmatpush2.msra.mxu0 0.0
    %670 = vmatprep.subr.mxu0 0.0
    %671 = vmatpush2.msra.mxu0 0.0
    %672 = vmatprep.subr.mxu0 0.0
    %673 = vmatpush2.msra.mxu0 0.0
    %674 = vmatprep.subr.mxu0 0.0
    %675 = vmatpush2.msra.mxu0 0.0
    %676 = vmatprep.mubr.f32.mxu0 0.0
    %v677 = vand.u32 %v57, 4294901760
    %678 = vmatmul.mubr.f32.gmra.mxu0 %v677
    %v679 = vpop.f32.mrf.mxu0
    %v680 = vadd.f32 %v598, %v679
    %v681 = vpop.f32.mrf.mxu0
    %v682 = vadd.f32 %v600, %v681
    %683 = vdwg.mxu0
    %684 = vmatprep.subr.mxu0 0.0
    %685 = vmatpush1.msra.mxu0 0.0
    %686 = vmatprep.subr.mxu0 0.0
    %687 = vmatpush1.msra.mxu0 0.0
    %688 = vmatprep.subr.mxu0 0.0
    %689 = vmatpush1.msra.mxu0 0.0
    %690 = vmatprep.subr.mxu0 0.0
    %691 = vmatpush1.msra.mxu0 0.0
    %692 = vmatprep.subr.mxu0 0.0
    %693 = vmatpush1.msra.mxu0 0.0
    %694 = vmatprep.subr.mxu0 0.0
    %695 = vmatpush1.msra.mxu0 0.0
    %696 = vmatprep.subr.mxu0 0.0
    %697 = vmatpush1.msra.mxu0 0.0
    %698 = vmatprep.subr.mxu0 0.0
    %699 = vmatpush1.msra.mxu0 0.0
    %700 = vmatprep.subr.mxu0 0.0
    %701 = vmatpush1.msra.mxu0 0.0
    %702 = vmatprep.subr.mxu0 0.0
    %703 = vmatpush1.msra.mxu0 0.0
    %704 = vmatprep.subr.mxu0 0.0
    %705 = vmatpush1.msra.mxu0 0.0
    %706 = vmatprep.subr.mxu0 0.0
    %707 = vmatpush1.msra.mxu0 0.0
    %708 = vmatprep.subr.mxu0 0.0
    %709 = vmatpush1.msra.mxu0 0.0
    %710 = vmatprep.subr.mxu0 0.0
    %711 = vmatpush1.msra.mxu0 0.0
    %712 = vmatprep.subr.mxu0 0.0
    %713 = vmatpush1.msra.mxu0 0.0
    %v714 = vand.u32 %v42, 4294901760
    %v715 = vsub.f32 %v42, %v714
    %716 = vmatprep.subr.mxu0 %v715
    %v717 = vand.u32 %v41, 4294901760
    %v718 = vsub.f32 %v41, %v717
    %719 = vmatpush1.msra.mxu0 %v718
    %720 = vmatprep.subr.mxu0 0.0
    %721 = vmatpush2.msra.mxu0 0.0
    %722 = vmatprep.subr.mxu0 0.0
    %723 = vmatpush2.msra.mxu0 0.0
    %724 = vmatprep.subr.mxu0 0.0
    %725 = vmatpush2.msra.mxu0 0.0
    %726 = vmatprep.subr.mxu0 0.0
    %727 = vmatpush2.msra.mxu0 0.0
    %728 = vmatprep.subr.mxu0 0.0
    %729 = vmatpush2.msra.mxu0 0.0
    %730 = vmatprep.subr.mxu0 0.0
    %731 = vmatpush2.msra.mxu0 0.0
    %732 = vmatprep.subr.mxu0 0.0
    %733 = vmatpush2.msra.mxu0 0.0
    %734 = vmatprep.subr.mxu0 0.0
    %735 = vmatpush2.msra.mxu0 0.0
    %736 = vmatprep.subr.mxu0 0.0
    %737 = vmatpush2.msra.mxu0 0.0
    %738 = vmatprep.subr.mxu0 0.0
    %739 = vmatpush2.msra.mxu0 0.0
    %740 = vmatprep.subr.mxu0 0.0
    %741 = vmatpush2.msra.mxu0 0.0
    %742 = vmatprep.subr.mxu0 0.0
    %743 = vmatpush2.msra.mxu0 0.0
    %744 = vmatprep.subr.mxu0 0.0
    %745 = vmatpush2.msra.mxu0 0.0
    %746 = vmatprep.subr.mxu0 0.0
    %747 = vmatpush2.msra.mxu0 0.0
    %748 = vmatprep.subr.mxu0 0.0
    %749 = vmatpush2.msra.mxu0 0.0
    %750 = vmatprep.subr.mxu0 0.0
    %751 = vmatpush2.msra.mxu0 0.0
    %752 = vmatprep.mubr.f32.mxu0 0.0
    %v753 = vand.u32 %v57, 4294901760
    %v754 = vsub.f32 %v57, %v753
    %755 = vmatmul.mubr.f32.gmra.mxu0 %v754
    %v756 = vpop.f32.mrf.mxu0
    %v757 = vadd.f32 %v680, %v756
    %v758 = vpop.f32.mrf.mxu0
    %v759 = vadd.f32 %v682, %v758
    %760 = vdwg.mxu0
    %761 = vmatprep.subr.mxu0 0.0
    %762 = vmatpush1.msra.mxu0 0.0
    %763 = vmatprep.subr.mxu0 0.0
    %764 = vmatpush1.msra.mxu0 0.0
    %765 = vmatprep.subr.mxu0 0.0
    %766 = vmatpush1.msra.mxu0 0.0
    %767 = vmatprep.subr.mxu0 0.0
    %768 = vmatpush1.msra.mxu0 0.0
    %769 = vmatprep.subr.mxu0 0.0
    %770 = vmatpush1.msra.mxu0 0.0
    %771 = vmatprep.subr.mxu0 0.0
    %772 = vmatpush1.msra.mxu0 0.0
    %773 = vmatprep.subr.mxu0 0.0
    %774 = vmatpush1.msra.mxu0 0.0
    %775 = vmatprep.subr.mxu0 0.0
    %776 = vmatpush1.msra.mxu0 0.0
    %777 = vmatprep.subr.mxu0 0.0
    %778 = vmatpush1.msra.mxu0 0.0
    %779 = vmatprep.subr.mxu0 0.0
    %780 = vmatpush1.msra.mxu0 0.0
    %781 = vmatprep.subr.mxu0 0.0
    %782 = vmatpush1.msra.mxu0 0.0
    %783 = vmatprep.subr.mxu0 0.0
    %784 = vmatpush1.msra.mxu0 0.0
    %785 = vmatprep.subr.mxu0 0.0
    %786 = vmatpush1.msra.mxu0 0.0
    %787 = vmatprep.subr.mxu0 0.0
    %788 = vmatpush1.msra.mxu0 0.0
    %789 = vmatprep.subr.mxu0 0.0
    %790 = vmatpush1.msra.mxu0 0.0
    %v791 = vand.u32 %v42, 4294901760
    %792 = vmatprep.subr.mxu0 %v791
    %v793 = vand.u32 %v41, 4294901760
    %794 = vmatpush1.msra.mxu0 %v793
    %795 = vmatprep.subr.mxu0 0.0
    %796 = vmatpush2.msra.mxu0 0.0
    %797 = vmatprep.subr.mxu0 0.0
    %798 = vmatpush2.msra.mxu0 0.0
    %799 = vmatprep.subr.mxu0 0.0
    %800 = vmatpush2.msra.mxu0 0.0
    %801 = vmatprep.subr.mxu0 0.0
    %802 = vmatpush2.msra.mxu0 0.0
    %803 = vmatprep.subr.mxu0 0.0
    %804 = vmatpush2.msra.mxu0 0.0
    %805 = vmatprep.subr.mxu0 0.0
    %806 = vmatpush2.msra.mxu0 0.0
    %807 = vmatprep.subr.mxu0 0.0
    %808 = vmatpush2.msra.mxu0 0.0
    %809 = vmatprep.subr.mxu0 0.0
    %810 = vmatpush2.msra.mxu0 0.0
    %811 = vmatprep.subr.mxu0 0.0
    %812 = vmatpush2.msra.mxu0 0.0
    %813 = vmatprep.subr.mxu0 0.0
    %814 = vmatpush2.msra.mxu0 0.0
    %815 = vmatprep.subr.mxu0 0.0
    %816 = vmatpush2.msra.mxu0 0.0
    %817 = vmatprep.subr.mxu0 0.0
    %818 = vmatpush2.msra.mxu0 0.0
    %819 = vmatprep.subr.mxu0 0.0
    %820 = vmatpush2.msra.mxu0 0.0
    %821 = vmatprep.subr.mxu0 0.0
    %822 = vmatpush2.msra.mxu0 0.0
    %823 = vmatprep.subr.mxu0 0.0
    %824 = vmatpush2.msra.mxu0 0.0
    %825 = vmatprep.subr.mxu0 0.0
    %826 = vmatpush2.msra.mxu0 0.0
    %827 = vmatprep.mubr.f32.mxu0 0.0
    %v828 = vand.u32 %v57, 4294901760
    %v829 = vsub.f32 %v57, %v828
    %v830 = vand.u32 %v829, 4294901760
    %831 = vmatmul.mubr.f32.gmra.mxu0 %v830
    %v832 = vpop.f32.mrf.mxu0
    %v833 = vadd.f32 %v757, %v832
    %v834 = vpop.f32.mrf.mxu0
    %v835 = vadd.f32 %v759, %v834
    %836 = vdwg.mxu0
    %837 = vmatprep.subr.mxu0 0.0
    %838 = vmatpush1.msra.mxu0 0.0
    %839 = vmatprep.subr.mxu0 0.0
    %840 = vmatpush1.msra.mxu0 0.0
    %841 = vmatprep.subr.mxu0 0.0
    %842 = vmatpush1.msra.mxu0 0.0
    %843 = vmatprep.subr.mxu0 0.0
    %844 = vmatpush1.msra.mxu0 0.0
    %845 = vmatprep.subr.mxu0 0.0
    %846 = vmatpush1.msra.mxu0 0.0
    %847 = vmatprep.subr.mxu0 0.0
    %848 = vmatpush1.msra.mxu0 0.0
    %849 = vmatprep.subr.mxu0 0.0
    %850 = vmatpush1.msra.mxu0 0.0
    %851 = vmatprep.subr.mxu0 0.0
    %852 = vmatpush1.msra.mxu0 0.0
    %853 = vmatprep.subr.mxu0 0.0
    %854 = vmatpush1.msra.mxu0 0.0
    %855 = vmatprep.subr.mxu0 0.0
    %856 = vmatpush1.msra.mxu0 0.0
    %857 = vmatprep.subr.mxu0 0.0
    %858 = vmatpush1.msra.mxu0 0.0
    %859 = vmatprep.subr.mxu0 0.0
    %860 = vmatpush1.msra.mxu0 0.0
    %861 = vmatprep.subr.mxu0 0.0
    %862 = vmatpush1.msra.mxu0 0.0
    %863 = vmatprep.subr.mxu0 0.0
    %864 = vmatpush1.msra.mxu0 0.0
    %865 = vmatprep.subr.mxu0 0.0
    %866 = vmatpush1.msra.mxu0 0.0
    %v867 = vand.u32 %v42, 4294901760
    %v868 = vsub.f32 %v42, %v867
    %v869 = vand.u32 %v868, 4294901760
    %870 = vmatprep.subr.mxu0 %v869
    %v871 = vand.u32 %v41, 4294901760
    %v872 = vsub.f32 %v41, %v871
    %v873 = vand.u32 %v872, 4294901760
    %874 = vmatpush1.msra.mxu0 %v873
    %875 = vmatprep.subr.mxu0 0.0
    %876 = vmatpush2.msra.mxu0 0.0
    %877 = vmatprep.subr.mxu0 0.0
    %878 = vmatpush2.msra.mxu0 0.0
    %879 = vmatprep.subr.mxu0 0.0
    %880 = vmatpush2.msra.mxu0 0.0
    %881 = vmatprep.subr.mxu0 0.0
    %882 = vmatpush2.msra.mxu0 0.0
    %883 = vmatprep.subr.mxu0 0.0
    %884 = vmatpush2.msra.mxu0 0.0
    %885 = vmatprep.subr.mxu0 0.0
    %886 = vmatpush2.msra.mxu0 0.0
    %887 = vmatprep.subr.mxu0 0.0
    %888 = vmatpush2.msra.mxu0 0.0
    %889 = vmatprep.subr.mxu0 0.0
    %890 = vmatpush2.msra.mxu0 0.0
    %891 = vmatprep.subr.mxu0 0.0
    %892 = vmatpush2.msra.mxu0 0.0
    %893 = vmatprep.subr.mxu0 0.0
    %894 = vmatpush2.msra.mxu0 0.0
    %895 = vmatprep.subr.mxu0 0.0
    %896 = vmatpush2.msra.mxu0 0.0
    %897 = vmatprep.subr.mxu0 0.0
    %898 = vmatpush2.msra.mxu0 0.0
    %899 = vmatprep.subr.mxu0 0.0
    %900 = vmatpush2.msra.mxu0 0.0
    %901 = vmatprep.subr.mxu0 0.0
    %902 = vmatpush2.msra.mxu0 0.0
    %903 = vmatprep.subr.mxu0 0.0
    %904 = vmatpush2.msra.mxu0 0.0
    %905 = vmatprep.subr.mxu0 0.0
    %906 = vmatpush2.msra.mxu0 0.0
    %907 = vmatprep.mubr.f32.mxu0 0.0
    %v908 = vand.u32 %v57, 4294901760
    %909 = vmatmul.mubr.f32.gmra.mxu0 %v908
    %v910 = vpop.f32.mrf.mxu0
    %v911 = vadd.f32 %v833, %v910
    %v912 = vpop.f32.mrf.mxu0
    %v913 = vadd.f32 %v835, %v912
    %914 = vdwg.mxu0
    %915 = vmatprep.subr.mxu0 0.0
    %916 = vmatpush1.msra.mxu0 0.0
    %917 = vmatprep.subr.mxu0 0.0
    %918 = vmatpush1.msra.mxu0 0.0
    %919 = vmatprep.subr.mxu0 0.0
    %920 = vmatpush1.msra.mxu0 0.0
    %921 = vmatprep.subr.mxu0 0.0
    %922 = vmatpush1.msra.mxu0 0.0
    %923 = vmatprep.subr.mxu0 0.0
    %924 = vmatpush1.msra.mxu0 0.0
    %925 = vmatprep.subr.mxu0 0.0
    %926 = vmatpush1.msra.mxu0 0.0
    %927 = vmatprep.subr.mxu0 0.0
    %928 = vmatpush1.msra.mxu0 0.0
    %929 = vmatprep.subr.mxu0 0.0
    %930 = vmatpush1.msra.mxu0 0.0
    %931 = vmatprep.subr.mxu0 0.0
    %932 = vmatpush1.msra.mxu0 0.0
    %933 = vmatprep.subr.mxu0 0.0
    %934 = vmatpush1.msra.mxu0 0.0
    %935 = vmatprep.subr.mxu0 0.0
    %936 = vmatpush1.msra.mxu0 0.0
    %937 = vmatprep.subr.mxu0 0.0
    %938 = vmatpush1.msra.mxu0 0.0
    %939 = vmatprep.subr.mxu0 0.0
    %940 = vmatpush1.msra.mxu0 0.0
    %941 = vmatprep.subr.mxu0 0.0
    %942 = vmatpush1.msra.mxu0 0.0
    %943 = vmatprep.subr.mxu0 0.0
    %944 = vmatpush1.msra.mxu0 0.0
    %v945 = vand.u32 %v42, 4294901760
    %946 = vmatprep.subr.mxu0 %v945
    %v947 = vand.u32 %v41, 4294901760
    %948 = vmatpush1.msra.mxu0 %v947
    %949 = vmatprep.subr.mxu0 0.0
    %950 = vmatpush2.msra.mxu0 0.0
    %951 = vmatprep.subr.mxu0 0.0
    %952 = vmatpush2.msra.mxu0 0.0
    %953 = vmatprep.subr.mxu0 0.0
    %954 = vmatpush2.msra.mxu0 0.0
    %955 = vmatprep.subr.mxu0 0.0
    %956 = vmatpush2.msra.mxu0 0.0
    %957 = vmatprep.subr.mxu0 0.0
    %958 = vmatpush2.msra.mxu0 0.0
    %959 = vmatprep.subr.mxu0 0.0
    %960 = vmatpush2.msra.mxu0 0.0
    %961 = vmatprep.subr.mxu0 0.0
    %962 = vmatpush2.msra.mxu0 0.0
    %963 = vmatprep.subr.mxu0 0.0
    %964 = vmatpush2.msra.mxu0 0.0
    %965 = vmatprep.subr.mxu0 0.0
    %966 = vmatpush2.msra.mxu0 0.0
    %967 = vmatprep.subr.mxu0 0.0
    %968 = vmatpush2.msra.mxu0 0.0
    %969 = vmatprep.subr.mxu0 0.0
    %970 = vmatpush2.msra.mxu0 0.0
    %971 = vmatprep.subr.mxu0 0.0
    %972 = vmatpush2.msra.mxu0 0.0
    %973 = vmatprep.subr.mxu0 0.0
    %974 = vmatpush2.msra.mxu0 0.0
    %975 = vmatprep.subr.mxu0 0.0
    %976 = vmatpush2.msra.mxu0 0.0
    %977 = vmatprep.subr.mxu0 0.0
    %978 = vmatpush2.msra.mxu0 0.0
    %979 = vmatprep.subr.mxu0 0.0
    %980 = vmatpush2.msra.mxu0 0.0
    %981 = vmatprep.mubr.f32.mxu0 0.0
    %v982 = vand.u32 %v57, 4294901760
    %983 = vmatmul.mubr.f32.gmra.mxu0 %v982
    %v984 = vpop.f32.mrf.mxu0
    %v985 = vadd.f32 %v911, %v984
    %v986 = vpop.f32.mrf.mxu0
    %v987 = vadd.f32 %v913, %v986
    %988 = vdwg.mxu0
    %989 = vmatprep.subr.mxu0 0.0
    %990 = vmatpush1.msra.mxu0 0.0
    %991 = vmatprep.subr.mxu0 0.0
    %992 = vmatpush1.msra.mxu0 0.0
    %993 = vmatprep.subr.mxu0 0.0
    %994 = vmatpush1.msra.mxu0 0.0
    %995 = vmatprep.subr.mxu0 0.0
    %996 = vmatpush1.msra.mxu0 0.0
    %997 = vmatprep.subr.mxu0 0.0
    %998 = vmatpush1.msra.mxu0 0.0
    %999 = vmatprep.subr.mxu0 0.0
    %1000 = vmatpush1.msra.mxu0 0.0
    %1001 = vmatprep.subr.mxu0 0.0
    %1002 = vmatpush1.msra.mxu0 0.0
    %1003 = vmatprep.subr.mxu0 0.0
    %1004 = vmatpush1.msra.mxu0 0.0
    %1005 = vmatprep.subr.mxu0 0.0
    %1006 = vmatpush1.msra.mxu0 0.0
    %1007 = vmatprep.subr.mxu0 0.0
    %1008 = vmatpush1.msra.mxu0 0.0
    %1009 = vmatprep.subr.mxu0 0.0
    %1010 = vmatpush1.msra.mxu0 0.0
    %1011 = vmatprep.subr.mxu0 0.0
    %1012 = vmatpush1.msra.mxu0 0.0
    %1013 = vmatprep.subr.mxu0 0.0
    %1014 = vmatpush1.msra.mxu0 0.0
    %1015 = vmatprep.subr.mxu0 0.0
    %1016 = vmatpush1.msra.mxu0 0.0
    %1017 = vmatprep.subr.mxu0 0.0
    %1018 = vmatpush1.msra.mxu0 0.0
    %v1019 = vand.u32 %v44, 4294901760
    %1020 = vmatprep.subr.mxu0 %v1019
    %v1021 = vand.u32 %v43, 4294901760
    %1022 = vmatpush1.msra.mxu0 %v1021
    %1023 = vmatprep.subr.mxu0 0.0
    %1024 = vmatpush2.msra.mxu0 0.0
    %1025 = vmatprep.subr.mxu0 0.0
    %1026 = vmatpush2.msra.mxu0 0.0
    %1027 = vmatprep.subr.mxu0 0.0
    %1028 = vmatpush2.msra.mxu0 0.0
    %1029 = vmatprep.subr.mxu0 0.0
    %1030 = vmatpush2.msra.mxu0 0.0
    %1031 = vmatprep.subr.mxu0 0.0
    %1032 = vmatpush2.msra.mxu0 0.0
    %1033 = vmatprep.subr.mxu0 0.0
    %1034 = vmatpush2.msra.mxu0 0.0
    %1035 = vmatprep.subr.mxu0 0.0
    %1036 = vmatpush2.msra.mxu0 0.0
    %1037 = vmatprep.subr.mxu0 0.0
    %1038 = vmatpush2.msra.mxu0 0.0
    %1039 = vmatprep.subr.mxu0 0.0
    %1040 = vmatpush2.msra.mxu0 0.0
    %1041 = vmatprep.subr.mxu0 0.0
    %1042 = vmatpush2.msra.mxu0 0.0
    %1043 = vmatprep.subr.mxu0 0.0
    %1044 = vmatpush2.msra.mxu0 0.0
    %1045 = vmatprep.subr.mxu0 0.0
    %1046 = vmatpush2.msra.mxu0 0.0
    %1047 = vmatprep.subr.mxu0 0.0
    %1048 = vmatpush2.msra.mxu0 0.0
    %1049 = vmatprep.subr.mxu0 0.0
    %1050 = vmatpush2.msra.mxu0 0.0
    %1051 = vmatprep.subr.mxu0 0.0
    %1052 = vmatpush2.msra.mxu0 0.0
    %1053 = vmatprep.subr.mxu0 0.0
    %1054 = vmatpush2.msra.mxu0 0.0
    %1055 = vmatprep.mubr.f32.mxu0 0.0
    %v1056 = vand.u32 %v57, 4294901760
    %v1057 = vsub.f32 %v57, %v1056
    %v1058 = vand.u32 %v1057, 4294901760
    %v1059 = vsub.f32 %v1057, %v1058
    %v1060 = vand.u32 %v1059, 4294901760
    %1061 = vmatmul.mubr.f32.gmra.mxu0 %v1060
    %v1062 = vpop.f32.mrf.mxu0
    %v1063 = vadd.f32 0.0, %v1062
    %v1064 = vpop.f32.mrf.mxu0
    %v1065 = vadd.f32 0.0, %v1064
    %1066 = vdwg.mxu0
    %1067 = vmatprep.subr.mxu0 0.0
    %1068 = vmatpush1.msra.mxu0 0.0
    %1069 = vmatprep.subr.mxu0 0.0
    %1070 = vmatpush1.msra.mxu0 0.0
    %1071 = vmatprep.subr.mxu0 0.0
    %1072 = vmatpush1.msra.mxu0 0.0
    %1073 = vmatprep.subr.mxu0 0.0
    %1074 = vmatpush1.msra.mxu0 0.0
    %1075 = vmatprep.subr.mxu0 0.0
    %1076 = vmatpush1.msra.mxu0 0.0
    %1077 = vmatprep.subr.mxu0 0.0
    %1078 = vmatpush1.msra.mxu0 0.0
    %1079 = vmatprep.subr.mxu0 0.0
    %1080 = vmatpush1.msra.mxu0 0.0
    %1081 = vmatprep.subr.mxu0 0.0
    %1082 = vmatpush1.msra.mxu0 0.0
    %1083 = vmatprep.subr.mxu0 0.0
    %1084 = vmatpush1.msra.mxu0 0.0
    %1085 = vmatprep.subr.mxu0 0.0
    %1086 = vmatpush1.msra.mxu0 0.0
    %1087 = vmatprep.subr.mxu0 0.0
    %1088 = vmatpush1.msra.mxu0 0.0
    %1089 = vmatprep.subr.mxu0 0.0
    %1090 = vmatpush1.msra.mxu0 0.0
    %1091 = vmatprep.subr.mxu0 0.0
    %1092 = vmatpush1.msra.mxu0 0.0
    %1093 = vmatprep.subr.mxu0 0.0
    %1094 = vmatpush1.msra.mxu0 0.0
    %1095 = vmatprep.subr.mxu0 0.0
    %1096 = vmatpush1.msra.mxu0 0.0
    %v1097 = vand.u32 %v44, 4294901760
    %v1098 = vsub.f32 %v44, %v1097
    %v1099 = vand.u32 %v1098, 4294901760
    %v1100 = vsub.f32 %v1098, %v1099
    %v1101 = vand.u32 %v1100, 4294901760
    %1102 = vmatprep.subr.mxu0 %v1101
    %v1103 = vand.u32 %v43, 4294901760
    %v1104 = vsub.f32 %v43, %v1103
    %v1105 = vand.u32 %v1104, 4294901760
    %v1106 = vsub.f32 %v1104, %v1105
    %v1107 = vand.u32 %v1106, 4294901760
    %1108 = vmatpush1.msra.mxu0 %v1107
    %1109 = vmatprep.subr.mxu0 0.0
    %1110 = vmatpush2.msra.mxu0 0.0
    %1111 = vmatprep.subr.mxu0 0.0
    %1112 = vmatpush2.msra.mxu0 0.0
    %1113 = vmatprep.subr.mxu0 0.0
    %1114 = vmatpush2.msra.mxu0 0.0
    %1115 = vmatprep.subr.mxu0 0.0
    %1116 = vmatpush2.msra.mxu0 0.0
    %1117 = vmatprep.subr.mxu0 0.0
    %1118 = vmatpush2.msra.mxu0 0.0
    %1119 = vmatprep.subr.mxu0 0.0
    %1120 = vmatpush2.msra.mxu0 0.0
    %1121 = vmatprep.subr.mxu0 0.0
    %1122 = vmatpush2.msra.mxu0 0.0
    %1123 = vmatprep.subr.mxu0 0.0
    %1124 = vmatpush2.msra.mxu0 0.0
    %1125 = vmatprep.subr.mxu0 0.0
    %1126 = vmatpush2.msra.mxu0 0.0
    %1127 = vmatprep.subr.mxu0 0.0
    %1128 = vmatpush2.msra.mxu0 0.0
    %1129 = vmatprep.subr.mxu0 0.0
    %1130 = vmatpush2.msra.mxu0 0.0
    %1131 = vmatprep.subr.mxu0 0.0
    %1132 = vmatpush2.msra.mxu0 0.0
    %1133 = vmatprep.subr.mxu0 0.0
    %1134 = vmatpush2.msra.mxu0 0.0
    %1135 = vmatprep.subr.mxu0 0.0
    %1136 = vmatpush2.msra.mxu0 0.0
    %1137 = vmatprep.subr.mxu0 0.0
    %1138 = vmatpush2.msra.mxu0 0.0
    %1139 = vmatprep.subr.mxu0 0.0
    %1140 = vmatpush2.msra.mxu0 0.0
    %1141 = vmatprep.mubr.f32.mxu0 0.0
    %v1142 = vand.u32 %v57, 4294901760
    %1143 = vmatmul.mubr.f32.gmra.mxu0 %v1142
    %v1144 = vpop.f32.mrf.mxu0
    %v1145 = vadd.f32 %v1063, %v1144
    %v1146 = vpop.f32.mrf.mxu0
    %v1147 = vadd.f32 %v1065, %v1146
    %1148 = vdwg.mxu0
    %1149 = vmatprep.subr.mxu0 0.0
    %1150 = vmatpush1.msra.mxu0 0.0
    %1151 = vmatprep.subr.mxu0 0.0
    %1152 = vmatpush1.msra.mxu0 0.0
    %1153 = vmatprep.subr.mxu0 0.0
    %1154 = vmatpush1.msra.mxu0 0.0
    %1155 = vmatprep.subr.mxu0 0.0
    %1156 = vmatpush1.msra.mxu0 0.0
    %1157 = vmatprep.subr.mxu0 0.0
    %1158 = vmatpush1.msra.mxu0 0.0
    %1159 = vmatprep.subr.mxu0 0.0
    %1160 = vmatpush1.msra.mxu0 0.0
    %1161 = vmatprep.subr.mxu0 0.0
    %1162 = vmatpush1.msra.mxu0 0.0
    %1163 = vmatprep.subr.mxu0 0.0
    %1164 = vmatpush1.msra.mxu0 0.0
    %1165 = vmatprep.subr.mxu0 0.0
    %1166 = vmatpush1.msra.mxu0 0.0
    %1167 = vmatprep.subr.mxu0 0.0
    %1168 = vmatpush1.msra.mxu0 0.0
    %1169 = vmatprep.subr.mxu0 0.0
    %1170 = vmatpush1.msra.mxu0 0.0
    %1171 = vmatprep.subr.mxu0 0.0
    %1172 = vmatpush1.msra.mxu0 0.0
    %1173 = vmatprep.subr.mxu0 0.0
    %1174 = vmatpush1.msra.mxu0 0.0
    %1175 = vmatprep.subr.mxu0 0.0
    %1176 = vmatpush1.msra.mxu0 0.0
    %1177 = vmatprep.subr.mxu0 0.0
    %1178 = vmatpush1.msra.mxu0 0.0
    %v1179 = vand.u32 %v44, 4294901760
    %v1180 = vsub.f32 %v44, %v1179
    %1181 = vmatprep.subr.mxu0 %v1180
    %v1182 = vand.u32 %v43, 4294901760
    %v1183 = vsub.f32 %v43, %v1182
    %1184 = vmatpush1.msra.mxu0 %v1183
    %1185 = vmatprep.subr.mxu0 0.0
    %1186 = vmatpush2.msra.mxu0 0.0
    %1187 = vmatprep.subr.mxu0 0.0
    %1188 = vmatpush2.msra.mxu0 0.0
    %1189 = vmatprep.subr.mxu0 0.0
    %1190 = vmatpush2.msra.mxu0 0.0
    %1191 = vmatprep.subr.mxu0 0.0
    %1192 = vmatpush2.msra.mxu0 0.0
    %1193 = vmatprep.subr.mxu0 0.0
    %1194 = vmatpush2.msra.mxu0 0.0
    %1195 = vmatprep.subr.mxu0 0.0
    %1196 = vmatpush2.msra.mxu0 0.0
    %1197 = vmatprep.subr.mxu0 0.0
    %1198 = vmatpush2.msra.mxu0 0.0
    %1199 = vmatprep.subr.mxu0 0.0
    %1200 = vmatpush2.msra.mxu0 0.0
    %1201 = vmatprep.subr.mxu0 0.0
    %1202 = vmatpush2.msra.mxu0 0.0
    %1203 = vmatprep.subr.mxu0 0.0
    %1204 = vmatpush2.msra.mxu0 0.0
    %1205 = vmatprep.subr.mxu0 0.0
    %1206 = vmatpush2.msra.mxu0 0.0
    %1207 = vmatprep.subr.mxu0 0.0
    %1208 = vmatpush2.msra.mxu0 0.0
    %1209 = vmatprep.subr.mxu0 0.0
    %1210 = vmatpush2.msra.mxu0 0.0
    %1211 = vmatprep.subr.mxu0 0.0
    %1212 = vmatpush2.msra.mxu0 0.0
    %1213 = vmatprep.subr.mxu0 0.0
    %1214 = vmatpush2.msra.mxu0 0.0
    %1215 = vmatprep.subr.mxu0 0.0
    %1216 = vmatpush2.msra.mxu0 0.0
    %1217 = vmatprep.mubr.f32.mxu0 0.0
    %v1218 = vand.u32 %v57, 4294901760
    %v1219 = vsub.f32 %v57, %v1218
    %1220 = vmatmul.mubr.f32.gmra.mxu0 %v1219
    %v1221 = vpop.f32.mrf.mxu0
    %v1222 = vadd.f32 %v1145, %v1221
    %v1223 = vpop.f32.mrf.mxu0
    %v1224 = vadd.f32 %v1147, %v1223
    %1225 = vdwg.mxu0
    %1226 = vmatprep.subr.mxu0 0.0
    %1227 = vmatpush1.msra.mxu0 0.0
    %1228 = vmatprep.subr.mxu0 0.0
    %1229 = vmatpush1.msra.mxu0 0.0
    %1230 = vmatprep.subr.mxu0 0.0
    %1231 = vmatpush1.msra.mxu0 0.0
    %1232 = vmatprep.subr.mxu0 0.0
    %1233 = vmatpush1.msra.mxu0 0.0
    %1234 = vmatprep.subr.mxu0 0.0
    %1235 = vmatpush1.msra.mxu0 0.0
    %1236 = vmatprep.subr.mxu0 0.0
    %1237 = vmatpush1.msra.mxu0 0.0
    %1238 = vmatprep.subr.mxu0 0.0
    %1239 = vmatpush1.msra.mxu0 0.0
    %1240 = vmatprep.subr.mxu0 0.0
    %1241 = vmatpush1.msra.mxu0 0.0
    %1242 = vmatprep.subr.mxu0 0.0
    %1243 = vmatpush1.msra.mxu0 0.0
    %1244 = vmatprep.subr.mxu0 0.0
    %1245 = vmatpush1.msra.mxu0 0.0
    %1246 = vmatprep.subr.mxu0 0.0
    %1247 = vmatpush1.msra.mxu0 0.0
    %1248 = vmatprep.subr.mxu0 0.0
    %1249 = vmatpush1.msra.mxu0 0.0
    %1250 = vmatprep.subr.mxu0 0.0
    %1251 = vmatpush1.msra.mxu0 0.0
    %1252 = vmatprep.subr.mxu0 0.0
    %1253 = vmatpush1.msra.mxu0 0.0
    %1254 = vmatprep.subr.mxu0 0.0
    %1255 = vmatpush1.msra.mxu0 0.0
    %v1256 = vand.u32 %v44, 4294901760
    %1257 = vmatprep.subr.mxu0 %v1256
    %v1258 = vand.u32 %v43, 4294901760
    %1259 = vmatpush1.msra.mxu0 %v1258
    %1260 = vmatprep.subr.mxu0 0.0
    %1261 = vmatpush2.msra.mxu0 0.0
    %1262 = vmatprep.subr.mxu0 0.0
    %1263 = vmatpush2.msra.mxu0 0.0
    %1264 = vmatprep.subr.mxu0 0.0
    %1265 = vmatpush2.msra.mxu0 0.0
    %1266 = vmatprep.subr.mxu0 0.0
    %1267 = vmatpush2.msra.mxu0 0.0
    %1268 = vmatprep.subr.mxu0 0.0
    %1269 = vmatpush2.msra.mxu0 0.0
    %1270 = vmatprep.subr.mxu0 0.0
    %1271 = vmatpush2.msra.mxu0 0.0
    %1272 = vmatprep.subr.mxu0 0.0
    %1273 = vmatpush2.msra.mxu0 0.0
    %1274 = vmatprep.subr.mxu0 0.0
    %1275 = vmatpush2.msra.mxu0 0.0
    %1276 = vmatprep.subr.mxu0 0.0
    %1277 = vmatpush2.msra.mxu0 0.0
    %1278 = vmatprep.subr.mxu0 0.0
    %1279 = vmatpush2.msra.mxu0 0.0
    %1280 = vmatprep.subr.mxu0 0.0
    %1281 = vmatpush2.msra.mxu0 0.0
    %1282 = vmatprep.subr.mxu0 0.0
    %1283 = vmatpush2.msra.mxu0 0.0
    %1284 = vmatprep.subr.mxu0 0.0
    %1285 = vmatpush2.msra.mxu0 0.0
    %1286 = vmatprep.subr.mxu0 0.0
    %1287 = vmatpush2.msra.mxu0 0.0
    %1288 = vmatprep.subr.mxu0 0.0
    %1289 = vmatpush2.msra.mxu0 0.0
    %1290 = vmatprep.subr.mxu0 0.0
    %1291 = vmatpush2.msra.mxu0 0.0
    %1292 = vmatprep.mubr.f32.mxu0 0.0
    %v1293 = vand.u32 %v57, 4294901760
    %v1294 = vsub.f32 %v57, %v1293
    %v1295 = vand.u32 %v1294, 4294901760
    %1296 = vmatmul.mubr.f32.gmra.mxu0 %v1295
    %v1297 = vpop.f32.mrf.mxu0
    %v1298 = vadd.f32 %v1222, %v1297
    %v1299 = vpop.f32.mrf.mxu0
    %v1300 = vadd.f32 %v1224, %v1299
    %1301 = vdwg.mxu0
    %1302 = vmatprep.subr.mxu0 0.0
    %1303 = vmatpush1.msra.mxu0 0.0
    %1304 = vmatprep.subr.mxu0 0.0
    %1305 = vmatpush1.msra.mxu0 0.0
    %1306 = vmatprep.subr.mxu0 0.0
    %1307 = vmatpush1.msra.mxu0 0.0
    %1308 = vmatprep.subr.mxu0 0.0
    %1309 = vmatpush1.msra.mxu0 0.0
    %1310 = vmatprep.subr.mxu0 0.0
    %1311 = vmatpush1.msra.mxu0 0.0
    %1312 = vmatprep.subr.mxu0 0.0
    %1313 = vmatpush1.msra.mxu0 0.0
    %1314 = vmatprep.subr.mxu0 0.0
    %1315 = vmatpush1.msra.mxu0 0.0
    %1316 = vmatprep.subr.mxu0 0.0
    %1317 = vmatpush1.msra.mxu0 0.0
    %1318 = vmatprep.subr.mxu0 0.0
    %1319 = vmatpush1.msra.mxu0 0.0
    %1320 = vmatprep.subr.mxu0 0.0
    %1321 = vmatpush1.msra.mxu0 0.0
    %1322 = vmatprep.subr.mxu0 0.0
    %1323 = vmatpush1.msra.mxu0 0.0
    %1324 = vmatprep.subr.mxu0 0.0
    %1325 = vmatpush1.msra.mxu0 0.0
    %1326 = vmatprep.subr.mxu0 0.0
    %1327 = vmatpush1.msra.mxu0 0.0
    %1328 = vmatprep.subr.mxu0 0.0
    %1329 = vmatpush1.msra.mxu0 0.0
    %1330 = vmatprep.subr.mxu0 0.0
    %1331 = vmatpush1.msra.mxu0 0.0
    %v1332 = vand.u32 %v44, 4294901760
    %v1333 = vsub.f32 %v44, %v1332
    %v1334 = vand.u32 %v1333, 4294901760
    %1335 = vmatprep.subr.mxu0 %v1334
    %v1336 = vand.u32 %v43, 4294901760
    %v1337 = vsub.f32 %v43, %v1336
    %v1338 = vand.u32 %v1337, 4294901760
    %1339 = vmatpush1.msra.mxu0 %v1338
    %1340 = vmatprep.subr.mxu0 0.0
    %1341 = vmatpush2.msra.mxu0 0.0
    %1342 = vmatprep.subr.mxu0 0.0
    %1343 = vmatpush2.msra.mxu0 0.0
    %1344 = vmatprep.subr.mxu0 0.0
    %1345 = vmatpush2.msra.mxu0 0.0
    %1346 = vmatprep.subr.mxu0 0.0
    %1347 = vmatpush2.msra.mxu0 0.0
    %1348 = vmatprep.subr.mxu0 0.0
    %1349 = vmatpush2.msra.mxu0 0.0
    %1350 = vmatprep.subr.mxu0 0.0
    %1351 = vmatpush2.msra.mxu0 0.0
    %1352 = vmatprep.subr.mxu0 0.0
    %1353 = vmatpush2.msra.mxu0 0.0
    %1354 = vmatprep.subr.mxu0 0.0
    %1355 = vmatpush2.msra.mxu0 0.0
    %1356 = vmatprep.subr.mxu0 0.0
    %1357 = vmatpush2.msra.mxu0 0.0
    %1358 = vmatprep.subr.mxu0 0.0
    %1359 = vmatpush2.msra.mxu0 0.0
    %1360 = vmatprep.subr.mxu0 0.0
    %1361 = vmatpush2.msra.mxu0 0.0
    %1362 = vmatprep.subr.mxu0 0.0
    %1363 = vmatpush2.msra.mxu0 0.0
    %1364 = vmatprep.subr.mxu0 0.0
    %1365 = vmatpush2.msra.mxu0 0.0
    %1366 = vmatprep.subr.mxu0 0.0
    %1367 = vmatpush2.msra.mxu0 0.0
    %1368 = vmatprep.subr.mxu0 0.0
    %1369 = vmatpush2.msra.mxu0 0.0
    %1370 = vmatprep.subr.mxu0 0.0
    %1371 = vmatpush2.msra.mxu0 0.0
    %1372 = vmatprep.mubr.f32.mxu0 0.0
    %v1373 = vand.u32 %v57, 4294901760
    %1374 = vmatmul.mubr.f32.gmra.mxu0 %v1373
    %v1375 = vpop.f32.mrf.mxu0
    %v1376 = vadd.f32 %v1298, %v1375
    %v1377 = vpop.f32.mrf.mxu0
    %v1378 = vadd.f32 %v1300, %v1377
    %1379 = vdwg.mxu0
    %1380 = vmatprep.subr.mxu0 0.0
    %1381 = vmatpush1.msra.mxu0 0.0
    %1382 = vmatprep.subr.mxu0 0.0
    %1383 = vmatpush1.msra.mxu0 0.0
    %1384 = vmatprep.subr.mxu0 0.0
    %1385 = vmatpush1.msra.mxu0 0.0
    %1386 = vmatprep.subr.mxu0 0.0
    %1387 = vmatpush1.msra.mxu0 0.0
    %1388 = vmatprep.subr.mxu0 0.0
    %1389 = vmatpush1.msra.mxu0 0.0
    %1390 = vmatprep.subr.mxu0 0.0
    %1391 = vmatpush1.msra.mxu0 0.0
    %1392 = vmatprep.subr.mxu0 0.0
    %1393 = vmatpush1.msra.mxu0 0.0
    %1394 = vmatprep.subr.mxu0 0.0
    %1395 = vmatpush1.msra.mxu0 0.0
    %1396 = vmatprep.subr.mxu0 0.0
    %1397 = vmatpush1.msra.mxu0 0.0
    %1398 = vmatprep.subr.mxu0 0.0
    %1399 = vmatpush1.msra.mxu0 0.0
    %1400 = vmatprep.subr.mxu0 0.0
    %1401 = vmatpush1.msra.mxu0 0.0
    %1402 = vmatprep.subr.mxu0 0.0
    %1403 = vmatpush1.msra.mxu0 0.0
    %1404 = vmatprep.subr.mxu0 0.0
    %1405 = vmatpush1.msra.mxu0 0.0
    %1406 = vmatprep.subr.mxu0 0.0
    %1407 = vmatpush1.msra.mxu0 0.0
    %1408 = vmatprep.subr.mxu0 0.0
    %1409 = vmatpush1.msra.mxu0 0.0
    %v1410 = vand.u32 %v44, 4294901760
    %1411 = vmatprep.subr.mxu0 %v1410
    %v1412 = vand.u32 %v43, 4294901760
    %1413 = vmatpush1.msra.mxu0 %v1412
    %1414 = vmatprep.subr.mxu0 0.0
    %1415 = vmatpush2.msra.mxu0 0.0
    %1416 = vmatprep.subr.mxu0 0.0
    %1417 = vmatpush2.msra.mxu0 0.0
    %1418 = vmatprep.subr.mxu0 0.0
    %1419 = vmatpush2.msra.mxu0 0.0
    %1420 = vmatprep.subr.mxu0 0.0
    %1421 = vmatpush2.msra.mxu0 0.0
    %1422 = vmatprep.subr.mxu0 0.0
    %1423 = vmatpush2.msra.mxu0 0.0
    %1424 = vmatprep.subr.mxu0 0.0
    %1425 = vmatpush2.msra.mxu0 0.0
    %1426 = vmatprep.subr.mxu0 0.0
    %1427 = vmatpush2.msra.mxu0 0.0
    %1428 = vmatprep.subr.mxu0 0.0
    %1429 = vmatpush2.msra.mxu0 0.0
    %1430 = vmatprep.subr.mxu0 0.0
    %1431 = vmatpush2.msra.mxu0 0.0
    %1432 = vmatprep.subr.mxu0 0.0
    %1433 = vmatpush2.msra.mxu0 0.0
    %1434 = vmatprep.subr.mxu0 0.0
    %1435 = vmatpush2.msra.mxu0 0.0
    %1436 = vmatprep.subr.mxu0 0.0
    %1437 = vmatpush2.msra.mxu0 0.0
    %1438 = vmatprep.subr.mxu0 0.0
    %1439 = vmatpush2.msra.mxu0 0.0
    %1440 = vmatprep.subr.mxu0 0.0
    %1441 = vmatpush2.msra.mxu0 0.0
    %1442 = vmatprep.subr.mxu0 0.0
    %1443 = vmatpush2.msra.mxu0 0.0
    %1444 = vmatprep.subr.mxu0 0.0
    %1445 = vmatpush2.msra.mxu0 0.0
    %1446 = vmatprep.mubr.f32.mxu0 0.0
    %v1447 = vand.u32 %v57, 4294901760
    %1448 = vmatmul.mubr.f32.gmra.mxu0 %v1447
    %v1449 = vpop.f32.mrf.mxu0
    %v1450 = vadd.f32 %v1376, %v1449
    %v1451 = vpop.f32.mrf.mxu0
    %v1452 = vadd.f32 %v1378, %v1451
    %1453 = vdwg.mxu0
    %1454 = vmatprep.subr.mxu0 0.0
    %1455 = vmatpush1.msra.mxu0 0.0
    %1456 = vmatprep.subr.mxu0 0.0
    %1457 = vmatpush1.msra.mxu0 0.0
    %1458 = vmatprep.subr.mxu0 0.0
    %1459 = vmatpush1.msra.mxu0 0.0
    %1460 = vmatprep.subr.mxu0 0.0
    %1461 = vmatpush1.msra.mxu0 0.0
    %1462 = vmatprep.subr.mxu0 0.0
    %1463 = vmatpush1.msra.mxu0 0.0
    %1464 = vmatprep.subr.mxu0 0.0
    %1465 = vmatpush1.msra.mxu0 0.0
    %1466 = vmatprep.subr.mxu0 0.0
    %1467 = vmatpush1.msra.mxu0 0.0
    %1468 = vmatprep.subr.mxu0 0.0
    %1469 = vmatpush1.msra.mxu0 0.0
    %1470 = vmatprep.subr.mxu0 0.0
    %1471 = vmatpush1.msra.mxu0 0.0
    %1472 = vmatprep.subr.mxu0 0.0
    %1473 = vmatpush1.msra.mxu0 0.0
    %1474 = vmatprep.subr.mxu0 0.0
    %1475 = vmatpush1.msra.mxu0 0.0
    %1476 = vmatprep.subr.mxu0 0.0
    %1477 = vmatpush1.msra.mxu0 0.0
    %1478 = vmatprep.subr.mxu0 0.0
    %1479 = vmatpush1.msra.mxu0 0.0
    %1480 = vmatprep.subr.mxu0 0.0
    %1481 = vmatpush1.msra.mxu0 0.0
    %1482 = vmatprep.subr.mxu0 0.0
    %1483 = vmatpush1.msra.mxu0 0.0
    %v1484 = vand.u32 %v46, 4294901760
    %1485 = vmatprep.subr.mxu0 %v1484
    %v1486 = vand.u32 %v45, 4294901760
    %1487 = vmatpush1.msra.mxu0 %v1486
    %1488 = vmatprep.subr.mxu0 0.0
    %1489 = vmatpush2.msra.mxu0 0.0
    %1490 = vmatprep.subr.mxu0 0.0
    %1491 = vmatpush2.msra.mxu0 0.0
    %1492 = vmatprep.subr.mxu0 0.0
    %1493 = vmatpush2.msra.mxu0 0.0
    %1494 = vmatprep.subr.mxu0 0.0
    %1495 = vmatpush2.msra.mxu0 0.0
    %1496 = vmatprep.subr.mxu0 0.0
    %1497 = vmatpush2.msra.mxu0 0.0
    %1498 = vmatprep.subr.mxu0 0.0
    %1499 = vmatpush2.msra.mxu0 0.0
    %1500 = vmatprep.subr.mxu0 0.0
    %1501 = vmatpush2.msra.mxu0 0.0
    %1502 = vmatprep.subr.mxu0 0.0
    %1503 = vmatpush2.msra.mxu0 0.0
    %1504 = vmatprep.subr.mxu0 0.0
    %1505 = vmatpush2.msra.mxu0 0.0
    %1506 = vmatprep.subr.mxu0 0.0
    %1507 = vmatpush2.msra.mxu0 0.0
    %1508 = vmatprep.subr.mxu0 0.0
    %1509 = vmatpush2.msra.mxu0 0.0
    %1510 = vmatprep.subr.mxu0 0.0
    %1511 = vmatpush2.msra.mxu0 0.0
    %1512 = vmatprep.subr.mxu0 0.0
    %1513 = vmatpush2.msra.mxu0 0.0
    %1514 = vmatprep.subr.mxu0 0.0
    %1515 = vmatpush2.msra.mxu0 0.0
    %1516 = vmatprep.subr.mxu0 0.0
    %1517 = vmatpush2.msra.mxu0 0.0
    %1518 = vmatprep.subr.mxu0 0.0
    %1519 = vmatpush2.msra.mxu0 0.0
    %1520 = vmatprep.mubr.f32.mxu0 0.0
    %v1521 = vand.u32 %v57, 4294901760
    %v1522 = vsub.f32 %v57, %v1521
    %v1523 = vand.u32 %v1522, 4294901760
    %v1524 = vsub.f32 %v1522, %v1523
    %v1525 = vand.u32 %v1524, 4294901760
    %1526 = vmatmul.mubr.f32.gmra.mxu0 %v1525
    %v1527 = vpop.f32.mrf.mxu0
    %v1528 = vadd.f32 0.0, %v1527
    %v1529 = vpop.f32.mrf.mxu0
    %v1530 = vadd.f32 0.0, %v1529
    %1531 = vdwg.mxu0
    %1532 = vmatprep.subr.mxu0 0.0
    %1533 = vmatpush1.msra.mxu0 0.0
    %1534 = vmatprep.subr.mxu0 0.0
    %1535 = vmatpush1.msra.mxu0 0.0
    %1536 = vmatprep.subr.mxu0 0.0
    %1537 = vmatpush1.msra.mxu0 0.0
    %1538 = vmatprep.subr.mxu0 0.0
    %1539 = vmatpush1.msra.mxu0 0.0
    %1540 = vmatprep.subr.mxu0 0.0
    %1541 = vmatpush1.msra.mxu0 0.0
    %1542 = vmatprep.subr.mxu0 0.0
    %1543 = vmatpush1.msra.mxu0 0.0
    %1544 = vmatprep.subr.mxu0 0.0
    %1545 = vmatpush1.msra.mxu0 0.0
    %1546 = vmatprep.subr.mxu0 0.0
    %1547 = vmatpush1.msra.mxu0 0.0
    %1548 = vmatprep.subr.mxu0 0.0
    %1549 = vmatpush1.msra.mxu0 0.0
    %1550 = vmatprep.subr.mxu0 0.0
    %1551 = vmatpush1.msra.mxu0 0.0
    %1552 = vmatprep.subr.mxu0 0.0
    %1553 = vmatpush1.msra.mxu0 0.0
    %1554 = vmatprep.subr.mxu0 0.0
    %1555 = vmatpush1.msra.mxu0 0.0
    %1556 = vmatprep.subr.mxu0 0.0
    %1557 = vmatpush1.msra.mxu0 0.0
    %1558 = vmatprep.subr.mxu0 0.0
    %1559 = vmatpush1.msra.mxu0 0.0
    %1560 = vmatprep.subr.mxu0 0.0
    %1561 = vmatpush1.msra.mxu0 0.0
    %v1562 = vand.u32 %v46, 4294901760
    %v1563 = vsub.f32 %v46, %v1562
    %v1564 = vand.u32 %v1563, 4294901760
    %v1565 = vsub.f32 %v1563, %v1564
    %v1566 = vand.u32 %v1565, 4294901760
    %1567 = vmatprep.subr.mxu0 %v1566
    %v1568 = vand.u32 %v45, 4294901760
    %v1569 = vsub.f32 %v45, %v1568
    %v1570 = vand.u32 %v1569, 4294901760
    %v1571 = vsub.f32 %v1569, %v1570
    %v1572 = vand.u32 %v1571, 4294901760
    %1573 = vmatpush1.msra.mxu0 %v1572
    %1574 = vmatprep.subr.mxu0 0.0
    %1575 = vmatpush2.msra.mxu0 0.0
    %1576 = vmatprep.subr.mxu0 0.0
    %1577 = vmatpush2.msra.mxu0 0.0
    %1578 = vmatprep.subr.mxu0 0.0
    %1579 = vmatpush2.msra.mxu0 0.0
    %1580 = vmatprep.subr.mxu0 0.0
    %1581 = vmatpush2.msra.mxu0 0.0
    %1582 = vmatprep.subr.mxu0 0.0
    %1583 = vmatpush2.msra.mxu0 0.0
    %1584 = vmatprep.subr.mxu0 0.0
    %1585 = vmatpush2.msra.mxu0 0.0
    %1586 = vmatprep.subr.mxu0 0.0
    %1587 = vmatpush2.msra.mxu0 0.0
    %1588 = vmatprep.subr.mxu0 0.0
    %1589 = vmatpush2.msra.mxu0 0.0
    %1590 = vmatprep.subr.mxu0 0.0
    %1591 = vmatpush2.msra.mxu0 0.0
    %1592 = vmatprep.subr.mxu0 0.0
    %1593 = vmatpush2.msra.mxu0 0.0
    %1594 = vmatprep.subr.mxu0 0.0
    %1595 = vmatpush2.msra.mxu0 0.0
    %1596 = vmatprep.subr.mxu0 0.0
    %1597 = vmatpush2.msra.mxu0 0.0
    %1598 = vmatprep.subr.mxu0 0.0
    %1599 = vmatpush2.msra.mxu0 0.0
    %1600 = vmatprep.subr.mxu0 0.0
    %1601 = vmatpush2.msra.mxu0 0.0
    %1602 = vmatprep.subr.mxu0 0.0
    %1603 = vmatpush2.msra.mxu0 0.0
    %1604 = vmatprep.subr.mxu0 0.0
    %1605 = vmatpush2.msra.mxu0 0.0
    %1606 = vmatprep.mubr.f32.mxu0 0.0
    %v1607 = vand.u32 %v57, 4294901760
    %1608 = vmatmul.mubr.f32.gmra.mxu0 %v1607
    %v1609 = vpop.f32.mrf.mxu0
    %v1610 = vadd.f32 %v1528, %v1609
    %v1611 = vpop.f32.mrf.mxu0
    %v1612 = vadd.f32 %v1530, %v1611
    %1613 = vdwg.mxu0
    %1614 = vmatprep.subr.mxu0 0.0
    %1615 = vmatpush1.msra.mxu0 0.0
    %1616 = vmatprep.subr.mxu0 0.0
    %1617 = vmatpush1.msra.mxu0 0.0
    %1618 = vmatprep.subr.mxu0 0.0
    %1619 = vmatpush1.msra.mxu0 0.0
    %1620 = vmatprep.subr.mxu0 0.0
    %1621 = vmatpush1.msra.mxu0 0.0
    %1622 = vmatprep.subr.mxu0 0.0
    %1623 = vmatpush1.msra.mxu0 0.0
    %1624 = vmatprep.subr.mxu0 0.0
    %1625 = vmatpush1.msra.mxu0 0.0
    %1626 = vmatprep.subr.mxu0 0.0
    %1627 = vmatpush1.msra.mxu0 0.0
    %1628 = vmatprep.subr.mxu0 0.0
    %1629 = vmatpush1.msra.mxu0 0.0
    %1630 = vmatprep.subr.mxu0 0.0
    %1631 = vmatpush1.msra.mxu0 0.0
    %1632 = vmatprep.subr.mxu0 0.0
    %1633 = vmatpush1.msra.mxu0 0.0
    %1634 = vmatprep.subr.mxu0 0.0
    %1635 = vmatpush1.msra.mxu0 0.0
    %1636 = vmatprep.subr.mxu0 0.0
    %1637 = vmatpush1.msra.mxu0 0.0
    %1638 = vmatprep.subr.mxu0 0.0
    %1639 = vmatpush1.msra.mxu0 0.0
    %1640 = vmatprep.subr.mxu0 0.0
    %1641 = vmatpush1.msra.mxu0 0.0
    %1642 = vmatprep.subr.mxu0 0.0
    %1643 = vmatpush1.msra.mxu0 0.0
    %v1644 = vand.u32 %v46, 4294901760
    %v1645 = vsub.f32 %v46, %v1644
    %1646 = vmatprep.subr.mxu0 %v1645
    %v1647 = vand.u32 %v45, 4294901760
    %v1648 = vsub.f32 %v45, %v1647
    %1649 = vmatpush1.msra.mxu0 %v1648
    %1650 = vmatprep.subr.mxu0 0.0
    %1651 = vmatpush2.msra.mxu0 0.0
    %1652 = vmatprep.subr.mxu0 0.0
    %1653 = vmatpush2.msra.mxu0 0.0
    %1654 = vmatprep.subr.mxu0 0.0
    %1655 = vmatpush2.msra.mxu0 0.0
    %1656 = vmatprep.subr.mxu0 0.0
    %1657 = vmatpush2.msra.mxu0 0.0
    %1658 = vmatprep.subr.mxu0 0.0
    %1659 = vmatpush2.msra.mxu0 0.0
    %1660 = vmatprep.subr.mxu0 0.0
    %1661 = vmatpush2.msra.mxu0 0.0
    %1662 = vmatprep.subr.mxu0 0.0
    %1663 = vmatpush2.msra.mxu0 0.0
    %1664 = vmatprep.subr.mxu0 0.0
    %1665 = vmatpush2.msra.mxu0 0.0
    %1666 = vmatprep.subr.mxu0 0.0
    %1667 = vmatpush2.msra.mxu0 0.0
    %1668 = vmatprep.subr.mxu0 0.0
    %1669 = vmatpush2.msra.mxu0 0.0
    %1670 = vmatprep.subr.mxu0 0.0
    %1671 = vmatpush2.msra.mxu0 0.0
    %1672 = vmatprep.subr.mxu0 0.0
    %1673 = vmatpush2.msra.mxu0 0.0
    %1674 = vmatprep.subr.mxu0 0.0
    %1675 = vmatpush2.msra.mxu0 0.0
    %1676 = vmatprep.subr.mxu0 0.0
    %1677 = vmatpush2.msra.mxu0 0.0
    %1678 = vmatprep.subr.mxu0 0.0
    %1679 = vmatpush2.msra.mxu0 0.0
    %1680 = vmatprep.subr.mxu0 0.0
    %1681 = vmatpush2.msra.mxu0 0.0
    %1682 = vmatprep.mubr.f32.mxu0 0.0
    %v1683 = vand.u32 %v57, 4294901760
    %v1684 = vsub.f32 %v57, %v1683
    %1685 = vmatmul.mubr.f32.gmra.mxu0 %v1684
    %v1686 = vpop.f32.mrf.mxu0
    %v1687 = vadd.f32 %v1610, %v1686
    %v1688 = vpop.f32.mrf.mxu0
    %v1689 = vadd.f32 %v1612, %v1688
    %1690 = vdwg.mxu0
    %1691 = vmatprep.subr.mxu0 0.0
    %1692 = vmatpush1.msra.mxu0 0.0
    %1693 = vmatprep.subr.mxu0 0.0
    %1694 = vmatpush1.msra.mxu0 0.0
    %1695 = vmatprep.subr.mxu0 0.0
    %1696 = vmatpush1.msra.mxu0 0.0
    %1697 = vmatprep.subr.mxu0 0.0
    %1698 = vmatpush1.msra.mxu0 0.0
    %1699 = vmatprep.subr.mxu0 0.0
    %1700 = vmatpush1.msra.mxu0 0.0
    %1701 = vmatprep.subr.mxu0 0.0
    %1702 = vmatpush1.msra.mxu0 0.0
    %1703 = vmatprep.subr.mxu0 0.0
    %1704 = vmatpush1.msra.mxu0 0.0
    %1705 = vmatprep.subr.mxu0 0.0
    %1706 = vmatpush1.msra.mxu0 0.0
    %1707 = vmatprep.subr.mxu0 0.0
    %1708 = vmatpush1.msra.mxu0 0.0
    %1709 = vmatprep.subr.mxu0 0.0
    %1710 = vmatpush1.msra.mxu0 0.0
    %1711 = vmatprep.subr.mxu0 0.0
    %1712 = vmatpush1.msra.mxu0 0.0
    %1713 = vmatprep.subr.mxu0 0.0
    %1714 = vmatpush1.msra.mxu0 0.0
    %1715 = vmatprep.subr.mxu0 0.0
    %1716 = vmatpush1.msra.mxu0 0.0
    %1717 = vmatprep.subr.mxu0 0.0
    %1718 = vmatpush1.msra.mxu0 0.0
    %1719 = vmatprep.subr.mxu0 0.0
    %1720 = vmatpush1.msra.mxu0 0.0
    %v1721 = vand.u32 %v46, 4294901760
    %1722 = vmatprep.subr.mxu0 %v1721
    %v1723 = vand.u32 %v45, 4294901760
    %1724 = vmatpush1.msra.mxu0 %v1723
    %1725 = vmatprep.subr.mxu0 0.0
    %1726 = vmatpush2.msra.mxu0 0.0
    %1727 = vmatprep.subr.mxu0 0.0
    %1728 = vmatpush2.msra.mxu0 0.0
    %1729 = vmatprep.subr.mxu0 0.0
    %1730 = vmatpush2.msra.mxu0 0.0
    %1731 = vmatprep.subr.mxu0 0.0
    %1732 = vmatpush2.msra.mxu0 0.0
    %1733 = vmatprep.subr.mxu0 0.0
    %1734 = vmatpush2.msra.mxu0 0.0
    %1735 = vmatprep.subr.mxu0 0.0
    %1736 = vmatpush2.msra.mxu0 0.0
    %1737 = vmatprep.subr.mxu0 0.0
    %1738 = vmatpush2.msra.mxu0 0.0
    %1739 = vmatprep.subr.mxu0 0.0
    %1740 = vmatpush2.msra.mxu0 0.0
    %1741 = vmatprep.subr.mxu0 0.0
    %1742 = vmatpush2.msra.mxu0 0.0
    %1743 = vmatprep.subr.mxu0 0.0
    %1744 = vmatpush2.msra.mxu0 0.0
    %1745 = vmatprep.subr.mxu0 0.0
    %1746 = vmatpush2.msra.mxu0 0.0
    %1747 = vmatprep.subr.mxu0 0.0
    %1748 = vmatpush2.msra.mxu0 0.0
    %1749 = vmatprep.subr.mxu0 0.0
    %1750 = vmatpush2.msra.mxu0 0.0
    %1751 = vmatprep.subr.mxu0 0.0
    %1752 = vmatpush2.msra.mxu0 0.0
    %1753 = vmatprep.subr.mxu0 0.0
    %1754 = vmatpush2.msra.mxu0 0.0
    %1755 = vmatprep.subr.mxu0 0.0
    %1756 = vmatpush2.msra.mxu0 0.0
    %1757 = vmatprep.mubr.f32.mxu0 0.0
    %v1758 = vand.u32 %v57, 4294901760
    %v1759 = vsub.f32 %v57, %v1758
    %v1760 = vand.u32 %v1759, 4294901760
    %1761 = vmatmul.mubr.f32.gmra.mxu0 %v1760
    %v1762 = vpop.f32.mrf.mxu0
    %v1763 = vadd.f32 %v1687, %v1762
    %v1764 = vpop.f32.mrf.mxu0
    %v1765 = vadd.f32 %v1689, %v1764
    %1766 = vdwg.mxu0
    %1767 = vmatprep.subr.mxu0 0.0
    %1768 = vmatpush1.msra.mxu0 0.0
    %1769 = vmatprep.subr.mxu0 0.0
    %1770 = vmatpush1.msra.mxu0 0.0
    %1771 = vmatprep.subr.mxu0 0.0
    %1772 = vmatpush1.msra.mxu0 0.0
    %1773 = vmatprep.subr.mxu0 0.0
    %1774 = vmatpush1.msra.mxu0 0.0
    %1775 = vmatprep.subr.mxu0 0.0
    %1776 = vmatpush1.msra.mxu0 0.0
    %1777 = vmatprep.subr.mxu0 0.0
    %1778 = vmatpush1.msra.mxu0 0.0
    %1779 = vmatprep.subr.mxu0 0.0
    %1780 = vmatpush1.msra.mxu0 0.0
    %1781 = vmatprep.subr.mxu0 0.0
    %1782 = vmatpush1.msra.mxu0 0.0
    %1783 = vmatprep.subr.mxu0 0.0
    %1784 = vmatpush1.msra.mxu0 0.0
    %1785 = vmatprep.subr.mxu0 0.0
    %1786 = vmatpush1.msra.mxu0 0.0
    %1787 = vmatprep.subr.mxu0 0.0
    %1788 = vmatpush1.msra.mxu0 0.0
    %1789 = vmatprep.subr.mxu0 0.0
    %1790 = vmatpush1.msra.mxu0 0.0
    %1791 = vmatprep.subr.mxu0 0.0
    %1792 = vmatpush1.msra.mxu0 0.0
    %1793 = vmatprep.subr.mxu0 0.0
    %1794 = vmatpush1.msra.mxu0 0.0
    %1795 = vmatprep.subr.mxu0 0.0
    %1796 = vmatpush1.msra.mxu0 0.0
    %v1797 = vand.u32 %v46, 4294901760
    %v1798 = vsub.f32 %v46, %v1797
    %v1799 = vand.u32 %v1798, 4294901760
    %1800 = vmatprep.subr.mxu0 %v1799
    %v1801 = vand.u32 %v45, 4294901760
    %v1802 = vsub.f32 %v45, %v1801
    %v1803 = vand.u32 %v1802, 4294901760
    %1804 = vmatpush1.msra.mxu0 %v1803
    %1805 = vmatprep.subr.mxu0 0.0
    %1806 = vmatpush2.msra.mxu0 0.0
    %1807 = vmatprep.subr.mxu0 0.0
    %1808 = vmatpush2.msra.mxu0 0.0
    %1809 = vmatprep.subr.mxu0 0.0
    %1810 = vmatpush2.msra.mxu0 0.0
    %1811 = vmatprep.subr.mxu0 0.0
    %1812 = vmatpush2.msra.mxu0 0.0
    %1813 = vmatprep.subr.mxu0 0.0
    %1814 = vmatpush2.msra.mxu0 0.0
    %1815 = vmatprep.subr.mxu0 0.0
    %1816 = vmatpush2.msra.mxu0 0.0
    %1817 = vmatprep.subr.mxu0 0.0
    %1818 = vmatpush2.msra.mxu0 0.0
    %1819 = vmatprep.subr.mxu0 0.0
    %1820 = vmatpush2.msra.mxu0 0.0
    %1821 = vmatprep.subr.mxu0 0.0
    %1822 = vmatpush2.msra.mxu0 0.0
    %1823 = vmatprep.subr.mxu0 0.0
    %1824 = vmatpush2.msra.mxu0 0.0
    %1825 = vmatprep.subr.mxu0 0.0
    %1826 = vmatpush2.msra.mxu0 0.0
    %1827 = vmatprep.subr.mxu0 0.0
    %1828 = vmatpush2.msra.mxu0 0.0
    %1829 = vmatprep.subr.mxu0 0.0
    %1830 = vmatpush2.msra.mxu0 0.0
    %1831 = vmatprep.subr.mxu0 0.0
    %1832 = vmatpush2.msra.mxu0 0.0
    %1833 = vmatprep.subr.mxu0 0.0
    %1834 = vmatpush2.msra.mxu0 0.0
    %1835 = vmatprep.subr.mxu0 0.0
    %1836 = vmatpush2.msra.mxu0 0.0
    %1837 = vmatprep.mubr.f32.mxu0 0.0
    %v1838 = vand.u32 %v57, 4294901760
    %1839 = vmatmul.mubr.f32.gmra.mxu0 %v1838
    %v1840 = vpop.f32.mrf.mxu0
    %v1841 = vadd.f32 %v1763, %v1840
    %v1842 = vpop.f32.mrf.mxu0
    %v1843 = vadd.f32 %v1765, %v1842
    %1844 = vdwg.mxu0
    %1845 = vmatprep.subr.mxu0 0.0
    %1846 = vmatpush1.msra.mxu0 0.0
    %1847 = vmatprep.subr.mxu0 0.0
    %1848 = vmatpush1.msra.mxu0 0.0
    %1849 = vmatprep.subr.mxu0 0.0
    %1850 = vmatpush1.msra.mxu0 0.0
    %1851 = vmatprep.subr.mxu0 0.0
    %1852 = vmatpush1.msra.mxu0 0.0
    %1853 = vmatprep.subr.mxu0 0.0
    %1854 = vmatpush1.msra.mxu0 0.0
    %1855 = vmatprep.subr.mxu0 0.0
    %1856 = vmatpush1.msra.mxu0 0.0
    %1857 = vmatprep.subr.mxu0 0.0
    %1858 = vmatpush1.msra.mxu0 0.0
    %1859 = vmatprep.subr.mxu0 0.0
    %1860 = vmatpush1.msra.mxu0 0.0
    %1861 = vmatprep.subr.mxu0 0.0
    %1862 = vmatpush1.msra.mxu0 0.0
    %1863 = vmatprep.subr.mxu0 0.0
    %1864 = vmatpush1.msra.mxu0 0.0
    %1865 = vmatprep.subr.mxu0 0.0
    %1866 = vmatpush1.msra.mxu0 0.0
    %1867 = vmatprep.subr.mxu0 0.0
    %1868 = vmatpush1.msra.mxu0 0.0
    %1869 = vmatprep.subr.mxu0 0.0
    %1870 = vmatpush1.msra.mxu0 0.0
    %1871 = vmatprep.subr.mxu0 0.0
    %1872 = vmatpush1.msra.mxu0 0.0
    %1873 = vmatprep.subr.mxu0 0.0
    %1874 = vmatpush1.msra.mxu0 0.0
    %v1875 = vand.u32 %v46, 4294901760
    %1876 = vmatprep.subr.mxu0 %v1875
    %v1877 = vand.u32 %v45, 4294901760
    %1878 = vmatpush1.msra.mxu0 %v1877
    %1879 = vmatprep.subr.mxu0 0.0
    %1880 = vmatpush2.msra.mxu0 0.0
    %1881 = vmatprep.subr.mxu0 0.0
    %1882 = vmatpush2.msra.mxu0 0.0
    %1883 = vmatprep.subr.mxu0 0.0
    %1884 = vmatpush2.msra.mxu0 0.0
    %1885 = vmatprep.subr.mxu0 0.0
    %1886 = vmatpush2.msra.mxu0 0.0
    %1887 = vmatprep.subr.mxu0 0.0
    %1888 = vmatpush2.msra.mxu0 0.0
    %1889 = vmatprep.subr.mxu0 0.0
    %1890 = vmatpush2.msra.mxu0 0.0
    %1891 = vmatprep.subr.mxu0 0.0
    %1892 = vmatpush2.msra.mxu0 0.0
    %1893 = vmatprep.subr.mxu0 0.0
    %1894 = vmatpush2.msra.mxu0 0.0
    %1895 = vmatprep.subr.mxu0 0.0
    %1896 = vmatpush2.msra.mxu0 0.0
    %1897 = vmatprep.subr.mxu0 0.0
    %1898 = vmatpush2.msra.mxu0 0.0
    %1899 = vmatprep.subr.mxu0 0.0
    %1900 = vmatpush2.msra.mxu0 0.0
    %1901 = vmatprep.subr.mxu0 0.0
    %1902 = vmatpush2.msra.mxu0 0.0
    %1903 = vmatprep.subr.mxu0 0.0
    %1904 = vmatpush2.msra.mxu0 0.0
    %1905 = vmatprep.subr.mxu0 0.0
    %1906 = vmatpush2.msra.mxu0 0.0
    %1907 = vmatprep.subr.mxu0 0.0
    %1908 = vmatpush2.msra.mxu0 0.0
    %1909 = vmatprep.subr.mxu0 0.0
    %1910 = vmatpush2.msra.mxu0 0.0
    %1911 = vmatprep.mubr.f32.mxu0 0.0
    %v1912 = vand.u32 %v57, 4294901760
    %1913 = vmatmul.mubr.f32.gmra.mxu0 %v1912
    %v1914 = vpop.f32.mrf.mxu0
    %v1915 = vadd.f32 %v1841, %v1914
    %v1916 = vpop.f32.mrf.mxu0
    %v1917 = vadd.f32 %v1843, %v1916
    %1918 = vdwg.mxu0
    %v1920 = vsel %vm55, %v38, 0
    %1922 = vmatprep.subr.mxu0 0.0
    %1923 = vmatpush1.msra.mxu0 0.0
    %1924 = vmatprep.subr.mxu0 0.0
    %1925 = vmatpush1.msra.mxu0 0.0
    %1926 = vmatprep.subr.mxu0 0.0
    %1927 = vmatpush1.msra.mxu0 0.0
    %1928 = vmatprep.subr.mxu0 0.0
    %1929 = vmatpush1.msra.mxu0 0.0
    %1930 = vmatprep.subr.mxu0 0.0
    %1931 = vmatpush1.msra.mxu0 0.0
    %1932 = vmatprep.subr.mxu0 0.0
    %1933 = vmatpush1.msra.mxu0 0.0
    %1934 = vmatprep.subr.mxu0 0.0
    %1935 = vmatpush1.msra.mxu0 0.0
    %1936 = vmatprep.subr.mxu0 0.0
    %1937 = vmatpush1.msra.mxu0 0.0
    %1938 = vmatprep.subr.mxu0 0.0
    %1939 = vmatpush1.msra.mxu0 0.0
    %1940 = vmatprep.subr.mxu0 0.0
    %1941 = vmatpush1.msra.mxu0 0.0
    %1942 = vmatprep.subr.mxu0 0.0
    %1943 = vmatpush1.msra.mxu0 0.0
    %1944 = vmatprep.subr.mxu0 0.0
    %1945 = vmatpush1.msra.mxu0 0.0
    %1946 = vmatprep.subr.mxu0 0.0
    %1947 = vmatpush1.msra.mxu0 0.0
    %1948 = vmatprep.subr.mxu0 0.0
    %1949 = vmatpush1.msra.mxu0 0.0
    %1950 = vmatprep.subr.mxu0 0.0
    %1951 = vmatpush1.msra.mxu0 0.0
    %v1952 = vand.u32 %v48, 4294901760
    %1953 = vmatprep.subr.mxu0 %v1952
    %v1954 = vand.u32 %v47, 4294901760
    %1955 = vmatpush1.msra.mxu0 %v1954
    %1956 = vmatprep.subr.mxu0 0.0
    %1957 = vmatpush2.msra.mxu0 0.0
    %1958 = vmatprep.subr.mxu0 0.0
    %1959 = vmatpush2.msra.mxu0 0.0
    %1960 = vmatprep.subr.mxu0 0.0
    %1961 = vmatpush2.msra.mxu0 0.0
    %1962 = vmatprep.subr.mxu0 0.0
    %1963 = vmatpush2.msra.mxu0 0.0
    %1964 = vmatprep.subr.mxu0 0.0
    %1965 = vmatpush2.msra.mxu0 0.0
    %1966 = vmatprep.subr.mxu0 0.0
    %1967 = vmatpush2.msra.mxu0 0.0
    %1968 = vmatprep.subr.mxu0 0.0
    %1969 = vmatpush2.msra.mxu0 0.0
    %1970 = vmatprep.subr.mxu0 0.0
    %1971 = vmatpush2.msra.mxu0 0.0
    %1972 = vmatprep.subr.mxu0 0.0
    %1973 = vmatpush2.msra.mxu0 0.0
    %1974 = vmatprep.subr.mxu0 0.0
    %1975 = vmatpush2.msra.mxu0 0.0
    %1976 = vmatprep.subr.mxu0 0.0
    %1977 = vmatpush2.msra.mxu0 0.0
    %1978 = vmatprep.subr.mxu0 0.0
    %1979 = vmatpush2.msra.mxu0 0.0
    %1980 = vmatprep.subr.mxu0 0.0
    %1981 = vmatpush2.msra.mxu0 0.0
    %1982 = vmatprep.subr.mxu0 0.0
    %1983 = vmatpush2.msra.mxu0 0.0
    %1984 = vmatprep.subr.mxu0 0.0
    %1985 = vmatpush2.msra.mxu0 0.0
    %1986 = vmatprep.subr.mxu0 0.0
    %1987 = vmatpush2.msra.mxu0 0.0
    %1988 = vmatprep.mubr.f32.mxu0 0.0
    %v1989 = vand.u32 %v1920, 4294901760
    %v1990 = vsub.f32 %v1920, %v1989
    %v1991 = vand.u32 %v1990, 4294901760
    %v1992 = vsub.f32 %v1990, %v1991
    %v1993 = vand.u32 %v1992, 4294901760
    %1994 = vmatmul.mubr.f32.gmra.mxu0 %v1993
    %v1995 = vpop.f32.mrf.mxu0
    %v1996 = vadd.f32 0.0, %v1995
    %v1997 = vpop.f32.mrf.mxu0
    %v1998 = vadd.f32 0.0, %v1997
    %1999 = vdwg.mxu0
    %2000 = vmatprep.subr.mxu0 0.0
    %2001 = vmatpush1.msra.mxu0 0.0
    %2002 = vmatprep.subr.mxu0 0.0
    %2003 = vmatpush1.msra.mxu0 0.0
    %2004 = vmatprep.subr.mxu0 0.0
    %2005 = vmatpush1.msra.mxu0 0.0
    %2006 = vmatprep.subr.mxu0 0.0
    %2007 = vmatpush1.msra.mxu0 0.0
    %2008 = vmatprep.subr.mxu0 0.0
    %2009 = vmatpush1.msra.mxu0 0.0
    %2010 = vmatprep.subr.mxu0 0.0
    %2011 = vmatpush1.msra.mxu0 0.0
    %2012 = vmatprep.subr.mxu0 0.0
    %2013 = vmatpush1.msra.mxu0 0.0
    %2014 = vmatprep.subr.mxu0 0.0
    %2015 = vmatpush1.msra.mxu0 0.0
    %2016 = vmatprep.subr.mxu0 0.0
    %2017 = vmatpush1.msra.mxu0 0.0
    %2018 = vmatprep.subr.mxu0 0.0
    %2019 = vmatpush1.msra.mxu0 0.0
    %2020 = vmatprep.subr.mxu0 0.0
    %2021 = vmatpush1.msra.mxu0 0.0
    %2022 = vmatprep.subr.mxu0 0.0
    %2023 = vmatpush1.msra.mxu0 0.0
    %2024 = vmatprep.subr.mxu0 0.0
    %2025 = vmatpush1.msra.mxu0 0.0
    %2026 = vmatprep.subr.mxu0 0.0
    %2027 = vmatpush1.msra.mxu0 0.0
    %2028 = vmatprep.subr.mxu0 0.0
    %2029 = vmatpush1.msra.mxu0 0.0
    %v2030 = vand.u32 %v48, 4294901760
    %v2031 = vsub.f32 %v48, %v2030
    %v2032 = vand.u32 %v2031, 4294901760
    %v2033 = vsub.f32 %v2031, %v2032
    %v2034 = vand.u32 %v2033, 4294901760
    %2035 = vmatprep.subr.mxu0 %v2034
    %v2036 = vand.u32 %v47, 4294901760
    %v2037 = vsub.f32 %v47, %v2036
    %v2038 = vand.u32 %v2037, 4294901760
    %v2039 = vsub.f32 %v2037, %v2038
    %v2040 = vand.u32 %v2039, 4294901760
    %2041 = vmatpush1.msra.mxu0 %v2040
    %2042 = vmatprep.subr.mxu0 0.0
    %2043 = vmatpush2.msra.mxu0 0.0
    %2044 = vmatprep.subr.mxu0 0.0
    %2045 = vmatpush2.msra.mxu0 0.0
    %2046 = vmatprep.subr.mxu0 0.0
    %2047 = vmatpush2.msra.mxu0 0.0
    %2048 = vmatprep.subr.mxu0 0.0
    %2049 = vmatpush2.msra.mxu0 0.0
    %2050 = vmatprep.subr.mxu0 0.0
    %2051 = vmatpush2.msra.mxu0 0.0
    %2052 = vmatprep.subr.mxu0 0.0
    %2053 = vmatpush2.msra.mxu0 0.0
    %2054 = vmatprep.subr.mxu0 0.0
    %2055 = vmatpush2.msra.mxu0 0.0
    %2056 = vmatprep.subr.mxu0 0.0
    %2057 = vmatpush2.msra.mxu0 0.0
    %2058 = vmatprep.subr.mxu0 0.0
    %2059 = vmatpush2.msra.mxu0 0.0
    %2060 = vmatprep.subr.mxu0 0.0
    %2061 = vmatpush2.msra.mxu0 0.0
    %2062 = vmatprep.subr.mxu0 0.0
    %2063 = vmatpush2.msra.mxu0 0.0
    %2064 = vmatprep.subr.mxu0 0.0
    %2065 = vmatpush2.msra.mxu0 0.0
    %2066 = vmatprep.subr.mxu0 0.0
    %2067 = vmatpush2.msra.mxu0 0.0
    %2068 = vmatprep.subr.mxu0 0.0
    %2069 = vmatpush2.msra.mxu0 0.0
    %2070 = vmatprep.subr.mxu0 0.0
    %2071 = vmatpush2.msra.mxu0 0.0
    %2072 = vmatprep.subr.mxu0 0.0
    %2073 = vmatpush2.msra.mxu0 0.0
    %2074 = vmatprep.mubr.f32.mxu0 0.0
    %v2075 = vand.u32 %v1920, 4294901760
    %2076 = vmatmul.mubr.f32.gmra.mxu0 %v2075
    %v2077 = vpop.f32.mrf.mxu0
    %v2078 = vadd.f32 %v1996, %v2077
    %v2079 = vpop.f32.mrf.mxu0
    %v2080 = vadd.f32 %v1998, %v2079
    %2081 = vdwg.mxu0
    %2082 = vmatprep.subr.mxu0 0.0
    %2083 = vmatpush1.msra.mxu0 0.0
    %2084 = vmatprep.subr.mxu0 0.0
    %2085 = vmatpush1.msra.mxu0 0.0
    %2086 = vmatprep.subr.mxu0 0.0
    %2087 = vmatpush1.msra.mxu0 0.0
    %2088 = vmatprep.subr.mxu0 0.0
    %2089 = vmatpush1.msra.mxu0 0.0
    %2090 = vmatprep.subr.mxu0 0.0
    %2091 = vmatpush1.msra.mxu0 0.0
    %2092 = vmatprep.subr.mxu0 0.0
    %2093 = vmatpush1.msra.mxu0 0.0
    %2094 = vmatprep.subr.mxu0 0.0
    %2095 = vmatpush1.msra.mxu0 0.0
    %2096 = vmatprep.subr.mxu0 0.0
    %2097 = vmatpush1.msra.mxu0 0.0
    %2098 = vmatprep.subr.mxu0 0.0
    %2099 = vmatpush1.msra.mxu0 0.0
    %2100 = vmatprep.subr.mxu0 0.0
    %2101 = vmatpush1.msra.mxu0 0.0
    %2102 = vmatprep.subr.mxu0 0.0
    %2103 = vmatpush1.msra.mxu0 0.0
    %2104 = vmatprep.subr.mxu0 0.0
    %2105 = vmatpush1.msra.mxu0 0.0
    %2106 = vmatprep.subr.mxu0 0.0
    %2107 = vmatpush1.msra.mxu0 0.0
    %2108 = vmatprep.subr.mxu0 0.0
    %2109 = vmatpush1.msra.mxu0 0.0
    %2110 = vmatprep.subr.mxu0 0.0
    %2111 = vmatpush1.msra.mxu0 0.0
    %v2112 = vand.u32 %v48, 4294901760
    %v2113 = vsub.f32 %v48, %v2112
    %2114 = vmatprep.subr.mxu0 %v2113
    %v2115 = vand.u32 %v47, 4294901760
    %v2116 = vsub.f32 %v47, %v2115
    %2117 = vmatpush1.msra.mxu0 %v2116
    %2118 = vmatprep.subr.mxu0 0.0
    %2119 = vmatpush2.msra.mxu0 0.0
    %2120 = vmatprep.subr.mxu0 0.0
    %2121 = vmatpush2.msra.mxu0 0.0
    %2122 = vmatprep.subr.mxu0 0.0
    %2123 = vmatpush2.msra.mxu0 0.0
    %2124 = vmatprep.subr.mxu0 0.0
    %2125 = vmatpush2.msra.mxu0 0.0
    %2126 = vmatprep.subr.mxu0 0.0
    %2127 = vmatpush2.msra.mxu0 0.0
    %2128 = vmatprep.subr.mxu0 0.0
    %2129 = vmatpush2.msra.mxu0 0.0
    %2130 = vmatprep.subr.mxu0 0.0
    %2131 = vmatpush2.msra.mxu0 0.0
    %2132 = vmatprep.subr.mxu0 0.0
    %2133 = vmatpush2.msra.mxu0 0.0
    %2134 = vmatprep.subr.mxu0 0.0
    %2135 = vmatpush2.msra.mxu0 0.0
    %2136 = vmatprep.subr.mxu0 0.0
    %2137 = vmatpush2.msra.mxu0 0.0
    %2138 = vmatprep.subr.mxu0 0.0
    %2139 = vmatpush2.msra.mxu0 0.0
    %2140 = vmatprep.subr.mxu0 0.0
    %2141 = vmatpush2.msra.mxu0 0.0
    %2142 = vmatprep.subr.mxu0 0.0
    %2143 = vmatpush2.msra.mxu0 0.0
    %2144 = vmatprep.subr.mxu0 0.0
    %2145 = vmatpush2.msra.mxu0 0.0
    %2146 = vmatprep.subr.mxu0 0.0
    %2147 = vmatpush2.msra.mxu0 0.0
    %2148 = vmatprep.subr.mxu0 0.0
    %2149 = vmatpush2.msra.mxu0 0.0
    %2150 = vmatprep.mubr.f32.mxu0 0.0
    %v2151 = vand.u32 %v1920, 4294901760
    %v2152 = vsub.f32 %v1920, %v2151
    %2153 = vmatmul.mubr.f32.gmra.mxu0 %v2152
    %v2154 = vpop.f32.mrf.mxu0
    %v2155 = vadd.f32 %v2078, %v2154
    %v2156 = vpop.f32.mrf.mxu0
    %v2157 = vadd.f32 %v2080, %v2156
    %2158 = vdwg.mxu0
    %2159 = vmatprep.subr.mxu0 0.0
    %2160 = vmatpush1.msra.mxu0 0.0
    %2161 = vmatprep.subr.mxu0 0.0
    %2162 = vmatpush1.msra.mxu0 0.0
    %2163 = vmatprep.subr.mxu0 0.0
    %2164 = vmatpush1.msra.mxu0 0.0
    %2165 = vmatprep.subr.mxu0 0.0
    %2166 = vmatpush1.msra.mxu0 0.0
    %2167 = vmatprep.subr.mxu0 0.0
    %2168 = vmatpush1.msra.mxu0 0.0
    %2169 = vmatprep.subr.mxu0 0.0
    %2170 = vmatpush1.msra.mxu0 0.0
    %2171 = vmatprep.subr.mxu0 0.0
    %2172 = vmatpush1.msra.mxu0 0.0
    %2173 = vmatprep.subr.mxu0 0.0
    %2174 = vmatpush1.msra.mxu0 0.0
    %2175 = vmatprep.subr.mxu0 0.0
    %2176 = vmatpush1.msra.mxu0 0.0
    %2177 = vmatprep.subr.mxu0 0.0
    %2178 = vmatpush1.msra.mxu0 0.0
    %2179 = vmatprep.subr.mxu0 0.0
    %2180 = vmatpush1.msra.mxu0 0.0
    %2181 = vmatprep.subr.mxu0 0.0
    %2182 = vmatpush1.msra.mxu0 0.0
    %2183 = vmatprep.subr.mxu0 0.0
    %2184 = vmatpush1.msra.mxu0 0.0
    %2185 = vmatprep.subr.mxu0 0.0
    %2186 = vmatpush1.msra.mxu0 0.0
    %2187 = vmatprep.subr.mxu0 0.0
    %2188 = vmatpush1.msra.mxu0 0.0
    %v2189 = vand.u32 %v48, 4294901760
    %2190 = vmatprep.subr.mxu0 %v2189
    %v2191 = vand.u32 %v47, 4294901760
    %2192 = vmatpush1.msra.mxu0 %v2191
    %2193 = vmatprep.subr.mxu0 0.0
    %2194 = vmatpush2.msra.mxu0 0.0
    %2195 = vmatprep.subr.mxu0 0.0
    %2196 = vmatpush2.msra.mxu0 0.0
    %2197 = vmatprep.subr.mxu0 0.0
    %2198 = vmatpush2.msra.mxu0 0.0
    %2199 = vmatprep.subr.mxu0 0.0
    %2200 = vmatpush2.msra.mxu0 0.0
    %2201 = vmatprep.subr.mxu0 0.0
    %2202 = vmatpush2.msra.mxu0 0.0
    %2203 = vmatprep.subr.mxu0 0.0
    %2204 = vmatpush2.msra.mxu0 0.0
    %2205 = vmatprep.subr.mxu0 0.0
    %2206 = vmatpush2.msra.mxu0 0.0
    %2207 = vmatprep.subr.mxu0 0.0
    %2208 = vmatpush2.msra.mxu0 0.0
    %2209 = vmatprep.subr.mxu0 0.0
    %2210 = vmatpush2.msra.mxu0 0.0
    %2211 = vmatprep.subr.mxu0 0.0
    %2212 = vmatpush2.msra.mxu0 0.0
    %2213 = vmatprep.subr.mxu0 0.0
    %2214 = vmatpush2.msra.mxu0 0.0
    %2215 = vmatprep.subr.mxu0 0.0
    %2216 = vmatpush2.msra.mxu0 0.0
    %2217 = vmatprep.subr.mxu0 0.0
    %2218 = vmatpush2.msra.mxu0 0.0
    %2219 = vmatprep.subr.mxu0 0.0
    %2220 = vmatpush2.msra.mxu0 0.0
    %2221 = vmatprep.subr.mxu0 0.0
    %2222 = vmatpush2.msra.mxu0 0.0
    %2223 = vmatprep.subr.mxu0 0.0
    %2224 = vmatpush2.msra.mxu0 0.0
    %2225 = vmatprep.mubr.f32.mxu0 0.0
    %v2226 = vand.u32 %v1920, 4294901760
    %v2227 = vsub.f32 %v1920, %v2226
    %v2228 = vand.u32 %v2227, 4294901760
    %2229 = vmatmul.mubr.f32.gmra.mxu0 %v2228
    %v2230 = vpop.f32.mrf.mxu0
    %v2231 = vadd.f32 %v2155, %v2230
    %v2232 = vpop.f32.mrf.mxu0
    %v2233 = vadd.f32 %v2157, %v2232
    %2234 = vdwg.mxu0
    %2235 = vmatprep.subr.mxu0 0.0
    %2236 = vmatpush1.msra.mxu0 0.0
    %2237 = vmatprep.subr.mxu0 0.0
    %2238 = vmatpush1.msra.mxu0 0.0
    %2239 = vmatprep.subr.mxu0 0.0
    %2240 = vmatpush1.msra.mxu0 0.0
    %2241 = vmatprep.subr.mxu0 0.0
    %2242 = vmatpush1.msra.mxu0 0.0
    %2243 = vmatprep.subr.mxu0 0.0
    %2244 = vmatpush1.msra.mxu0 0.0
    %2245 = vmatprep.subr.mxu0 0.0
    %2246 = vmatpush1.msra.mxu0 0.0
    %2247 = vmatprep.subr.mxu0 0.0
    %2248 = vmatpush1.msra.mxu0 0.0
    %2249 = vmatprep.subr.mxu0 0.0
    %2250 = vmatpush1.msra.mxu0 0.0
    %2251 = vmatprep.subr.mxu0 0.0
    %2252 = vmatpush1.msra.mxu0 0.0
    %2253 = vmatprep.subr.mxu0 0.0
    %2254 = vmatpush1.msra.mxu0 0.0
    %2255 = vmatprep.subr.mxu0 0.0
    %2256 = vmatpush1.msra.mxu0 0.0
    %2257 = vmatprep.subr.mxu0 0.0
    %2258 = vmatpush1.msra.mxu0 0.0
    %2259 = vmatprep.subr.mxu0 0.0
    %2260 = vmatpush1.msra.mxu0 0.0
    %2261 = vmatprep.subr.mxu0 0.0
    %2262 = vmatpush1.msra.mxu0 0.0
    %2263 = vmatprep.subr.mxu0 0.0
    %2264 = vmatpush1.msra.mxu0 0.0
    %v2265 = vand.u32 %v48, 4294901760
    %v2266 = vsub.f32 %v48, %v2265
    %v2267 = vand.u32 %v2266, 4294901760
    %2268 = vmatprep.subr.mxu0 %v2267
    %v2269 = vand.u32 %v47, 4294901760
    %v2270 = vsub.f32 %v47, %v2269
    %v2271 = vand.u32 %v2270, 4294901760
    %2272 = vmatpush1.msra.mxu0 %v2271
    %2273 = vmatprep.subr.mxu0 0.0
    %2274 = vmatpush2.msra.mxu0 0.0
    %2275 = vmatprep.subr.mxu0 0.0
    %2276 = vmatpush2.msra.mxu0 0.0
    %2277 = vmatprep.subr.mxu0 0.0
    %2278 = vmatpush2.msra.mxu0 0.0
    %2279 = vmatprep.subr.mxu0 0.0
    %2280 = vmatpush2.msra.mxu0 0.0
    %2281 = vmatprep.subr.mxu0 0.0
    %2282 = vmatpush2.msra.mxu0 0.0
    %2283 = vmatprep.subr.mxu0 0.0
    %2284 = vmatpush2.msra.mxu0 0.0
    %2285 = vmatprep.subr.mxu0 0.0
    %2286 = vmatpush2.msra.mxu0 0.0
    %2287 = vmatprep.subr.mxu0 0.0
    %2288 = vmatpush2.msra.mxu0 0.0
    %2289 = vmatprep.subr.mxu0 0.0
    %2290 = vmatpush2.msra.mxu0 0.0
    %2291 = vmatprep.subr.mxu0 0.0
    %2292 = vmatpush2.msra.mxu0 0.0
    %2293 = vmatprep.subr.mxu0 0.0
    %2294 = vmatpush2.msra.mxu0 0.0
    %2295 = vmatprep.subr.mxu0 0.0
    %2296 = vmatpush2.msra.mxu0 0.0
    %2297 = vmatprep.subr.mxu0 0.0
    %2298 = vmatpush2.msra.mxu0 0.0
    %2299 = vmatprep.subr.mxu0 0.0
    %2300 = vmatpush2.msra.mxu0 0.0
    %2301 = vmatprep.subr.mxu0 0.0
    %2302 = vmatpush2.msra.mxu0 0.0
    %2303 = vmatprep.subr.mxu0 0.0
    %2304 = vmatpush2.msra.mxu0 0.0
    %2305 = vmatprep.mubr.f32.mxu0 0.0
    %v2306 = vand.u32 %v1920, 4294901760
    %2307 = vmatmul.mubr.f32.gmra.mxu0 %v2306
    %v2308 = vpop.f32.mrf.mxu0
    %v2309 = vadd.f32 %v2231, %v2308
    %v2310 = vpop.f32.mrf.mxu0
    %v2311 = vadd.f32 %v2233, %v2310
    %2312 = vdwg.mxu0
    %2313 = vmatprep.subr.mxu0 0.0
    %2314 = vmatpush1.msra.mxu0 0.0
    %2315 = vmatprep.subr.mxu0 0.0
    %2316 = vmatpush1.msra.mxu0 0.0
    %2317 = vmatprep.subr.mxu0 0.0
    %2318 = vmatpush1.msra.mxu0 0.0
    %2319 = vmatprep.subr.mxu0 0.0
    %2320 = vmatpush1.msra.mxu0 0.0
    %2321 = vmatprep.subr.mxu0 0.0
    %2322 = vmatpush1.msra.mxu0 0.0
    %2323 = vmatprep.subr.mxu0 0.0
    %2324 = vmatpush1.msra.mxu0 0.0
    %2325 = vmatprep.subr.mxu0 0.0
    %2326 = vmatpush1.msra.mxu0 0.0
    %2327 = vmatprep.subr.mxu0 0.0
    %2328 = vmatpush1.msra.mxu0 0.0
    %2329 = vmatprep.subr.mxu0 0.0
    %2330 = vmatpush1.msra.mxu0 0.0
    %2331 = vmatprep.subr.mxu0 0.0
    %2332 = vmatpush1.msra.mxu0 0.0
    %2333 = vmatprep.subr.mxu0 0.0
    %2334 = vmatpush1.msra.mxu0 0.0
    %2335 = vmatprep.subr.mxu0 0.0
    %2336 = vmatpush1.msra.mxu0 0.0
    %2337 = vmatprep.subr.mxu0 0.0
    %2338 = vmatpush1.msra.mxu0 0.0
    %2339 = vmatprep.subr.mxu0 0.0
    %2340 = vmatpush1.msra.mxu0 0.0
    %2341 = vmatprep.subr.mxu0 0.0
    %2342 = vmatpush1.msra.mxu0 0.0
    %v2343 = vand.u32 %v48, 4294901760
    %2344 = vmatprep.subr.mxu0 %v2343
    %v2345 = vand.u32 %v47, 4294901760
    %2346 = vmatpush1.msra.mxu0 %v2345
    %2347 = vmatprep.subr.mxu0 0.0
    %2348 = vmatpush2.msra.mxu0 0.0
    %2349 = vmatprep.subr.mxu0 0.0
    %2350 = vmatpush2.msra.mxu0 0.0
    %2351 = vmatprep.subr.mxu0 0.0
    %2352 = vmatpush2.msra.mxu0 0.0
    %2353 = vmatprep.subr.mxu0 0.0
    %2354 = vmatpush2.msra.mxu0 0.0
    %2355 = vmatprep.subr.mxu0 0.0
    %2356 = vmatpush2.msra.mxu0 0.0
    %2357 = vmatprep.subr.mxu0 0.0
    %2358 = vmatpush2.msra.mxu0 0.0
    %2359 = vmatprep.subr.mxu0 0.0
    %2360 = vmatpush2.msra.mxu0 0.0
    %2361 = vmatprep.subr.mxu0 0.0
    %2362 = vmatpush2.msra.mxu0 0.0
    %2363 = vmatprep.subr.mxu0 0.0
    %2364 = vmatpush2.msra.mxu0 0.0
    %2365 = vmatprep.subr.mxu0 0.0
    %2366 = vmatpush2.msra.mxu0 0.0
    %2367 = vmatprep.subr.mxu0 0.0
    %2368 = vmatpush2.msra.mxu0 0.0
    %2369 = vmatprep.subr.mxu0 0.0
    %2370 = vmatpush2.msra.mxu0 0.0
    %2371 = vmatprep.subr.mxu0 0.0
    %2372 = vmatpush2.msra.mxu0 0.0
    %2373 = vmatprep.subr.mxu0 0.0
    %2374 = vmatpush2.msra.mxu0 0.0
    %2375 = vmatprep.subr.mxu0 0.0
    %2376 = vmatpush2.msra.mxu0 0.0
    %2377 = vmatprep.subr.mxu0 0.0
    %2378 = vmatpush2.msra.mxu0 0.0
    %2379 = vmatprep.mubr.f32.mxu0 0.0
    %v2380 = vand.u32 %v1920, 4294901760
    %2381 = vmatmul.mubr.f32.gmra.mxu0 %v2380
    %v2382 = vpop.f32.mrf.mxu0
    %v2383 = vadd.f32 %v2309, %v2382
    %v2384 = vpop.f32.mrf.mxu0
    %v2385 = vadd.f32 %v2311, %v2384
    %2386 = vdwg.mxu0
    %2387 = vmatprep.subr.mxu0 0.0
    %2388 = vmatpush1.msra.mxu0 0.0
    %2389 = vmatprep.subr.mxu0 0.0
    %2390 = vmatpush1.msra.mxu0 0.0
    %2391 = vmatprep.subr.mxu0 0.0
    %2392 = vmatpush1.msra.mxu0 0.0
    %2393 = vmatprep.subr.mxu0 0.0
    %2394 = vmatpush1.msra.mxu0 0.0
    %2395 = vmatprep.subr.mxu0 0.0
    %2396 = vmatpush1.msra.mxu0 0.0
    %2397 = vmatprep.subr.mxu0 0.0
    %2398 = vmatpush1.msra.mxu0 0.0
    %2399 = vmatprep.subr.mxu0 0.0
    %2400 = vmatpush1.msra.mxu0 0.0
    %2401 = vmatprep.subr.mxu0 0.0
    %2402 = vmatpush1.msra.mxu0 0.0
    %2403 = vmatprep.subr.mxu0 0.0
    %2404 = vmatpush1.msra.mxu0 0.0
    %2405 = vmatprep.subr.mxu0 0.0
    %2406 = vmatpush1.msra.mxu0 0.0
    %2407 = vmatprep.subr.mxu0 0.0
    %2408 = vmatpush1.msra.mxu0 0.0
    %2409 = vmatprep.subr.mxu0 0.0
    %2410 = vmatpush1.msra.mxu0 0.0
    %2411 = vmatprep.subr.mxu0 0.0
    %2412 = vmatpush1.msra.mxu0 0.0
    %2413 = vmatprep.subr.mxu0 0.0
    %2414 = vmatpush1.msra.mxu0 0.0
    %2415 = vmatprep.subr.mxu0 0.0
    %2416 = vmatpush1.msra.mxu0 0.0
    %v2417 = vand.u32 %v50, 4294901760
    %2418 = vmatprep.subr.mxu0 %v2417
    %v2419 = vand.u32 %v49, 4294901760
    %2420 = vmatpush1.msra.mxu0 %v2419
    %2421 = vmatprep.subr.mxu0 0.0
    %2422 = vmatpush2.msra.mxu0 0.0
    %2423 = vmatprep.subr.mxu0 0.0
    %2424 = vmatpush2.msra.mxu0 0.0
    %2425 = vmatprep.subr.mxu0 0.0
    %2426 = vmatpush2.msra.mxu0 0.0
    %2427 = vmatprep.subr.mxu0 0.0
    %2428 = vmatpush2.msra.mxu0 0.0
    %2429 = vmatprep.subr.mxu0 0.0
    %2430 = vmatpush2.msra.mxu0 0.0
    %2431 = vmatprep.subr.mxu0 0.0
    %2432 = vmatpush2.msra.mxu0 0.0
    %2433 = vmatprep.subr.mxu0 0.0
    %2434 = vmatpush2.msra.mxu0 0.0
    %2435 = vmatprep.subr.mxu0 0.0
    %2436 = vmatpush2.msra.mxu0 0.0
    %2437 = vmatprep.subr.mxu0 0.0
    %2438 = vmatpush2.msra.mxu0 0.0
    %2439 = vmatprep.subr.mxu0 0.0
    %2440 = vmatpush2.msra.mxu0 0.0
    %2441 = vmatprep.subr.mxu0 0.0
    %2442 = vmatpush2.msra.mxu0 0.0
    %2443 = vmatprep.subr.mxu0 0.0
    %2444 = vmatpush2.msra.mxu0 0.0
    %2445 = vmatprep.subr.mxu0 0.0
    %2446 = vmatpush2.msra.mxu0 0.0
    %2447 = vmatprep.subr.mxu0 0.0
    %2448 = vmatpush2.msra.mxu0 0.0
    %2449 = vmatprep.subr.mxu0 0.0
    %2450 = vmatpush2.msra.mxu0 0.0
    %2451 = vmatprep.subr.mxu0 0.0
    %2452 = vmatpush2.msra.mxu0 0.0
    %2453 = vmatprep.mubr.f32.mxu0 0.0
    %v2454 = vand.u32 %v1920, 4294901760
    %v2455 = vsub.f32 %v1920, %v2454
    %v2456 = vand.u32 %v2455, 4294901760
    %v2457 = vsub.f32 %v2455, %v2456
    %v2458 = vand.u32 %v2457, 4294901760
    %2459 = vmatmul.mubr.f32.gmra.mxu0 %v2458
    %v2460 = vpop.f32.mrf.mxu0
    %v2461 = vadd.f32 0.0, %v2460
    %v2462 = vpop.f32.mrf.mxu0
    %v2463 = vadd.f32 0.0, %v2462
    %2464 = vdwg.mxu0
    %2465 = vmatprep.subr.mxu0 0.0
    %2466 = vmatpush1.msra.mxu0 0.0
    %2467 = vmatprep.subr.mxu0 0.0
    %2468 = vmatpush1.msra.mxu0 0.0
    %2469 = vmatprep.subr.mxu0 0.0
    %2470 = vmatpush1.msra.mxu0 0.0
    %2471 = vmatprep.subr.mxu0 0.0
    %2472 = vmatpush1.msra.mxu0 0.0
    %2473 = vmatprep.subr.mxu0 0.0
    %2474 = vmatpush1.msra.mxu0 0.0
    %2475 = vmatprep.subr.mxu0 0.0
    %2476 = vmatpush1.msra.mxu0 0.0
    %2477 = vmatprep.subr.mxu0 0.0
    %2478 = vmatpush1.msra.mxu0 0.0
    %2479 = vmatprep.subr.mxu0 0.0
    %2480 = vmatpush1.msra.mxu0 0.0
    %2481 = vmatprep.subr.mxu0 0.0
    %2482 = vmatpush1.msra.mxu0 0.0
    %2483 = vmatprep.subr.mxu0 0.0
    %2484 = vmatpush1.msra.mxu0 0.0
    %2485 = vmatprep.subr.mxu0 0.0
    %2486 = vmatpush1.msra.mxu0 0.0
    %2487 = vmatprep.subr.mxu0 0.0
    %2488 = vmatpush1.msra.mxu0 0.0
    %2489 = vmatprep.subr.mxu0 0.0
    %2490 = vmatpush1.msra.mxu0 0.0
    %2491 = vmatprep.subr.mxu0 0.0
    %2492 = vmatpush1.msra.mxu0 0.0
    %2493 = vmatprep.subr.mxu0 0.0
    %2494 = vmatpush1.msra.mxu0 0.0
    %v2495 = vand.u32 %v50, 4294901760
    %v2496 = vsub.f32 %v50, %v2495
    %v2497 = vand.u32 %v2496, 4294901760
    %v2498 = vsub.f32 %v2496, %v2497
    %v2499 = vand.u32 %v2498, 4294901760
    %2500 = vmatprep.subr.mxu0 %v2499
    %v2501 = vand.u32 %v49, 4294901760
    %v2502 = vsub.f32 %v49, %v2501
    %v2503 = vand.u32 %v2502, 4294901760
    %v2504 = vsub.f32 %v2502, %v2503
    %v2505 = vand.u32 %v2504, 4294901760
    %2506 = vmatpush1.msra.mxu0 %v2505
    %2507 = vmatprep.subr.mxu0 0.0
    %2508 = vmatpush2.msra.mxu0 0.0
    %2509 = vmatprep.subr.mxu0 0.0
    %2510 = vmatpush2.msra.mxu0 0.0
    %2511 = vmatprep.subr.mxu0 0.0
    %2512 = vmatpush2.msra.mxu0 0.0
    %2513 = vmatprep.subr.mxu0 0.0
    %2514 = vmatpush2.msra.mxu0 0.0
    %2515 = vmatprep.subr.mxu0 0.0
    %2516 = vmatpush2.msra.mxu0 0.0
    %2517 = vmatprep.subr.mxu0 0.0
    %2518 = vmatpush2.msra.mxu0 0.0
    %2519 = vmatprep.subr.mxu0 0.0
    %2520 = vmatpush2.msra.mxu0 0.0
    %2521 = vmatprep.subr.mxu0 0.0
    %2522 = vmatpush2.msra.mxu0 0.0
    %2523 = vmatprep.subr.mxu0 0.0
    %2524 = vmatpush2.msra.mxu0 0.0
    %2525 = vmatprep.subr.mxu0 0.0
    %2526 = vmatpush2.msra.mxu0 0.0
    %2527 = vmatprep.subr.mxu0 0.0
    %2528 = vmatpush2.msra.mxu0 0.0
    %2529 = vmatprep.subr.mxu0 0.0
    %2530 = vmatpush2.msra.mxu0 0.0
    %2531 = vmatprep.subr.mxu0 0.0
    %2532 = vmatpush2.msra.mxu0 0.0
    %2533 = vmatprep.subr.mxu0 0.0
    %2534 = vmatpush2.msra.mxu0 0.0
    %2535 = vmatprep.subr.mxu0 0.0
    %2536 = vmatpush2.msra.mxu0 0.0
    %2537 = vmatprep.subr.mxu0 0.0
    %2538 = vmatpush2.msra.mxu0 0.0
    %2539 = vmatprep.mubr.f32.mxu0 0.0
    %v2540 = vand.u32 %v1920, 4294901760
    %2541 = vmatmul.mubr.f32.gmra.mxu0 %v2540
    %v2542 = vpop.f32.mrf.mxu0
    %v2543 = vadd.f32 %v2461, %v2542
    %v2544 = vpop.f32.mrf.mxu0
    %v2545 = vadd.f32 %v2463, %v2544
    %2546 = vdwg.mxu0
    %2547 = vmatprep.subr.mxu0 0.0
    %2548 = vmatpush1.msra.mxu0 0.0
    %2549 = vmatprep.subr.mxu0 0.0
    %2550 = vmatpush1.msra.mxu0 0.0
    %2551 = vmatprep.subr.mxu0 0.0
    %2552 = vmatpush1.msra.mxu0 0.0
    %2553 = vmatprep.subr.mxu0 0.0
    %2554 = vmatpush1.msra.mxu0 0.0
    %2555 = vmatprep.subr.mxu0 0.0
    %2556 = vmatpush1.msra.mxu0 0.0
    %2557 = vmatprep.subr.mxu0 0.0
    %2558 = vmatpush1.msra.mxu0 0.0
    %2559 = vmatprep.subr.mxu0 0.0
    %2560 = vmatpush1.msra.mxu0 0.0
    %2561 = vmatprep.subr.mxu0 0.0
    %2562 = vmatpush1.msra.mxu0 0.0
    %2563 = vmatprep.subr.mxu0 0.0
    %2564 = vmatpush1.msra.mxu0 0.0
    %2565 = vmatprep.subr.mxu0 0.0
    %2566 = vmatpush1.msra.mxu0 0.0
    %2567 = vmatprep.subr.mxu0 0.0
    %2568 = vmatpush1.msra.mxu0 0.0
    %2569 = vmatprep.subr.mxu0 0.0
    %2570 = vmatpush1.msra.mxu0 0.0
    %2571 = vmatprep.subr.mxu0 0.0
    %2572 = vmatpush1.msra.mxu0 0.0
    %2573 = vmatprep.subr.mxu0 0.0
    %2574 = vmatpush1.msra.mxu0 0.0
    %2575 = vmatprep.subr.mxu0 0.0
    %2576 = vmatpush1.msra.mxu0 0.0
    %v2577 = vand.u32 %v50, 4294901760
    %v2578 = vsub.f32 %v50, %v2577
    %2579 = vmatprep.subr.mxu0 %v2578
    %v2580 = vand.u32 %v49, 4294901760
    %v2581 = vsub.f32 %v49, %v2580
    %2582 = vmatpush1.msra.mxu0 %v2581
    %2583 = vmatprep.subr.mxu0 0.0
    %2584 = vmatpush2.msra.mxu0 0.0
    %2585 = vmatprep.subr.mxu0 0.0
    %2586 = vmatpush2.msra.mxu0 0.0
    %2587 = vmatprep.subr.mxu0 0.0
    %2588 = vmatpush2.msra.mxu0 0.0
    %2589 = vmatprep.subr.mxu0 0.0
    %2590 = vmatpush2.msra.mxu0 0.0
    %2591 = vmatprep.subr.mxu0 0.0
    %2592 = vmatpush2.msra.mxu0 0.0
    %2593 = vmatprep.subr.mxu0 0.0
    %2594 = vmatpush2.msra.mxu0 0.0
    %2595 = vmatprep.subr.mxu0 0.0
    %2596 = vmatpush2.msra.mxu0 0.0
    %2597 = vmatprep.subr.mxu0 0.0
    %2598 = vmatpush2.msra.mxu0 0.0
    %2599 = vmatprep.subr.mxu0 0.0
    %2600 = vmatpush2.msra.mxu0 0.0
    %2601 = vmatprep.subr.mxu0 0.0
    %2602 = vmatpush2.msra.mxu0 0.0
    %2603 = vmatprep.subr.mxu0 0.0
    %2604 = vmatpush2.msra.mxu0 0.0
    %2605 = vmatprep.subr.mxu0 0.0
    %2606 = vmatpush2.msra.mxu0 0.0
    %2607 = vmatprep.subr.mxu0 0.0
    %2608 = vmatpush2.msra.mxu0 0.0
    %2609 = vmatprep.subr.mxu0 0.0
    %2610 = vmatpush2.msra.mxu0 0.0
    %2611 = vmatprep.subr.mxu0 0.0
    %2612 = vmatpush2.msra.mxu0 0.0
    %2613 = vmatprep.subr.mxu0 0.0
    %2614 = vmatpush2.msra.mxu0 0.0
    %2615 = vmatprep.mubr.f32.mxu0 0.0
    %v2616 = vand.u32 %v1920, 4294901760
    %v2617 = vsub.f32 %v1920, %v2616
    %2618 = vmatmul.mubr.f32.gmra.mxu0 %v2617
    %v2619 = vpop.f32.mrf.mxu0
    %v2620 = vadd.f32 %v2543, %v2619
    %v2621 = vpop.f32.mrf.mxu0
    %v2622 = vadd.f32 %v2545, %v2621
    %2623 = vdwg.mxu0
    %2624 = vmatprep.subr.mxu0 0.0
    %2625 = vmatpush1.msra.mxu0 0.0
    %2626 = vmatprep.subr.mxu0 0.0
    %2627 = vmatpush1.msra.mxu0 0.0
    %2628 = vmatprep.subr.mxu0 0.0
    %2629 = vmatpush1.msra.mxu0 0.0
    %2630 = vmatprep.subr.mxu0 0.0
    %2631 = vmatpush1.msra.mxu0 0.0
    %2632 = vmatprep.subr.mxu0 0.0
    %2633 = vmatpush1.msra.mxu0 0.0
    %2634 = vmatprep.subr.mxu0 0.0
    %2635 = vmatpush1.msra.mxu0 0.0
    %2636 = vmatprep.subr.mxu0 0.0
    %2637 = vmatpush1.msra.mxu0 0.0
    %2638 = vmatprep.subr.mxu0 0.0
    %2639 = vmatpush1.msra.mxu0 0.0
    %2640 = vmatprep.subr.mxu0 0.0
    %2641 = vmatpush1.msra.mxu0 0.0
    %2642 = vmatprep.subr.mxu0 0.0
    %2643 = vmatpush1.msra.mxu0 0.0
    %2644 = vmatprep.subr.mxu0 0.0
    %2645 = vmatpush1.msra.mxu0 0.0
    %2646 = vmatprep.subr.mxu0 0.0
    %2647 = vmatpush1.msra.mxu0 0.0
    %2648 = vmatprep.subr.mxu0 0.0
    %2649 = vmatpush1.msra.mxu0 0.0
    %2650 = vmatprep.subr.mxu0 0.0
    %2651 = vmatpush1.msra.mxu0 0.0
    %2652 = vmatprep.subr.mxu0 0.0
    %2653 = vmatpush1.msra.mxu0 0.0
    %v2654 = vand.u32 %v50, 4294901760
    %2655 = vmatprep.subr.mxu0 %v2654
    %v2656 = vand.u32 %v49, 4294901760
    %2657 = vmatpush1.msra.mxu0 %v2656
    %2658 = vmatprep.subr.mxu0 0.0
    %2659 = vmatpush2.msra.mxu0 0.0
    %2660 = vmatprep.subr.mxu0 0.0
    %2661 = vmatpush2.msra.mxu0 0.0
    %2662 = vmatprep.subr.mxu0 0.0
    %2663 = vmatpush2.msra.mxu0 0.0
    %2664 = vmatprep.subr.mxu0 0.0
    %2665 = vmatpush2.msra.mxu0 0.0
    %2666 = vmatprep.subr.mxu0 0.0
    %2667 = vmatpush2.msra.mxu0 0.0
    %2668 = vmatprep.subr.mxu0 0.0
    %2669 = vmatpush2.msra.mxu0 0.0
    %2670 = vmatprep.subr.mxu0 0.0
    %2671 = vmatpush2.msra.mxu0 0.0
    %2672 = vmatprep.subr.mxu0 0.0
    %2673 = vmatpush2.msra.mxu0 0.0
    %2674 = vmatprep.subr.mxu0 0.0
    %2675 = vmatpush2.msra.mxu0 0.0
    %2676 = vmatprep.subr.mxu0 0.0
    %2677 = vmatpush2.msra.mxu0 0.0
    %2678 = vmatprep.subr.mxu0 0.0
    %2679 = vmatpush2.msra.mxu0 0.0
    %2680 = vmatprep.subr.mxu0 0.0
    %2681 = vmatpush2.msra.mxu0 0.0
    %2682 = vmatprep.subr.mxu0 0.0
    %2683 = vmatpush2.msra.mxu0 0.0
    %2684 = vmatprep.subr.mxu0 0.0
    %2685 = vmatpush2.msra.mxu0 0.0
    %2686 = vmatprep.subr.mxu0 0.0
    %2687 = vmatpush2.msra.mxu0 0.0
    %2688 = vmatprep.subr.mxu0 0.0
    %2689 = vmatpush2.msra.mxu0 0.0
    %2690 = vmatprep.mubr.f32.mxu0 0.0
    %v2691 = vand.u32 %v1920, 4294901760
    %v2692 = vsub.f32 %v1920, %v2691
    %v2693 = vand.u32 %v2692, 4294901760
    %2694 = vmatmul.mubr.f32.gmra.mxu0 %v2693
    %v2695 = vpop.f32.mrf.mxu0
    %v2696 = vadd.f32 %v2620, %v2695
    %v2697 = vpop.f32.mrf.mxu0
    %v2698 = vadd.f32 %v2622, %v2697
    %2699 = vdwg.mxu0
    %2700 = vmatprep.subr.mxu0 0.0
    %2701 = vmatpush1.msra.mxu0 0.0
    %2702 = vmatprep.subr.mxu0 0.0
    %2703 = vmatpush1.msra.mxu0 0.0
    %2704 = vmatprep.subr.mxu0 0.0
    %2705 = vmatpush1.msra.mxu0 0.0
    %2706 = vmatprep.subr.mxu0 0.0
    %2707 = vmatpush1.msra.mxu0 0.0
    %2708 = vmatprep.subr.mxu0 0.0
    %2709 = vmatpush1.msra.mxu0 0.0
    %2710 = vmatprep.subr.mxu0 0.0
    %2711 = vmatpush1.msra.mxu0 0.0
    %2712 = vmatprep.subr.mxu0 0.0
    %2713 = vmatpush1.msra.mxu0 0.0
    %2714 = vmatprep.subr.mxu0 0.0
    %2715 = vmatpush1.msra.mxu0 0.0
    %2716 = vmatprep.subr.mxu0 0.0
    %2717 = vmatpush1.msra.mxu0 0.0
    %2718 = vmatprep.subr.mxu0 0.0
    %2719 = vmatpush1.msra.mxu0 0.0
    %2720 = vmatprep.subr.mxu0 0.0
    %2721 = vmatpush1.msra.mxu0 0.0
    %2722 = vmatprep.subr.mxu0 0.0
    %2723 = vmatpush1.msra.mxu0 0.0
    %2724 = vmatprep.subr.mxu0 0.0
    %2725 = vmatpush1.msra.mxu0 0.0
    %2726 = vmatprep.subr.mxu0 0.0
    %2727 = vmatpush1.msra.mxu0 0.0
    %2728 = vmatprep.subr.mxu0 0.0
    %2729 = vmatpush1.msra.mxu0 0.0
    %v2730 = vand.u32 %v50, 4294901760
    %v2731 = vsub.f32 %v50, %v2730
    %v2732 = vand.u32 %v2731, 4294901760
    %2733 = vmatprep.subr.mxu0 %v2732
    %v2734 = vand.u32 %v49, 4294901760
    %v2735 = vsub.f32 %v49, %v2734
    %v2736 = vand.u32 %v2735, 4294901760
    %2737 = vmatpush1.msra.mxu0 %v2736
    %2738 = vmatprep.subr.mxu0 0.0
    %2739 = vmatpush2.msra.mxu0 0.0
    %2740 = vmatprep.subr.mxu0 0.0
    %2741 = vmatpush2.msra.mxu0 0.0
    %2742 = vmatprep.subr.mxu0 0.0
    %2743 = vmatpush2.msra.mxu0 0.0
    %2744 = vmatprep.subr.mxu0 0.0
    %2745 = vmatpush2.msra.mxu0 0.0
    %2746 = vmatprep.subr.mxu0 0.0
    %2747 = vmatpush2.msra.mxu0 0.0
    %2748 = vmatprep.subr.mxu0 0.0
    %2749 = vmatpush2.msra.mxu0 0.0
    %2750 = vmatprep.subr.mxu0 0.0
    %2751 = vmatpush2.msra.mxu0 0.0
    %2752 = vmatprep.subr.mxu0 0.0
    %2753 = vmatpush2.msra.mxu0 0.0
    %2754 = vmatprep.subr.mxu0 0.0
    %2755 = vmatpush2.msra.mxu0 0.0
    %2756 = vmatprep.subr.mxu0 0.0
    %2757 = vmatpush2.msra.mxu0 0.0
    %2758 = vmatprep.subr.mxu0 0.0
    %2759 = vmatpush2.msra.mxu0 0.0
    %2760 = vmatprep.subr.mxu0 0.0
    %2761 = vmatpush2.msra.mxu0 0.0
    %2762 = vmatprep.subr.mxu0 0.0
    %2763 = vmatpush2.msra.mxu0 0.0
    %2764 = vmatprep.subr.mxu0 0.0
    %2765 = vmatpush2.msra.mxu0 0.0
    %2766 = vmatprep.subr.mxu0 0.0
    %2767 = vmatpush2.msra.mxu0 0.0
    %2768 = vmatprep.subr.mxu0 0.0
    %2769 = vmatpush2.msra.mxu0 0.0
    %2770 = vmatprep.mubr.f32.mxu0 0.0
    %v2771 = vand.u32 %v1920, 4294901760
    %2772 = vmatmul.mubr.f32.gmra.mxu0 %v2771
    %v2773 = vpop.f32.mrf.mxu0
    %v2774 = vadd.f32 %v2696, %v2773
    %v2775 = vpop.f32.mrf.mxu0
    %v2776 = vadd.f32 %v2698, %v2775
    %2777 = vdwg.mxu0
    %2778 = vmatprep.subr.mxu0 0.0
    %2779 = vmatpush1.msra.mxu0 0.0
    %2780 = vmatprep.subr.mxu0 0.0
    %2781 = vmatpush1.msra.mxu0 0.0
    %2782 = vmatprep.subr.mxu0 0.0
    %2783 = vmatpush1.msra.mxu0 0.0
    %2784 = vmatprep.subr.mxu0 0.0
    %2785 = vmatpush1.msra.mxu0 0.0
    %2786 = vmatprep.subr.mxu0 0.0
    %2787 = vmatpush1.msra.mxu0 0.0
    %2788 = vmatprep.subr.mxu0 0.0
    %2789 = vmatpush1.msra.mxu0 0.0
    %2790 = vmatprep.subr.mxu0 0.0
    %2791 = vmatpush1.msra.mxu0 0.0
    %2792 = vmatprep.subr.mxu0 0.0
    %2793 = vmatpush1.msra.mxu0 0.0
    %2794 = vmatprep.subr.mxu0 0.0
    %2795 = vmatpush1.msra.mxu0 0.0
    %2796 = vmatprep.subr.mxu0 0.0
    %2797 = vmatpush1.msra.mxu0 0.0
    %2798 = vmatprep.subr.mxu0 0.0
    %2799 = vmatpush1.msra.mxu0 0.0
    %2800 = vmatprep.subr.mxu0 0.0
    %2801 = vmatpush1.msra.mxu0 0.0
    %2802 = vmatprep.subr.mxu0 0.0
    %2803 = vmatpush1.msra.mxu0 0.0
    %2804 = vmatprep.subr.mxu0 0.0
    %2805 = vmatpush1.msra.mxu0 0.0
    %2806 = vmatprep.subr.mxu0 0.0
    %2807 = vmatpush1.msra.mxu0 0.0
    %v2808 = vand.u32 %v50, 4294901760
    %2809 = vmatprep.subr.mxu0 %v2808
    %v2810 = vand.u32 %v49, 4294901760
    %2811 = vmatpush1.msra.mxu0 %v2810
    %2812 = vmatprep.subr.mxu0 0.0
    %2813 = vmatpush2.msra.mxu0 0.0
    %2814 = vmatprep.subr.mxu0 0.0
    %2815 = vmatpush2.msra.mxu0 0.0
    %2816 = vmatprep.subr.mxu0 0.0
    %2817 = vmatpush2.msra.mxu0 0.0
    %2818 = vmatprep.subr.mxu0 0.0
    %2819 = vmatpush2.msra.mxu0 0.0
    %2820 = vmatprep.subr.mxu0 0.0
    %2821 = vmatpush2.msra.mxu0 0.0
    %2822 = vmatprep.subr.mxu0 0.0
    %2823 = vmatpush2.msra.mxu0 0.0
    %2824 = vmatprep.subr.mxu0 0.0
    %2825 = vmatpush2.msra.mxu0 0.0
    %2826 = vmatprep.subr.mxu0 0.0
    %2827 = vmatpush2.msra.mxu0 0.0
    %2828 = vmatprep.subr.mxu0 0.0
    %2829 = vmatpush2.msra.mxu0 0.0
    %2830 = vmatprep.subr.mxu0 0.0
    %2831 = vmatpush2.msra.mxu0 0.0
    %2832 = vmatprep.subr.mxu0 0.0
    %2833 = vmatpush2.msra.mxu0 0.0
    %2834 = vmatprep.subr.mxu0 0.0
    %2835 = vmatpush2.msra.mxu0 0.0
    %2836 = vmatprep.subr.mxu0 0.0
    %2837 = vmatpush2.msra.mxu0 0.0
    %2838 = vmatprep.subr.mxu0 0.0
    %2839 = vmatpush2.msra.mxu0 0.0
    %2840 = vmatprep.subr.mxu0 0.0
    %2841 = vmatpush2.msra.mxu0 0.0
    %2842 = vmatprep.subr.mxu0 0.0
    %2843 = vmatpush2.msra.mxu0 0.0
    %2844 = vmatprep.mubr.f32.mxu0 0.0
    %v2845 = vand.u32 %v1920, 4294901760
    %2846 = vmatmul.mubr.f32.gmra.mxu0 %v2845
    %v2847 = vpop.f32.mrf.mxu0
    %v2848 = vadd.f32 %v2774, %v2847
    %v2849 = vpop.f32.mrf.mxu0
    %v2850 = vadd.f32 %v2776, %v2849
    %2851 = vdwg.mxu0
    %2852 = vmatprep.subr.mxu0 0.0
    %2853 = vmatpush1.msra.mxu0 0.0
    %2854 = vmatprep.subr.mxu0 0.0
    %2855 = vmatpush1.msra.mxu0 0.0
    %2856 = vmatprep.subr.mxu0 0.0
    %2857 = vmatpush1.msra.mxu0 0.0
    %2858 = vmatprep.subr.mxu0 0.0
    %2859 = vmatpush1.msra.mxu0 0.0
    %2860 = vmatprep.subr.mxu0 0.0
    %2861 = vmatpush1.msra.mxu0 0.0
    %2862 = vmatprep.subr.mxu0 0.0
    %2863 = vmatpush1.msra.mxu0 0.0
    %2864 = vmatprep.subr.mxu0 0.0
    %2865 = vmatpush1.msra.mxu0 0.0
    %2866 = vmatprep.subr.mxu0 0.0
    %2867 = vmatpush1.msra.mxu0 0.0
    %2868 = vmatprep.subr.mxu0 0.0
    %2869 = vmatpush1.msra.mxu0 0.0
    %2870 = vmatprep.subr.mxu0 0.0
    %2871 = vmatpush1.msra.mxu0 0.0
    %2872 = vmatprep.subr.mxu0 0.0
    %2873 = vmatpush1.msra.mxu0 0.0
    %2874 = vmatprep.subr.mxu0 0.0
    %2875 = vmatpush1.msra.mxu0 0.0
    %2876 = vmatprep.subr.mxu0 0.0
    %2877 = vmatpush1.msra.mxu0 0.0
    %2878 = vmatprep.subr.mxu0 0.0
    %2879 = vmatpush1.msra.mxu0 0.0
    %2880 = vmatprep.subr.mxu0 0.0
    %2881 = vmatpush1.msra.mxu0 0.0
    %v2882 = vand.u32 %v52, 4294901760
    %2883 = vmatprep.subr.mxu0 %v2882
    %v2884 = vand.u32 %v51, 4294901760
    %2885 = vmatpush1.msra.mxu0 %v2884
    %2886 = vmatprep.subr.mxu0 0.0
    %2887 = vmatpush2.msra.mxu0 0.0
    %2888 = vmatprep.subr.mxu0 0.0
    %2889 = vmatpush2.msra.mxu0 0.0
    %2890 = vmatprep.subr.mxu0 0.0
    %2891 = vmatpush2.msra.mxu0 0.0
    %2892 = vmatprep.subr.mxu0 0.0
    %2893 = vmatpush2.msra.mxu0 0.0
    %2894 = vmatprep.subr.mxu0 0.0
    %2895 = vmatpush2.msra.mxu0 0.0
    %2896 = vmatprep.subr.mxu0 0.0
    %2897 = vmatpush2.msra.mxu0 0.0
    %2898 = vmatprep.subr.mxu0 0.0
    %2899 = vmatpush2.msra.mxu0 0.0
    %2900 = vmatprep.subr.mxu0 0.0
    %2901 = vmatpush2.msra.mxu0 0.0
    %2902 = vmatprep.subr.mxu0 0.0
    %2903 = vmatpush2.msra.mxu0 0.0
    %2904 = vmatprep.subr.mxu0 0.0
    %2905 = vmatpush2.msra.mxu0 0.0
    %2906 = vmatprep.subr.mxu0 0.0
    %2907 = vmatpush2.msra.mxu0 0.0
    %2908 = vmatprep.subr.mxu0 0.0
    %2909 = vmatpush2.msra.mxu0 0.0
    %2910 = vmatprep.subr.mxu0 0.0
    %2911 = vmatpush2.msra.mxu0 0.0
    %2912 = vmatprep.subr.mxu0 0.0
    %2913 = vmatpush2.msra.mxu0 0.0
    %2914 = vmatprep.subr.mxu0 0.0
    %2915 = vmatpush2.msra.mxu0 0.0
    %2916 = vmatprep.subr.mxu0 0.0
    %2917 = vmatpush2.msra.mxu0 0.0
    %2918 = vmatprep.mubr.f32.mxu0 0.0
    %v2919 = vand.u32 %v1920, 4294901760
    %v2920 = vsub.f32 %v1920, %v2919
    %v2921 = vand.u32 %v2920, 4294901760
    %v2922 = vsub.f32 %v2920, %v2921
    %v2923 = vand.u32 %v2922, 4294901760
    %2924 = vmatmul.mubr.f32.gmra.mxu0 %v2923
    %v2925 = vpop.f32.mrf.mxu0
    %v2926 = vadd.f32 0.0, %v2925
    %v2927 = vpop.f32.mrf.mxu0
    %v2928 = vadd.f32 0.0, %v2927
    %2929 = vdwg.mxu0
    %2930 = vmatprep.subr.mxu0 0.0
    %2931 = vmatpush1.msra.mxu0 0.0
    %2932 = vmatprep.subr.mxu0 0.0
    %2933 = vmatpush1.msra.mxu0 0.0
    %2934 = vmatprep.subr.mxu0 0.0
    %2935 = vmatpush1.msra.mxu0 0.0
    %2936 = vmatprep.subr.mxu0 0.0
    %2937 = vmatpush1.msra.mxu0 0.0
    %2938 = vmatprep.subr.mxu0 0.0
    %2939 = vmatpush1.msra.mxu0 0.0
    %2940 = vmatprep.subr.mxu0 0.0
    %2941 = vmatpush1.msra.mxu0 0.0
    %2942 = vmatprep.subr.mxu0 0.0
    %2943 = vmatpush1.msra.mxu0 0.0
    %2944 = vmatprep.subr.mxu0 0.0
    %2945 = vmatpush1.msra.mxu0 0.0
    %2946 = vmatprep.subr.mxu0 0.0
    %2947 = vmatpush1.msra.mxu0 0.0
    %2948 = vmatprep.subr.mxu0 0.0
    %2949 = vmatpush1.msra.mxu0 0.0
    %2950 = vmatprep.subr.mxu0 0.0
    %2951 = vmatpush1.msra.mxu0 0.0
    %2952 = vmatprep.subr.mxu0 0.0
    %2953 = vmatpush1.msra.mxu0 0.0
    %2954 = vmatprep.subr.mxu0 0.0
    %2955 = vmatpush1.msra.mxu0 0.0
    %2956 = vmatprep.subr.mxu0 0.0
    %2957 = vmatpush1.msra.mxu0 0.0
    %2958 = vmatprep.subr.mxu0 0.0
    %2959 = vmatpush1.msra.mxu0 0.0
    %v2960 = vand.u32 %v52, 4294901760
    %v2961 = vsub.f32 %v52, %v2960
    %v2962 = vand.u32 %v2961, 4294901760
    %v2963 = vsub.f32 %v2961, %v2962
    %v2964 = vand.u32 %v2963, 4294901760
    %2965 = vmatprep.subr.mxu0 %v2964
    %v2966 = vand.u32 %v51, 4294901760
    %v2967 = vsub.f32 %v51, %v2966
    %v2968 = vand.u32 %v2967, 4294901760
    %v2969 = vsub.f32 %v2967, %v2968
    %v2970 = vand.u32 %v2969, 4294901760
    %2971 = vmatpush1.msra.mxu0 %v2970
    %2972 = vmatprep.subr.mxu0 0.0
    %2973 = vmatpush2.msra.mxu0 0.0
    %2974 = vmatprep.subr.mxu0 0.0
    %2975 = vmatpush2.msra.mxu0 0.0
    %2976 = vmatprep.subr.mxu0 0.0
    %2977 = vmatpush2.msra.mxu0 0.0
    %2978 = vmatprep.subr.mxu0 0.0
    %2979 = vmatpush2.msra.mxu0 0.0
    %2980 = vmatprep.subr.mxu0 0.0
    %2981 = vmatpush2.msra.mxu0 0.0
    %2982 = vmatprep.subr.mxu0 0.0
    %2983 = vmatpush2.msra.mxu0 0.0
    %2984 = vmatprep.subr.mxu0 0.0
    %2985 = vmatpush2.msra.mxu0 0.0
    %2986 = vmatprep.subr.mxu0 0.0
    %2987 = vmatpush2.msra.mxu0 0.0
    %2988 = vmatprep.subr.mxu0 0.0
    %2989 = vmatpush2.msra.mxu0 0.0
    %2990 = vmatprep.subr.mxu0 0.0
    %2991 = vmatpush2.msra.mxu0 0.0
    %2992 = vmatprep.subr.mxu0 0.0
    %2993 = vmatpush2.msra.mxu0 0.0
    %2994 = vmatprep.subr.mxu0 0.0
    %2995 = vmatpush2.msra.mxu0 0.0
    %2996 = vmatprep.subr.mxu0 0.0
    %2997 = vmatpush2.msra.mxu0 0.0
    %2998 = vmatprep.subr.mxu0 0.0
    %2999 = vmatpush2.msra.mxu0 0.0
    %3000 = vmatprep.subr.mxu0 0.0
    %3001 = vmatpush2.msra.mxu0 0.0
    %3002 = vmatprep.subr.mxu0 0.0
    %3003 = vmatpush2.msra.mxu0 0.0
    %3004 = vmatprep.mubr.f32.mxu0 0.0
    %v3005 = vand.u32 %v1920, 4294901760
    %3006 = vmatmul.mubr.f32.gmra.mxu0 %v3005
    %v3007 = vpop.f32.mrf.mxu0
    %v3008 = vadd.f32 %v2926, %v3007
    %v3009 = vpop.f32.mrf.mxu0
    %v3010 = vadd.f32 %v2928, %v3009
    %3011 = vdwg.mxu0
    %3012 = vmatprep.subr.mxu0 0.0
    %3013 = vmatpush1.msra.mxu0 0.0
    %3014 = vmatprep.subr.mxu0 0.0
    %3015 = vmatpush1.msra.mxu0 0.0
    %3016 = vmatprep.subr.mxu0 0.0
    %3017 = vmatpush1.msra.mxu0 0.0
    %3018 = vmatprep.subr.mxu0 0.0
    %3019 = vmatpush1.msra.mxu0 0.0
    %3020 = vmatprep.subr.mxu0 0.0
    %3021 = vmatpush1.msra.mxu0 0.0
    %3022 = vmatprep.subr.mxu0 0.0
    %3023 = vmatpush1.msra.mxu0 0.0
    %3024 = vmatprep.subr.mxu0 0.0
    %3025 = vmatpush1.msra.mxu0 0.0
    %3026 = vmatprep.subr.mxu0 0.0
    %3027 = vmatpush1.msra.mxu0 0.0
    %3028 = vmatprep.subr.mxu0 0.0
    %3029 = vmatpush1.msra.mxu0 0.0
    %3030 = vmatprep.subr.mxu0 0.0
    %3031 = vmatpush1.msra.mxu0 0.0
    %3032 = vmatprep.subr.mxu0 0.0
    %3033 = vmatpush1.msra.mxu0 0.0
    %3034 = vmatprep.subr.mxu0 0.0
    %3035 = vmatpush1.msra.mxu0 0.0
    %3036 = vmatprep.subr.mxu0 0.0
    %3037 = vmatpush1.msra.mxu0 0.0
    %3038 = vmatprep.subr.mxu0 0.0
    %3039 = vmatpush1.msra.mxu0 0.0
    %3040 = vmatprep.subr.mxu0 0.0
    %3041 = vmatpush1.msra.mxu0 0.0
    %v3042 = vand.u32 %v52, 4294901760
    %v3043 = vsub.f32 %v52, %v3042
    %3044 = vmatprep.subr.mxu0 %v3043
    %v3045 = vand.u32 %v51, 4294901760
    %v3046 = vsub.f32 %v51, %v3045
    %3047 = vmatpush1.msra.mxu0 %v3046
    %3048 = vmatprep.subr.mxu0 0.0
    %3049 = vmatpush2.msra.mxu0 0.0
    %3050 = vmatprep.subr.mxu0 0.0
    %3051 = vmatpush2.msra.mxu0 0.0
    %3052 = vmatprep.subr.mxu0 0.0
    %3053 = vmatpush2.msra.mxu0 0.0
    %3054 = vmatprep.subr.mxu0 0.0
    %3055 = vmatpush2.msra.mxu0 0.0
    %3056 = vmatprep.subr.mxu0 0.0
    %3057 = vmatpush2.msra.mxu0 0.0
    %3058 = vmatprep.subr.mxu0 0.0
    %3059 = vmatpush2.msra.mxu0 0.0
    %3060 = vmatprep.subr.mxu0 0.0
    %3061 = vmatpush2.msra.mxu0 0.0
    %3062 = vmatprep.subr.mxu0 0.0
    %3063 = vmatpush2.msra.mxu0 0.0
    %3064 = vmatprep.subr.mxu0 0.0
    %3065 = vmatpush2.msra.mxu0 0.0
    %3066 = vmatprep.subr.mxu0 0.0
    %3067 = vmatpush2.msra.mxu0 0.0
    %3068 = vmatprep.subr.mxu0 0.0
    %3069 = vmatpush2.msra.mxu0 0.0
    %3070 = vmatprep.subr.mxu0 0.0
    %3071 = vmatpush2.msra.mxu0 0.0
    %3072 = vmatprep.subr.mxu0 0.0
    %3073 = vmatpush2.msra.mxu0 0.0
    %3074 = vmatprep.subr.mxu0 0.0
    %3075 = vmatpush2.msra.mxu0 0.0
    %3076 = vmatprep.subr.mxu0 0.0
    %3077 = vmatpush2.msra.mxu0 0.0
    %3078 = vmatprep.subr.mxu0 0.0
    %3079 = vmatpush2.msra.mxu0 0.0
    %3080 = vmatprep.mubr.f32.mxu0 0.0
    %v3081 = vand.u32 %v1920, 4294901760
    %v3082 = vsub.f32 %v1920, %v3081
    %3083 = vmatmul.mubr.f32.gmra.mxu0 %v3082
    %v3084 = vpop.f32.mrf.mxu0
    %v3085 = vadd.f32 %v3008, %v3084
    %v3086 = vpop.f32.mrf.mxu0
    %v3087 = vadd.f32 %v3010, %v3086
    %3088 = vdwg.mxu0
    %3089 = vmatprep.subr.mxu0 0.0
    %3090 = vmatpush1.msra.mxu0 0.0
    %3091 = vmatprep.subr.mxu0 0.0
    %3092 = vmatpush1.msra.mxu0 0.0
    %3093 = vmatprep.subr.mxu0 0.0
    %3094 = vmatpush1.msra.mxu0 0.0
    %3095 = vmatprep.subr.mxu0 0.0
    %3096 = vmatpush1.msra.mxu0 0.0
    %3097 = vmatprep.subr.mxu0 0.0
    %3098 = vmatpush1.msra.mxu0 0.0
    %3099 = vmatprep.subr.mxu0 0.0
    %3100 = vmatpush1.msra.mxu0 0.0
    %3101 = vmatprep.subr.mxu0 0.0
    %3102 = vmatpush1.msra.mxu0 0.0
    %3103 = vmatprep.subr.mxu0 0.0
    %3104 = vmatpush1.msra.mxu0 0.0
    %3105 = vmatprep.subr.mxu0 0.0
    %3106 = vmatpush1.msra.mxu0 0.0
    %3107 = vmatprep.subr.mxu0 0.0
    %3108 = vmatpush1.msra.mxu0 0.0
    %3109 = vmatprep.subr.mxu0 0.0
    %3110 = vmatpush1.msra.mxu0 0.0
    %3111 = vmatprep.subr.mxu0 0.0
    %3112 = vmatpush1.msra.mxu0 0.0
    %3113 = vmatprep.subr.mxu0 0.0
    %3114 = vmatpush1.msra.mxu0 0.0
    %3115 = vmatprep.subr.mxu0 0.0
    %3116 = vmatpush1.msra.mxu0 0.0
    %3117 = vmatprep.subr.mxu0 0.0
    %3118 = vmatpush1.msra.mxu0 0.0
    %v3119 = vand.u32 %v52, 4294901760
    %3120 = vmatprep.subr.mxu0 %v3119
    %v3121 = vand.u32 %v51, 4294901760
    %3122 = vmatpush1.msra.mxu0 %v3121
    %3123 = vmatprep.subr.mxu0 0.0
    %3124 = vmatpush2.msra.mxu0 0.0
    %3125 = vmatprep.subr.mxu0 0.0
    %3126 = vmatpush2.msra.mxu0 0.0
    %3127 = vmatprep.subr.mxu0 0.0
    %3128 = vmatpush2.msra.mxu0 0.0
    %3129 = vmatprep.subr.mxu0 0.0
    %3130 = vmatpush2.msra.mxu0 0.0
    %3131 = vmatprep.subr.mxu0 0.0
    %3132 = vmatpush2.msra.mxu0 0.0
    %3133 = vmatprep.subr.mxu0 0.0
    %3134 = vmatpush2.msra.mxu0 0.0
    %3135 = vmatprep.subr.mxu0 0.0
    %3136 = vmatpush2.msra.mxu0 0.0
    %3137 = vmatprep.subr.mxu0 0.0
    %3138 = vmatpush2.msra.mxu0 0.0
    %3139 = vmatprep.subr.mxu0 0.0
    %3140 = vmatpush2.msra.mxu0 0.0
    %3141 = vmatprep.subr.mxu0 0.0
    %3142 = vmatpush2.msra.mxu0 0.0
    %3143 = vmatprep.subr.mxu0 0.0
    %3144 = vmatpush2.msra.mxu0 0.0
    %3145 = vmatprep.subr.mxu0 0.0
    %3146 = vmatpush2.msra.mxu0 0.0
    %3147 = vmatprep.subr.mxu0 0.0
    %3148 = vmatpush2.msra.mxu0 0.0
    %3149 = vmatprep.subr.mxu0 0.0
    %3150 = vmatpush2.msra.mxu0 0.0
    %3151 = vmatprep.subr.mxu0 0.0
    %3152 = vmatpush2.msra.mxu0 0.0
    %3153 = vmatprep.subr.mxu0 0.0
    %3154 = vmatpush2.msra.mxu0 0.0
    %3155 = vmatprep.mubr.f32.mxu0 0.0
    %v3156 = vand.u32 %v1920, 4294901760
    %v3157 = vsub.f32 %v1920, %v3156
    %v3158 = vand.u32 %v3157, 4294901760
    %3159 = vmatmul.mubr.f32.gmra.mxu0 %v3158
    %v3160 = vpop.f32.mrf.mxu0
    %v3161 = vadd.f32 %v3085, %v3160
    %v3162 = vpop.f32.mrf.mxu0
    %v3163 = vadd.f32 %v3087, %v3162
    %3164 = vdwg.mxu0
    %3165 = vmatprep.subr.mxu0 0.0
    %3166 = vmatpush1.msra.mxu0 0.0
    %3167 = vmatprep.subr.mxu0 0.0
    %3168 = vmatpush1.msra.mxu0 0.0
    %3169 = vmatprep.subr.mxu0 0.0
    %3170 = vmatpush1.msra.mxu0 0.0
    %3171 = vmatprep.subr.mxu0 0.0
    %3172 = vmatpush1.msra.mxu0 0.0
    %3173 = vmatprep.subr.mxu0 0.0
    %3174 = vmatpush1.msra.mxu0 0.0
    %3175 = vmatprep.subr.mxu0 0.0
    %3176 = vmatpush1.msra.mxu0 0.0
    %3177 = vmatprep.subr.mxu0 0.0
    %3178 = vmatpush1.msra.mxu0 0.0
    %3179 = vmatprep.subr.mxu0 0.0
    %3180 = vmatpush1.msra.mxu0 0.0
    %3181 = vmatprep.subr.mxu0 0.0
    %3182 = vmatpush1.msra.mxu0 0.0
    %3183 = vmatprep.subr.mxu0 0.0
    %3184 = vmatpush1.msra.mxu0 0.0
    %3185 = vmatprep.subr.mxu0 0.0
    %3186 = vmatpush1.msra.mxu0 0.0
    %3187 = vmatprep.subr.mxu0 0.0
    %3188 = vmatpush1.msra.mxu0 0.0
    %3189 = vmatprep.subr.mxu0 0.0
    %3190 = vmatpush1.msra.mxu0 0.0
    %3191 = vmatprep.subr.mxu0 0.0
    %3192 = vmatpush1.msra.mxu0 0.0
    %3193 = vmatprep.subr.mxu0 0.0
    %3194 = vmatpush1.msra.mxu0 0.0
    %v3195 = vand.u32 %v52, 4294901760
    %v3196 = vsub.f32 %v52, %v3195
    %v3197 = vand.u32 %v3196, 4294901760
    %3198 = vmatprep.subr.mxu0 %v3197
    %v3199 = vand.u32 %v51, 4294901760
    %v3200 = vsub.f32 %v51, %v3199
    %v3201 = vand.u32 %v3200, 4294901760
    %3202 = vmatpush1.msra.mxu0 %v3201
    %3203 = vmatprep.subr.mxu0 0.0
    %3204 = vmatpush2.msra.mxu0 0.0
    %3205 = vmatprep.subr.mxu0 0.0
    %3206 = vmatpush2.msra.mxu0 0.0
    %3207 = vmatprep.subr.mxu0 0.0
    %3208 = vmatpush2.msra.mxu0 0.0
    %3209 = vmatprep.subr.mxu0 0.0
    %3210 = vmatpush2.msra.mxu0 0.0
    %3211 = vmatprep.subr.mxu0 0.0
    %3212 = vmatpush2.msra.mxu0 0.0
    %3213 = vmatprep.subr.mxu0 0.0
    %3214 = vmatpush2.msra.mxu0 0.0
    %3215 = vmatprep.subr.mxu0 0.0
    %3216 = vmatpush2.msra.mxu0 0.0
    %3217 = vmatprep.subr.mxu0 0.0
    %3218 = vmatpush2.msra.mxu0 0.0
    %3219 = vmatprep.subr.mxu0 0.0
    %3220 = vmatpush2.msra.mxu0 0.0
    %3221 = vmatprep.subr.mxu0 0.0
    %3222 = vmatpush2.msra.mxu0 0.0
    %3223 = vmatprep.subr.mxu0 0.0
    %3224 = vmatpush2.msra.mxu0 0.0
    %3225 = vmatprep.subr.mxu0 0.0
    %3226 = vmatpush2.msra.mxu0 0.0
    %3227 = vmatprep.subr.mxu0 0.0
    %3228 = vmatpush2.msra.mxu0 0.0
    %3229 = vmatprep.subr.mxu0 0.0
    %3230 = vmatpush2.msra.mxu0 0.0
    %3231 = vmatprep.subr.mxu0 0.0
    %3232 = vmatpush2.msra.mxu0 0.0
    %3233 = vmatprep.subr.mxu0 0.0
    %3234 = vmatpush2.msra.mxu0 0.0
    %3235 = vmatprep.mubr.f32.mxu0 0.0
    %v3236 = vand.u32 %v1920, 4294901760
    %3237 = vmatmul.mubr.f32.gmra.mxu0 %v3236
    %v3238 = vpop.f32.mrf.mxu0
    %v3239 = vadd.f32 %v3161, %v3238
    %v3240 = vpop.f32.mrf.mxu0
    %v3241 = vadd.f32 %v3163, %v3240
    %3242 = vdwg.mxu0
    %3243 = vmatprep.subr.mxu0 0.0
    %3244 = vmatpush1.msra.mxu0 0.0
    %3245 = vmatprep.subr.mxu0 0.0
    %3246 = vmatpush1.msra.mxu0 0.0
    %3247 = vmatprep.subr.mxu0 0.0
    %3248 = vmatpush1.msra.mxu0 0.0
    %3249 = vmatprep.subr.mxu0 0.0
    %3250 = vmatpush1.msra.mxu0 0.0
    %3251 = vmatprep.subr.mxu0 0.0
    %3252 = vmatpush1.msra.mxu0 0.0
    %3253 = vmatprep.subr.mxu0 0.0
    %3254 = vmatpush1.msra.mxu0 0.0
    %3255 = vmatprep.subr.mxu0 0.0
    %3256 = vmatpush1.msra.mxu0 0.0
    %3257 = vmatprep.subr.mxu0 0.0
    %3258 = vmatpush1.msra.mxu0 0.0
    %3259 = vmatprep.subr.mxu0 0.0
    %3260 = vmatpush1.msra.mxu0 0.0
    %3261 = vmatprep.subr.mxu0 0.0
    %3262 = vmatpush1.msra.mxu0 0.0
    %3263 = vmatprep.subr.mxu0 0.0
    %3264 = vmatpush1.msra.mxu0 0.0
    %3265 = vmatprep.subr.mxu0 0.0
    %3266 = vmatpush1.msra.mxu0 0.0
    %3267 = vmatprep.subr.mxu0 0.0
    %3268 = vmatpush1.msra.mxu0 0.0
    %3269 = vmatprep.subr.mxu0 0.0
    %3270 = vmatpush1.msra.mxu0 0.0
    %3271 = vmatprep.subr.mxu0 0.0
    %3272 = vmatpush1.msra.mxu0 0.0
    %v3273 = vand.u32 %v52, 4294901760
    %3274 = vmatprep.subr.mxu0 %v3273
    %v3275 = vand.u32 %v51, 4294901760
    %3276 = vmatpush1.msra.mxu0 %v3275
    %3277 = vmatprep.subr.mxu0 0.0
    %3278 = vmatpush2.msra.mxu0 0.0
    %3279 = vmatprep.subr.mxu0 0.0
    %3280 = vmatpush2.msra.mxu0 0.0
    %3281 = vmatprep.subr.mxu0 0.0
    %3282 = vmatpush2.msra.mxu0 0.0
    %3283 = vmatprep.subr.mxu0 0.0
    %3284 = vmatpush2.msra.mxu0 0.0
    %3285 = vmatprep.subr.mxu0 0.0
    %3286 = vmatpush2.msra.mxu0 0.0
    %3287 = vmatprep.subr.mxu0 0.0
    %3288 = vmatpush2.msra.mxu0 0.0
    %3289 = vmatprep.subr.mxu0 0.0
    %3290 = vmatpush2.msra.mxu0 0.0
    %3291 = vmatprep.subr.mxu0 0.0
    %3292 = vmatpush2.msra.mxu0 0.0
    %3293 = vmatprep.subr.mxu0 0.0
    %3294 = vmatpush2.msra.mxu0 0.0
    %3295 = vmatprep.subr.mxu0 0.0
    %3296 = vmatpush2.msra.mxu0 0.0
    %3297 = vmatprep.subr.mxu0 0.0
    %3298 = vmatpush2.msra.mxu0 0.0
    %3299 = vmatprep.subr.mxu0 0.0
    %3300 = vmatpush2.msra.mxu0 0.0
    %3301 = vmatprep.subr.mxu0 0.0
    %3302 = vmatpush2.msra.mxu0 0.0
    %3303 = vmatprep.subr.mxu0 0.0
    %3304 = vmatpush2.msra.mxu0 0.0
    %3305 = vmatprep.subr.mxu0 0.0
    %3306 = vmatpush2.msra.mxu0 0.0
    %3307 = vmatprep.subr.mxu0 0.0
    %3308 = vmatpush2.msra.mxu0 0.0
    %3309 = vmatprep.mubr.f32.mxu0 0.0
    %v3310 = vand.u32 %v1920, 4294901760
    %3311 = vmatmul.mubr.f32.gmra.mxu0 %v3310
    %v3312 = vpop.f32.mrf.mxu0
    %v3313 = vadd.f32 %v3239, %v3312
    %v3314 = vpop.f32.mrf.mxu0
    %v3315 = vadd.f32 %v3241, %v3314
    %3316 = vdwg.mxu0
    %3317 = vmatprep.subr.mxu0 0.0
    %3318 = vmatpush1.msra.mxu0 0.0
    %3319 = vmatprep.subr.mxu0 0.0
    %3320 = vmatpush1.msra.mxu0 0.0
    %3321 = vmatprep.subr.mxu0 0.0
    %3322 = vmatpush1.msra.mxu0 0.0
    %3323 = vmatprep.subr.mxu0 0.0
    %3324 = vmatpush1.msra.mxu0 0.0
    %3325 = vmatprep.subr.mxu0 0.0
    %3326 = vmatpush1.msra.mxu0 0.0
    %3327 = vmatprep.subr.mxu0 0.0
    %3328 = vmatpush1.msra.mxu0 0.0
    %3329 = vmatprep.subr.mxu0 0.0
    %3330 = vmatpush1.msra.mxu0 0.0
    %3331 = vmatprep.subr.mxu0 0.0
    %3332 = vmatpush1.msra.mxu0 0.0
    %3333 = vmatprep.subr.mxu0 0.0
    %3334 = vmatpush1.msra.mxu0 0.0
    %3335 = vmatprep.subr.mxu0 0.0
    %3336 = vmatpush1.msra.mxu0 0.0
    %3337 = vmatprep.subr.mxu0 0.0
    %3338 = vmatpush1.msra.mxu0 0.0
    %3339 = vmatprep.subr.mxu0 0.0
    %3340 = vmatpush1.msra.mxu0 0.0
    %3341 = vmatprep.subr.mxu0 0.0
    %3342 = vmatpush1.msra.mxu0 0.0
    %3343 = vmatprep.subr.mxu0 0.0
    %3344 = vmatpush1.msra.mxu0 0.0
    %3345 = vmatprep.subr.mxu0 0.0
    %3346 = vmatpush1.msra.mxu0 0.0
    %v3347 = vand.u32 %v54, 4294901760
    %3348 = vmatprep.subr.mxu0 %v3347
    %v3349 = vand.u32 %v53, 4294901760
    %3350 = vmatpush1.msra.mxu0 %v3349
    %3351 = vmatprep.subr.mxu0 0.0
    %3352 = vmatpush2.msra.mxu0 0.0
    %3353 = vmatprep.subr.mxu0 0.0
    %3354 = vmatpush2.msra.mxu0 0.0
    %3355 = vmatprep.subr.mxu0 0.0
    %3356 = vmatpush2.msra.mxu0 0.0
    %3357 = vmatprep.subr.mxu0 0.0
    %3358 = vmatpush2.msra.mxu0 0.0
    %3359 = vmatprep.subr.mxu0 0.0
    %3360 = vmatpush2.msra.mxu0 0.0
    %3361 = vmatprep.subr.mxu0 0.0
    %3362 = vmatpush2.msra.mxu0 0.0
    %3363 = vmatprep.subr.mxu0 0.0
    %3364 = vmatpush2.msra.mxu0 0.0
    %3365 = vmatprep.subr.mxu0 0.0
    %3366 = vmatpush2.msra.mxu0 0.0
    %3367 = vmatprep.subr.mxu0 0.0
    %3368 = vmatpush2.msra.mxu0 0.0
    %3369 = vmatprep.subr.mxu0 0.0
    %3370 = vmatpush2.msra.mxu0 0.0
    %3371 = vmatprep.subr.mxu0 0.0
    %3372 = vmatpush2.msra.mxu0 0.0
    %3373 = vmatprep.subr.mxu0 0.0
    %3374 = vmatpush2.msra.mxu0 0.0
    %3375 = vmatprep.subr.mxu0 0.0
    %3376 = vmatpush2.msra.mxu0 0.0
    %3377 = vmatprep.subr.mxu0 0.0
    %3378 = vmatpush2.msra.mxu0 0.0
    %3379 = vmatprep.subr.mxu0 0.0
    %3380 = vmatpush2.msra.mxu0 0.0
    %3381 = vmatprep.subr.mxu0 0.0
    %3382 = vmatpush2.msra.mxu0 0.0
    %3383 = vmatprep.mubr.f32.mxu0 0.0
    %v3384 = vand.u32 %v1920, 4294901760
    %v3385 = vsub.f32 %v1920, %v3384
    %v3386 = vand.u32 %v3385, 4294901760
    %v3387 = vsub.f32 %v3385, %v3386
    %v3388 = vand.u32 %v3387, 4294901760
    %3389 = vmatmul.mubr.f32.gmra.mxu0 %v3388
    %v3390 = vpop.f32.mrf.mxu0
    %v3391 = vadd.f32 0.0, %v3390
    %v3392 = vpop.f32.mrf.mxu0
    %v3393 = vadd.f32 0.0, %v3392
    %3394 = vdwg.mxu0
    %3395 = vmatprep.subr.mxu0 0.0
    %3396 = vmatpush1.msra.mxu0 0.0
    %3397 = vmatprep.subr.mxu0 0.0
    %3398 = vmatpush1.msra.mxu0 0.0
    %3399 = vmatprep.subr.mxu0 0.0
    %3400 = vmatpush1.msra.mxu0 0.0
    %3401 = vmatprep.subr.mxu0 0.0
    %3402 = vmatpush1.msra.mxu0 0.0
    %3403 = vmatprep.subr.mxu0 0.0
    %3404 = vmatpush1.msra.mxu0 0.0
    %3405 = vmatprep.subr.mxu0 0.0
    %3406 = vmatpush1.msra.mxu0 0.0
    %3407 = vmatprep.subr.mxu0 0.0
    %3408 = vmatpush1.msra.mxu0 0.0
    %3409 = vmatprep.subr.mxu0 0.0
    %3410 = vmatpush1.msra.mxu0 0.0
    %3411 = vmatprep.subr.mxu0 0.0
    %3412 = vmatpush1.msra.mxu0 0.0
    %3413 = vmatprep.subr.mxu0 0.0
    %3414 = vmatpush1.msra.mxu0 0.0
    %3415 = vmatprep.subr.mxu0 0.0
    %3416 = vmatpush1.msra.mxu0 0.0
    %3417 = vmatprep.subr.mxu0 0.0
    %3418 = vmatpush1.msra.mxu0 0.0
    %3419 = vmatprep.subr.mxu0 0.0
    %3420 = vmatpush1.msra.mxu0 0.0
    %3421 = vmatprep.subr.mxu0 0.0
    %3422 = vmatpush1.msra.mxu0 0.0
    %3423 = vmatprep.subr.mxu0 0.0
    %3424 = vmatpush1.msra.mxu0 0.0
    %v3425 = vand.u32 %v54, 4294901760
    %v3426 = vsub.f32 %v54, %v3425
    %v3427 = vand.u32 %v3426, 4294901760
    %v3428 = vsub.f32 %v3426, %v3427
    %v3429 = vand.u32 %v3428, 4294901760
    %3430 = vmatprep.subr.mxu0 %v3429
    %v3431 = vand.u32 %v53, 4294901760
    %v3432 = vsub.f32 %v53, %v3431
    %v3433 = vand.u32 %v3432, 4294901760
    %v3434 = vsub.f32 %v3432, %v3433
    %v3435 = vand.u32 %v3434, 4294901760
    %3436 = vmatpush1.msra.mxu0 %v3435
    %3437 = vmatprep.subr.mxu0 0.0
    %3438 = vmatpush2.msra.mxu0 0.0
    %3439 = vmatprep.subr.mxu0 0.0
    %3440 = vmatpush2.msra.mxu0 0.0
    %3441 = vmatprep.subr.mxu0 0.0
    %3442 = vmatpush2.msra.mxu0 0.0
    %3443 = vmatprep.subr.mxu0 0.0
    %3444 = vmatpush2.msra.mxu0 0.0
    %3445 = vmatprep.subr.mxu0 0.0
    %3446 = vmatpush2.msra.mxu0 0.0
    %3447 = vmatprep.subr.mxu0 0.0
    %3448 = vmatpush2.msra.mxu0 0.0
    %3449 = vmatprep.subr.mxu0 0.0
    %3450 = vmatpush2.msra.mxu0 0.0
    %3451 = vmatprep.subr.mxu0 0.0
    %3452 = vmatpush2.msra.mxu0 0.0
    %3453 = vmatprep.subr.mxu0 0.0
    %3454 = vmatpush2.msra.mxu0 0.0
    %3455 = vmatprep.subr.mxu0 0.0
    %3456 = vmatpush2.msra.mxu0 0.0
    %3457 = vmatprep.subr.mxu0 0.0
    %3458 = vmatpush2.msra.mxu0 0.0
    %3459 = vmatprep.subr.mxu0 0.0
    %3460 = vmatpush2.msra.mxu0 0.0
    %3461 = vmatprep.subr.mxu0 0.0
    %3462 = vmatpush2.msra.mxu0 0.0
    %3463 = vmatprep.subr.mxu0 0.0
    %3464 = vmatpush2.msra.mxu0 0.0
    %3465 = vmatprep.subr.mxu0 0.0
    %3466 = vmatpush2.msra.mxu0 0.0
    %3467 = vmatprep.subr.mxu0 0.0
    %3468 = vmatpush2.msra.mxu0 0.0
    %3469 = vmatprep.mubr.f32.mxu0 0.0
    %v3470 = vand.u32 %v1920, 4294901760
    %3471 = vmatmul.mubr.f32.gmra.mxu0 %v3470
    %v3472 = vpop.f32.mrf.mxu0
    %v3473 = vadd.f32 %v3391, %v3472
    %v3474 = vpop.f32.mrf.mxu0
    %v3475 = vadd.f32 %v3393, %v3474
    %3476 = vdwg.mxu0
    %3477 = vmatprep.subr.mxu0 0.0
    %3478 = vmatpush1.msra.mxu0 0.0
    %3479 = vmatprep.subr.mxu0 0.0
    %3480 = vmatpush1.msra.mxu0 0.0
    %3481 = vmatprep.subr.mxu0 0.0
    %3482 = vmatpush1.msra.mxu0 0.0
    %3483 = vmatprep.subr.mxu0 0.0
    %3484 = vmatpush1.msra.mxu0 0.0
    %3485 = vmatprep.subr.mxu0 0.0
    %3486 = vmatpush1.msra.mxu0 0.0
    %3487 = vmatprep.subr.mxu0 0.0
    %3488 = vmatpush1.msra.mxu0 0.0
    %3489 = vmatprep.subr.mxu0 0.0
    %3490 = vmatpush1.msra.mxu0 0.0
    %3491 = vmatprep.subr.mxu0 0.0
    %3492 = vmatpush1.msra.mxu0 0.0
    %3493 = vmatprep.subr.mxu0 0.0
    %3494 = vmatpush1.msra.mxu0 0.0
    %3495 = vmatprep.subr.mxu0 0.0
    %3496 = vmatpush1.msra.mxu0 0.0
    %3497 = vmatprep.subr.mxu0 0.0
    %3498 = vmatpush1.msra.mxu0 0.0
    %3499 = vmatprep.subr.mxu0 0.0
    %3500 = vmatpush1.msra.mxu0 0.0
    %3501 = vmatprep.subr.mxu0 0.0
    %3502 = vmatpush1.msra.mxu0 0.0
    %3503 = vmatprep.subr.mxu0 0.0
    %3504 = vmatpush1.msra.mxu0 0.0
    %3505 = vmatprep.subr.mxu0 0.0
    %3506 = vmatpush1.msra.mxu0 0.0
    %v3507 = vand.u32 %v54, 4294901760
    %v3508 = vsub.f32 %v54, %v3507
    %3509 = vmatprep.subr.mxu0 %v3508
    %v3510 = vand.u32 %v53, 4294901760
    %v3511 = vsub.f32 %v53, %v3510
    %3512 = vmatpush1.msra.mxu0 %v3511
    %3513 = vmatprep.subr.mxu0 0.0
    %3514 = vmatpush2.msra.mxu0 0.0
    %3515 = vmatprep.subr.mxu0 0.0
    %3516 = vmatpush2.msra.mxu0 0.0
    %3517 = vmatprep.subr.mxu0 0.0
    %3518 = vmatpush2.msra.mxu0 0.0
    %3519 = vmatprep.subr.mxu0 0.0
    %3520 = vmatpush2.msra.mxu0 0.0
    %3521 = vmatprep.subr.mxu0 0.0
    %3522 = vmatpush2.msra.mxu0 0.0
    %3523 = vmatprep.subr.mxu0 0.0
    %3524 = vmatpush2.msra.mxu0 0.0
    %3525 = vmatprep.subr.mxu0 0.0
    %3526 = vmatpush2.msra.mxu0 0.0
    %3527 = vmatprep.subr.mxu0 0.0
    %3528 = vmatpush2.msra.mxu0 0.0
    %3529 = vmatprep.subr.mxu0 0.0
    %3530 = vmatpush2.msra.mxu0 0.0
    %3531 = vmatprep.subr.mxu0 0.0
    %3532 = vmatpush2.msra.mxu0 0.0
    %3533 = vmatprep.subr.mxu0 0.0
    %3534 = vmatpush2.msra.mxu0 0.0
    %3535 = vmatprep.subr.mxu0 0.0
    %3536 = vmatpush2.msra.mxu0 0.0
    %3537 = vmatprep.subr.mxu0 0.0
    %3538 = vmatpush2.msra.mxu0 0.0
    %3539 = vmatprep.subr.mxu0 0.0
    %3540 = vmatpush2.msra.mxu0 0.0
    %3541 = vmatprep.subr.mxu0 0.0
    %3542 = vmatpush2.msra.mxu0 0.0
    %3543 = vmatprep.subr.mxu0 0.0
    %3544 = vmatpush2.msra.mxu0 0.0
    %3545 = vmatprep.mubr.f32.mxu0 0.0
    %v3546 = vand.u32 %v1920, 4294901760
    %v3547 = vsub.f32 %v1920, %v3546
    %3548 = vmatmul.mubr.f32.gmra.mxu0 %v3547
    %v3549 = vpop.f32.mrf.mxu0
    %v3550 = vadd.f32 %v3473, %v3549
    %v3551 = vpop.f32.mrf.mxu0
    %v3552 = vadd.f32 %v3475, %v3551
    %3553 = vdwg.mxu0
    %3554 = vmatprep.subr.mxu0 0.0
    %3555 = vmatpush1.msra.mxu0 0.0
    %3556 = vmatprep.subr.mxu0 0.0
    %3557 = vmatpush1.msra.mxu0 0.0
    %3558 = vmatprep.subr.mxu0 0.0
    %3559 = vmatpush1.msra.mxu0 0.0
    %3560 = vmatprep.subr.mxu0 0.0
    %3561 = vmatpush1.msra.mxu0 0.0
    %3562 = vmatprep.subr.mxu0 0.0
    %3563 = vmatpush1.msra.mxu0 0.0
    %3564 = vmatprep.subr.mxu0 0.0
    %3565 = vmatpush1.msra.mxu0 0.0
    %3566 = vmatprep.subr.mxu0 0.0
    %3567 = vmatpush1.msra.mxu0 0.0
    %3568 = vmatprep.subr.mxu0 0.0
    %3569 = vmatpush1.msra.mxu0 0.0
    %3570 = vmatprep.subr.mxu0 0.0
    %3571 = vmatpush1.msra.mxu0 0.0
    %3572 = vmatprep.subr.mxu0 0.0
    %3573 = vmatpush1.msra.mxu0 0.0
    %3574 = vmatprep.subr.mxu0 0.0
    %3575 = vmatpush1.msra.mxu0 0.0
    %3576 = vmatprep.subr.mxu0 0.0
    %3577 = vmatpush1.msra.mxu0 0.0
    %3578 = vmatprep.subr.mxu0 0.0
    %3579 = vmatpush1.msra.mxu0 0.0
    %3580 = vmatprep.subr.mxu0 0.0
    %3581 = vmatpush1.msra.mxu0 0.0
    %3582 = vmatprep.subr.mxu0 0.0
    %3583 = vmatpush1.msra.mxu0 0.0
    %v3584 = vand.u32 %v54, 4294901760
    %3585 = vmatprep.subr.mxu0 %v3584
    %v3586 = vand.u32 %v53, 4294901760
    %3587 = vmatpush1.msra.mxu0 %v3586
    %3588 = vmatprep.subr.mxu0 0.0
    %3589 = vmatpush2.msra.mxu0 0.0
    %3590 = vmatprep.subr.mxu0 0.0
    %3591 = vmatpush2.msra.mxu0 0.0
    %3592 = vmatprep.subr.mxu0 0.0
    %3593 = vmatpush2.msra.mxu0 0.0
    %3594 = vmatprep.subr.mxu0 0.0
    %3595 = vmatpush2.msra.mxu0 0.0
    %3596 = vmatprep.subr.mxu0 0.0
    %3597 = vmatpush2.msra.mxu0 0.0
    %3598 = vmatprep.subr.mxu0 0.0
    %3599 = vmatpush2.msra.mxu0 0.0
    %3600 = vmatprep.subr.mxu0 0.0
    %3601 = vmatpush2.msra.mxu0 0.0
    %3602 = vmatprep.subr.mxu0 0.0
    %3603 = vmatpush2.msra.mxu0 0.0
    %3604 = vmatprep.subr.mxu0 0.0
    %3605 = vmatpush2.msra.mxu0 0.0
    %3606 = vmatprep.subr.mxu0 0.0
    %3607 = vmatpush2.msra.mxu0 0.0
    %3608 = vmatprep.subr.mxu0 0.0
    %3609 = vmatpush2.msra.mxu0 0.0
    %3610 = vmatprep.subr.mxu0 0.0
    %3611 = vmatpush2.msra.mxu0 0.0
    %3612 = vmatprep.subr.mxu0 0.0
    %3613 = vmatpush2.msra.mxu0 0.0
    %3614 = vmatprep.subr.mxu0 0.0
    %3615 = vmatpush2.msra.mxu0 0.0
    %3616 = vmatprep.subr.mxu0 0.0
    %3617 = vmatpush2.msra.mxu0 0.0
    %3618 = vmatprep.subr.mxu0 0.0
    %3619 = vmatpush2.msra.mxu0 0.0
    %3620 = vmatprep.mubr.f32.mxu0 0.0
    %v3621 = vand.u32 %v1920, 4294901760
    %v3622 = vsub.f32 %v1920, %v3621
    %v3623 = vand.u32 %v3622, 4294901760
    %3624 = vmatmul.mubr.f32.gmra.mxu0 %v3623
    %v3625 = vpop.f32.mrf.mxu0
    %v3626 = vadd.f32 %v3550, %v3625
    %v3627 = vpop.f32.mrf.mxu0
    %v3628 = vadd.f32 %v3552, %v3627
    %3629 = vdwg.mxu0
    %3630 = vmatprep.subr.mxu0 0.0
    %3631 = vmatpush1.msra.mxu0 0.0
    %3632 = vmatprep.subr.mxu0 0.0
    %3633 = vmatpush1.msra.mxu0 0.0
    %3634 = vmatprep.subr.mxu0 0.0
    %3635 = vmatpush1.msra.mxu0 0.0
    %3636 = vmatprep.subr.mxu0 0.0
    %3637 = vmatpush1.msra.mxu0 0.0
    %3638 = vmatprep.subr.mxu0 0.0
    %3639 = vmatpush1.msra.mxu0 0.0
    %3640 = vmatprep.subr.mxu0 0.0
    %3641 = vmatpush1.msra.mxu0 0.0
    %3642 = vmatprep.subr.mxu0 0.0
    %3643 = vmatpush1.msra.mxu0 0.0
    %3644 = vmatprep.subr.mxu0 0.0
    %3645 = vmatpush1.msra.mxu0 0.0
    %3646 = vmatprep.subr.mxu0 0.0
    %3647 = vmatpush1.msra.mxu0 0.0
    %3648 = vmatprep.subr.mxu0 0.0
    %3649 = vmatpush1.msra.mxu0 0.0
    %3650 = vmatprep.subr.mxu0 0.0
    %3651 = vmatpush1.msra.mxu0 0.0
    %3652 = vmatprep.subr.mxu0 0.0
    %3653 = vmatpush1.msra.mxu0 0.0
    %3654 = vmatprep.subr.mxu0 0.0
    %3655 = vmatpush1.msra.mxu0 0.0
    %3656 = vmatprep.subr.mxu0 0.0
    %3657 = vmatpush1.msra.mxu0 0.0
    %3658 = vmatprep.subr.mxu0 0.0
    %3659 = vmatpush1.msra.mxu0 0.0
    %v3660 = vand.u32 %v54, 4294901760
    %v3661 = vsub.f32 %v54, %v3660
    %v3662 = vand.u32 %v3661, 4294901760
    %3663 = vmatprep.subr.mxu0 %v3662
    %v3664 = vand.u32 %v53, 4294901760
    %v3665 = vsub.f32 %v53, %v3664
    %v3666 = vand.u32 %v3665, 4294901760
    %3667 = vmatpush1.msra.mxu0 %v3666
    %3668 = vmatprep.subr.mxu0 0.0
    %3669 = vmatpush2.msra.mxu0 0.0
    %3670 = vmatprep.subr.mxu0 0.0
    %3671 = vmatpush2.msra.mxu0 0.0
    %3672 = vmatprep.subr.mxu0 0.0
    %3673 = vmatpush2.msra.mxu0 0.0
    %3674 = vmatprep.subr.mxu0 0.0
    %3675 = vmatpush2.msra.mxu0 0.0
    %3676 = vmatprep.subr.mxu0 0.0
    %3677 = vmatpush2.msra.mxu0 0.0
    %3678 = vmatprep.subr.mxu0 0.0
    %3679 = vmatpush2.msra.mxu0 0.0
    %3680 = vmatprep.subr.mxu0 0.0
    %3681 = vmatpush2.msra.mxu0 0.0
    %3682 = vmatprep.subr.mxu0 0.0
    %3683 = vmatpush2.msra.mxu0 0.0
    %3684 = vmatprep.subr.mxu0 0.0
    %3685 = vmatpush2.msra.mxu0 0.0
    %3686 = vmatprep.subr.mxu0 0.0
    %3687 = vmatpush2.msra.mxu0 0.0
    %3688 = vmatprep.subr.mxu0 0.0
    %3689 = vmatpush2.msra.mxu0 0.0
    %3690 = vmatprep.subr.mxu0 0.0
    %3691 = vmatpush2.msra.mxu0 0.0
    %3692 = vmatprep.subr.mxu0 0.0
    %3693 = vmatpush2.msra.mxu0 0.0
    %3694 = vmatprep.subr.mxu0 0.0
    %3695 = vmatpush2.msra.mxu0 0.0
    %3696 = vmatprep.subr.mxu0 0.0
    %3697 = vmatpush2.msra.mxu0 0.0
    %3698 = vmatprep.subr.mxu0 0.0
    %3699 = vmatpush2.msra.mxu0 0.0
    %3700 = vmatprep.mubr.f32.mxu0 0.0
    %v3701 = vand.u32 %v1920, 4294901760
    %3702 = vmatmul.mubr.f32.gmra.mxu0 %v3701
    %v3703 = vpop.f32.mrf.mxu0
    %v3704 = vadd.f32 %v3626, %v3703
    %v3705 = vpop.f32.mrf.mxu0
    %v3706 = vadd.f32 %v3628, %v3705
    %3707 = vdwg.mxu0
    %3708 = vmatprep.subr.mxu0 0.0
    %3709 = vmatpush1.msra.mxu0 0.0
    %3710 = vmatprep.subr.mxu0 0.0
    %3711 = vmatpush1.msra.mxu0 0.0
    %3712 = vmatprep.subr.mxu0 0.0
    %3713 = vmatpush1.msra.mxu0 0.0
    %3714 = vmatprep.subr.mxu0 0.0
    %3715 = vmatpush1.msra.mxu0 0.0
    %3716 = vmatprep.subr.mxu0 0.0
    %3717 = vmatpush1.msra.mxu0 0.0
    %3718 = vmatprep.subr.mxu0 0.0
    %3719 = vmatpush1.msra.mxu0 0.0
    %3720 = vmatprep.subr.mxu0 0.0
    %3721 = vmatpush1.msra.mxu0 0.0
    %3722 = vmatprep.subr.mxu0 0.0
    %3723 = vmatpush1.msra.mxu0 0.0
    %3724 = vmatprep.subr.mxu0 0.0
    %3725 = vmatpush1.msra.mxu0 0.0
    %3726 = vmatprep.subr.mxu0 0.0
    %3727 = vmatpush1.msra.mxu0 0.0
    %3728 = vmatprep.subr.mxu0 0.0
    %3729 = vmatpush1.msra.mxu0 0.0
    %3730 = vmatprep.subr.mxu0 0.0
    %3731 = vmatpush1.msra.mxu0 0.0
    %3732 = vmatprep.subr.mxu0 0.0
    %3733 = vmatpush1.msra.mxu0 0.0
    %3734 = vmatprep.subr.mxu0 0.0
    %3735 = vmatpush1.msra.mxu0 0.0
    %3736 = vmatprep.subr.mxu0 0.0
    %3737 = vmatpush1.msra.mxu0 0.0
    %v3738 = vand.u32 %v54, 4294901760
    %3739 = vmatprep.subr.mxu0 %v3738
    %v3740 = vand.u32 %v53, 4294901760
    %3741 = vmatpush1.msra.mxu0 %v3740
    %3742 = vmatprep.subr.mxu0 0.0
    %3743 = vmatpush2.msra.mxu0 0.0
    %3744 = vmatprep.subr.mxu0 0.0
    %3745 = vmatpush2.msra.mxu0 0.0
    %3746 = vmatprep.subr.mxu0 0.0
    %3747 = vmatpush2.msra.mxu0 0.0
    %3748 = vmatprep.subr.mxu0 0.0
    %3749 = vmatpush2.msra.mxu0 0.0
    %3750 = vmatprep.subr.mxu0 0.0
    %3751 = vmatpush2.msra.mxu0 0.0
    %3752 = vmatprep.subr.mxu0 0.0
    %3753 = vmatpush2.msra.mxu0 0.0
    %3754 = vmatprep.subr.mxu0 0.0
    %3755 = vmatpush2.msra.mxu0 0.0
    %3756 = vmatprep.subr.mxu0 0.0
    %3757 = vmatpush2.msra.mxu0 0.0
    %3758 = vmatprep.subr.mxu0 0.0
    %3759 = vmatpush2.msra.mxu0 0.0
    %3760 = vmatprep.subr.mxu0 0.0
    %3761 = vmatpush2.msra.mxu0 0.0
    %3762 = vmatprep.subr.mxu0 0.0
    %3763 = vmatpush2.msra.mxu0 0.0
    %3764 = vmatprep.subr.mxu0 0.0
    %3765 = vmatpush2.msra.mxu0 0.0
    %3766 = vmatprep.subr.mxu0 0.0
    %3767 = vmatpush2.msra.mxu0 0.0
    %3768 = vmatprep.subr.mxu0 0.0
    %3769 = vmatpush2.msra.mxu0 0.0
    %3770 = vmatprep.subr.mxu0 0.0
    %3771 = vmatpush2.msra.mxu0 0.0
    %3772 = vmatprep.subr.mxu0 0.0
    %3773 = vmatpush2.msra.mxu0 0.0
    %3774 = vmatprep.mubr.f32.mxu0 0.0
    %v3775 = vand.u32 %v1920, 4294901760
    %3776 = vmatmul.mubr.f32.gmra.mxu0 %v3775
    %v3777 = vpop.f32.mrf.mxu0
    %v3778 = vadd.f32 %v3704, %v3777
    %v3779 = vpop.f32.mrf.mxu0
    %v3780 = vadd.f32 %v3706, %v3779
    %3781 = vdwg.mxu0
    %v3798 = vcombine.low %v520, %v522
    %v3799 = vcombine.low %v985, %v987
    %v3800 = vcombine.low %v1450, %v1452
    %v3801 = vcombine.low %v1915, %v1917
    %v3803 = vunpack.c.l.s4 1966171168
    %v3804 = vunpack.c.0.s8 %v3803
    %v3805 = vlaneseq
    %v3806 = vshrl.u32 %v3805, 7
    %v3807 = vsub.s32 %v3804, %v3806
    %v3808 = vrot.slane %v3798, %v3807
    %v3810 = vunpack.c.l.s4 1966171168
    %v3811 = vunpack.c.0.s8 %v3810
    %v3812 = vlaneseq
    %v3813 = vshrl.u32 %v3812, 7
    %v3814 = vsub.s32 %v3811, %v3813
    %v3815 = vrot.slane %v3799, %v3814
    %v3817 = vunpack.c.l.s4 1966171168
    %v3818 = vunpack.c.0.s8 %v3817
    %v3819 = vlaneseq
    %v3820 = vshrl.u32 %v3819, 7
    %v3821 = vsub.s32 %v3818, %v3820
    %v3822 = vrot.slane %v3800, %v3821
    %v3824 = vunpack.c.l.s4 1966171168
    %v3825 = vunpack.c.0.s8 %v3824
    %v3826 = vlaneseq
    %v3827 = vshrl.u32 %v3826, 7
    %v3828 = vsub.s32 %v3825, %v3827
    %v3829 = vrot.slane %v3801, %v3828
    %v3830 = vcombine.low %v3808, %v3815
    %v3831 = vcombine.low %v3822, %v3829
    %v3833 = vunpack.c.l.s4 1966171168
    %v3834 = vunpack.c.0.s8 %v3833
    %v3835 = vlaneseq
    %v3836 = vshrl.u32 %v3835, 7
    %v3837 = vsub.s32 %v3834, %v3836
    %v3838 = vrot.slane %v3830, %v3837
    %v3840 = vunpack.c.l.s4 1966171168
    %v3841 = vunpack.c.0.s8 %v3840
    %v3842 = vlaneseq
    %v3843 = vshrl.u32 %v3842, 7
    %v3844 = vsub.s32 %v3841, %v3843
    %v3845 = vrot.slane %v3831, %v3844
    %v3846 = vcombine.low %v3838, %v3845
    %v3847 = vcombine.low %v2383, %v2385
    %v3848 = vcombine.low %v2848, %v2850
    %v3849 = vcombine.low %v3313, %v3315
    %v3850 = vcombine.low %v3778, %v3780
    %v3852 = vunpack.c.l.s4 1966171168
    %v3853 = vunpack.c.0.s8 %v3852
    %v3854 = vlaneseq
    %v3855 = vshrl.u32 %v3854, 7
    %v3856 = vsub.s32 %v3853, %v3855
    %v3857 = vrot.slane %v3847, %v3856
    %v3859 = vunpack.c.l.s4 1966171168
    %v3860 = vunpack.c.0.s8 %v3859
    %v3861 = vlaneseq
    %v3862 = vshrl.u32 %v3861, 7
    %v3863 = vsub.s32 %v3860, %v3862
    %v3864 = vrot.slane %v3848, %v3863
    %v3866 = vunpack.c.l.s4 1966171168
    %v3867 = vunpack.c.0.s8 %v3866
    %v3868 = vlaneseq
    %v3869 = vshrl.u32 %v3868, 7
    %v3870 = vsub.s32 %v3867, %v3869
    %v3871 = vrot.slane %v3849, %v3870
    %v3873 = vunpack.c.l.s4 1966171168
    %v3874 = vunpack.c.0.s8 %v3873
    %v3875 = vlaneseq
    %v3876 = vshrl.u32 %v3875, 7
    %v3877 = vsub.s32 %v3874, %v3876
    %v3878 = vrot.slane %v3850, %v3877
    %v3879 = vcombine.low %v3857, %v3864
    %v3880 = vcombine.low %v3871, %v3878
    %v3882 = vunpack.c.l.s4 1966171168
    %v3883 = vunpack.c.0.s8 %v3882
    %v3884 = vlaneseq
    %v3885 = vshrl.u32 %v3884, 7
    %v3886 = vsub.s32 %v3883, %v3885
    %v3887 = vrot.slane %v3879, %v3886
    %v3889 = vunpack.c.l.s4 1966171168
    %v3890 = vunpack.c.0.s8 %v3889
    %v3891 = vlaneseq
    %v3892 = vshrl.u32 %v3891, 7
    %v3893 = vsub.s32 %v3890, %v3892
    %v3894 = vrot.slane %v3880, %v3893
    %v3895 = vcombine.low %v3887, %v3894
    %v3898 = vadd.f32 %v35, %v3846
    %v3899 = vadd.f32 %v36, %v3895
    %3900 = vst [vmem:[#allocation5] sm:$0xff] %v3898
    %3901 = vst [vmem:[#allocation5 + $0x8] sm:$0xff] %v3899
    // Predicated region
    $region22: #{tpu_custom_call.1} parent=1 // pred_check
      %p3902 = pneg %p29
    $region23: #{tpu_custom_call.1} parent=1 // pred_check_branch
      %3904 = sbr.rel (%p3902) target = $region25
    $region24: #{tpu_custom_call.1} parent=1 // pred_region
      %v3905 = vld [vmem:[#allocation5] sm:$0xff]
      %v3906 = vld [vmem:[#allocation5 + $0x8] sm:$0xff]
      %v3907 = vld [vmem:[%s1] sm:$0x1]
      %v3908 = vld [vmem:[%s1 + $0x1] sm:$0x1]
      %3910 = vset.pattern.permute.xlu0 0
      %3911 = vperm.xlu0 %3910, %v3907
      %v3912 = vpop.permute.xlu0 %3911
      %v3914 = vlaneseq
      %v3915 = vshrl.u32 %v3914, 7
      %v3916 = vsub.s32 0, %v3915
      %v3917 = vrot.slane %v3912, %v3916
      %3919 = vset.pattern.permute.xlu0 0
      %3920 = vperm.xlu0 %3919, %v3908
      %v3921 = vpop.permute.xlu0 %3920
      %v3923 = vlaneseq
      %v3924 = vshrl.u32 %v3923, 7
      %v3925 = vsub.s32 0, %v3924
      %v3926 = vrot.slane %v3921, %v3925
      %v3927 = vmul.f32 %v3905, %v3917
      %v3928 = vmul.f32 %v3906, %v3926
      %3929 = vst [vmem:[#allocation5] sm:$0xff] %v3927
      %3930 = vst [vmem:[#allocation5 + $0x8] sm:$0xff] %v3928
    $region25: #{tpu_custom_call.1} parent=1 // pred_fallthru
      _
    // Predicated region
    $region26: #{tpu_custom_call.1} parent=1 // pred_check
      _
    $region27: #{tpu_custom_call.1} parent=1 // pred_check_branch
      %3932 = sbr.rel (0) target = $region29
    $region28: #{tpu_custom_call.1} parent=1 // pred_region
      %s3934 = ssub.s32 256, 256
      %3935 = vsyncadd [#allocation4], %s3934
      %s3936 = sshll.u32 [#allocation5], 4
      %s3937 = int_to_ptr.vmem [resolvable:$true] %s3936
      %3942 = dma.vmem_to_hbm [thread:$0]  %s3937, 256, %s3, [#allocation4], 128, 128, 8
    $region29: #{tpu_custom_call.1} parent=1 // pred_fallthru
      _
    // Predicated region
    $region30: #{tpu_custom_call.1} parent=1 // pred_check
      _
    $region31: #{tpu_custom_call.1} parent=1 // pred_check_branch
      %3944 = sbr.rel (0) target = $region33
    $region32: #{tpu_custom_call.1} parent=1 // pred_region
      %3945 = dma.done [#allocation4], 256
    $region33: #{tpu_custom_call.1} parent=1 // pred_fallthru
      _
    %3946 = vsyncpa [#allocation3], 1
    %3947 = vsyncpa [#allocation4], 1

</llo_original>
